<compile_context>
chip_gen: v6e
topology: v6e:2x2x1
jax: 0.10.0
libtpu: 0.0.40
codegen_flags: <defaults>
</compile_context>

<pallas_src>
import functools

import jax
import jax.numpy as jnp
from jax.experimental import pallas as pl
from jax.experimental.pallas import tpu as pltpu

_LANE = 128


def _round_up(n, m):
    return ((n + m - 1) // m) * m


def _residual_stack_kernel(x_ref, w1_ref, w2_ref, out_ref, xpad_ref, *,
                           H, W, n_layers, final_relu):
    """Whole ResidualStack for one batch tile, all layers fused.

    x_ref   : (bt, H, W, C)      input activation tile (C padded to 128*k)
    w1_ref  : (L, 9*C, C)        3x3 conv weights, im2col-flattened per layer
    w2_ref  : (L, C, C)          1x1 conv weights per layer
    out_ref : (bt, H, W, C)
    xpad_ref: (bt, H+2, W+2, C)  VMEM scratch: spatially padded, ReLU'd activation
    """
    bt = x_ref.shape[0]
    C = x_ref.shape[3]

    # Zero the padded scratch once per grid step; only the center is rewritten
    # inside the layer loop, so the 1-pixel zero border persists.
    xpad_ref[...] = jnp.zeros_like(xpad_ref)

    x = x_ref[...]                                          # running activation
    for layer in range(n_layers):
        # ReLU before conv_1.  ReLU(0) == 0, so padding before/after the ReLU
        # is equivalent: write relu(x) into the center of the zero-padded scratch.
        xpad_ref[:, 1:H + 1, 1:W + 1, :] = jnp.maximum(x, jnp.zeros((), x.dtype))
        xpad = xpad_ref[...]                                # (bt, H+2, W+2, C)

        # 3x3 conv (stride 1, pad 1, no bias) as ONE im2col matmul: the 9
        # shifted taps are concatenated along the lane-aligned channel axis,
        # giving a single long-K (K = 9*C) MXU push.
        taps = [xpad[:, di:di + H, dj:dj + W, :]
                for di in range(3) for dj in range(3)]
        patches = jnp.concatenate(taps, axis=-1)            # (bt, H, W, 9C)
        patches = patches.reshape(bt * H * W, 9 * C)
        acc = jnp.dot(patches, w1_ref[layer],
                      preferred_element_type=jnp.float32)   # (bt*H*W, C) f32

        # ReLU before conv_2, then 1x1 conv = channel matmul (no bias).
        h2 = jnp.maximum(acc, 0.0).astype(w2_ref.dtype)
        z = jnp.dot(h2, w2_ref[layer],
                    preferred_element_type=jnp.float32)     # (bt*H*W, C) f32

        # Residual add; the stack's final ReLU is fused into the last layer.
        x = x + z.astype(x.dtype).reshape(bt, H, W, C)
        if final_relu and layer == n_layers - 1:
            x = jnp.maximum(x, jnp.zeros((), x.dtype))

    out_ref[...] = x                                        # lane-dense store


def residual_stack_forward(x_nchw, weights, *, final_relu=True,
                           compute_dtype=None, batch_tile=1):
    """ResidualStack forward.  x_nchw: (B, C, H, W) like PyTorch.

    weights: list of (w1, w2) per layer; w1: (3,3,Cin,Cout) HWIO, w2: (Cin,Cout).
    compute_dtype: dtype for the MXU operands (e.g. jnp.bfloat16 on v6e/v7x);
      accumulation is always f32.  Defaults to the input dtype.
    """
    B, C, H, W = x_nchw.shape
    n_layers = len(weights)
    assert n_layers >= 1
    for (w1, w2) in weights:
        # The residual add requires Cin == Cout.
        assert w1.shape == (3, 3, C, C), w1.shape
        assert w2.shape == (C, C), w2.shape

    dtype = (jnp.dtype(compute_dtype) if compute_dtype is not None
             else jnp.dtype(x_nchw.dtype))
    itemsize = dtype.itemsize

    # Pad channels up to a multiple of 128 (lane width).  Zero-padded channels
    # stay exactly zero through every layer (zero weights, ReLU(0)=0), so
    # slicing them off at the end is exact.
    Cp = _round_up(C, _LANE)

    # NCHW -> NHWC (+ channel pad), cast to compute dtype.  Boundary glue only.
    x = jnp.transpose(x_nchw, (0, 2, 3, 1)).astype(dtype)
    if Cp != C:
        x = jnp.pad(x, ((0, 0), (0, 0), (0, 0), (0, Cp - C)))

    def pad_w1(w1):
        w1p = jnp.pad(w1.astype(dtype),
                      ((0, 0), (0, 0), (0, Cp - C), (0, Cp - C)))
        # (3,3,Cp,Cp) -> (9*Cp, Cp); (di,dj,cin) row-major matches im2col order.
        return w1p.reshape(9 * Cp, Cp)

    def pad_w2(w2):
        return jnp.pad(w2.astype(dtype), ((0, Cp - C), (0, Cp - C)))

    w1_all = jnp.stack([pad_w1(w1) for (w1, _) in weights])   # (L, 9*Cp, Cp)
    w2_all = jnp.stack([pad_w2(w2) for (_, w2) in weights])   # (L, Cp, Cp)

    bt = max(1, min(batch_tile, B))
    assert B % bt == 0, (B, bt)

    # Scheduler hint for XLA around the custom call.
    flops = 2 * B * H * W * (9 * Cp * Cp + Cp * Cp) * n_layers
    bytes_accessed = (2 * B * H * W * Cp
                      + n_layers * (9 * Cp * Cp + Cp * Cp)) * itemsize
    cost = pl.CostEstimate(flops=flops, transcendentals=0,
                           bytes_accessed=bytes_accessed)

    # Explicit scoped-VMEM limit with headroom; stay below v7x's 64 MiB physical.
    blk = bt * H * W * Cp * itemsize                            # in/out block
    pad_scratch = bt * (H + 2) * (W + 2) * Cp * itemsize
    transients = bt * H * W * (9 * Cp * itemsize + 2 * Cp * 4)  # im2col + f32 acc/z
    wts = n_layers * (9 * Cp * Cp + Cp * Cp) * itemsize
    est = 2 * 2 * blk + pad_scratch + transients + wts          # io double-buffers + rest
    vmem_limit = int(min(max(int(est * 1.5) + (4 << 20), 32 << 20), 60 << 20))

    kernel = functools.partial(_residual_stack_kernel, H=H, W=W,
                               n_layers=n_layers, final_relu=final_relu)

    out = pl.pallas_call(
        kernel,
        out_shape=jax.ShapeDtypeStruct((B, H, W, Cp), dtype),
        grid=(B // bt,),
        in_specs=[
            pl.BlockSpec((bt, H, W, Cp), lambda b: (b, 0, 0, 0)),
            # Constant index_map -> weights DMA'd once, resident across grid steps.
            pl.BlockSpec((n_layers, 9 * Cp, Cp), lambda b: (0, 0, 0)),
            pl.BlockSpec((n_layers, Cp, Cp), lambda b: (0, 0, 0)),
        ],
        out_specs=pl.BlockSpec((bt, H, W, Cp), lambda b: (b, 0, 0, 0)),
        scratch_shapes=[pltpu.VMEM((bt, H + 2, W + 2, Cp), dtype)],
        compiler_params=pltpu.CompilerParams(
            dimension_semantics=("parallel",),
            vmem_limit_bytes=vmem_limit),
        cost_estimate=cost,
    )(x, w1_all, w2_all)

    # Drop channel padding, NHWC -> NCHW, back to the caller's dtype.
    out = out[:, :, :, :C]
    return jnp.transpose(out, (0, 3, 1, 2)).astype(x_nchw.dtype)


def _reference_forward(x_nchw, weights, *, final_relu=True):
    """Pure-JAX reference (lax.conv, NCHW) for correctness check."""
    x = x_nchw
    for (w1, w2) in weights:
        h = jax.nn.relu(x)
        y = jax.lax.conv_general_dilated(
            h, w1, window_strides=(1, 1), padding=((1, 1), (1, 1)),
            dimension_numbers=("NCHW", "HWIO", "NCHW"))
        h2 = jax.nn.relu(y)
        z = jax.lax.conv_general_dilated(
            h2, w2[None, None, :, :], window_strides=(1, 1), padding="VALID",
            dimension_numbers=("NCHW", "HWIO", "NCHW"))
        x = x + z
    if final_relu:
        x = jax.nn.relu(x)
    return x


def make_weights(key, in_channels, out_channels, num_layers):
    """Deterministic synthetic weights (shapes match nn.Conv2d, bias=False)."""
    weights = []
    for i in range(num_layers):
        k1, k2, key = jax.random.split(jax.random.fold_in(key, i), 3)
        # conv_1: Conv2d(in, out, kernel_size=3) -> HWIO (3,3,Cin,Cout)
        w1 = jax.random.normal(k1, (3, 3, in_channels, out_channels),
                               jnp.float32) * 0.1
        # conv_2: Conv2d(out, out, kernel_size=1) -> (Cin, Cout)
        w2 = jax.random.normal(k2, (out_channels, out_channels),
                               jnp.float32) * 0.1
        weights.append((w1, w2))
    return weights


if __name__ == "__main__":
    key = jax.random.PRNGKey(0)
    B, C, H, W = 2, 4, 16, 16          # in_channels == out_channels (residual add)
    num_residual_layers = 2

    kx, kw = jax.random.split(key)
    x = jax.random.normal(kx, (B, C, H, W), jnp.float32)
    weights = make_weights(kw, C, C, num_residual_layers)

    out = residual_stack_forward(x, weights, final_relu=True)
    out = jax.block_until_ready(out)

    ref = _reference_forward(x, weights, final_relu=True)
    ref = jax.block_until_ready(ref)

    assert out.shape == (B, C, H, W), out.shape
    assert jnp.allclose(out, ref, atol=1e-4, rtol=1e-4), float(
        jnp.max(jnp.abs(out - ref)))
    print("KERNEL_OK")
</pallas_src>

<mosaic_0001>
module attributes {stable_mosaic.version = 11 : i64} {
  func.func @_residual_stack_kernel(%arg0: i32, %arg1: memref<1x16x16x128xf32, #tpu.memory_space<vmem>>, %arg2: memref<2x1152x128xf32, #tpu.memory_space<vmem>>, %arg3: memref<2x128x128xf32, #tpu.memory_space<vmem>>, %arg4: memref<1x16x16x128xf32, #tpu.memory_space<vmem>>, %arg5: memref<1x18x18x128xf32, #tpu.memory_space<vmem>>) attributes {dimension_semantics = [#tpu.dimension_semantics<parallel>], iteration_bounds = array<i64: 2>, scalar_prefetch = 0 : i64, scratch_operands = 1 : i64, tpu.core_type = #tpu.core_type<tc>, window_params = [{transform_indices = @transform_0, window_bounds = array<i64: 1, 16, 16, 128>}, {pipeline_mode = #tpu.pipeline_mode<synchronous>, transform_indices = @transform_1, window_bounds = array<i64: 2, 1152, 128>}, {pipeline_mode = #tpu.pipeline_mode<synchronous>, transform_indices = @transform_2, window_bounds = array<i64: 2, 128, 128>}, {transform_indices = @transform_3, window_bounds = array<i64: 1, 16, 16, 128>}]} {
    %cst = arith.constant 0.000000e+00 : f32
    %0 = vector.broadcast %cst : f32 to vector<1x18x18x128xf32>
    %c0 = arith.constant 0 : index
    %c0_0 = arith.constant 0 : index
    %c0_1 = arith.constant 0 : index
    %c0_2 = arith.constant 0 : index
    %1 = vector.load %arg5[%c0, %c0_0, %c0_1, %c0_2] : memref<1x18x18x128xf32, #tpu.memory_space<vmem>>, vector<1x18x18x128xf32>
    tpu.vector_store %arg5[%c0, %c0_0, %c0_1, %c0_2], %0 {strides = array<i32>} : memref<1x18x18x128xf32, #tpu.memory_space<vmem>>, vector<1x18x18x128xf32>,
    %c0_3 = arith.constant 0 : index
    %c0_4 = arith.constant 0 : index
    %c0_5 = arith.constant 0 : index
    %c0_6 = arith.constant 0 : index
    %2 = vector.load %arg1[%c0_3, %c0_4, %c0_5, %c0_6] : memref<1x16x16x128xf32, #tpu.memory_space<vmem>>, vector<1x16x16x128xf32>
    %cst_7 = arith.constant 0.000000e+00 : f32
    %3 = vector.broadcast %cst_7 : f32 to vector<1x16x16x128xf32>
    %4 = arith.maximumf %2, %3 : vector<1x16x16x128xf32>
    %c0_8 = arith.constant 0 : index
    %c1 = arith.constant 1 : index
    %c1_9 = arith.constant 1 : index
    %c0_10 = arith.constant 0 : index
    %5 = vector.load %arg5[%c0_8, %c1, %c1_9, %c0_10] : memref<1x18x18x128xf32, #tpu.memory_space<vmem>>, vector<1x16x16x128xf32>
    tpu.vector_store %arg5[%c0_8, %c1, %c1_9, %c0_10], %4 {strides = array<i32>} : memref<1x18x18x128xf32, #tpu.memory_space<vmem>>, vector<1x16x16x128xf32>,
    %c0_11 = arith.constant 0 : index
    %c0_12 = arith.constant 0 : index
    %c0_13 = arith.constant 0 : index
    %c0_14 = arith.constant 0 : index
    %6 = vector.load %arg5[%c0_11, %c0_12, %c0_13, %c0_14] : memref<1x18x18x128xf32, #tpu.memory_space<vmem>>, vector<1x18x18x128xf32>
    %7 = vector.extract_strided_slice %6 {offsets = [0, 0, 0, 0], sizes = [1, 16, 16, 128], strides = [1, 1, 1, 1]} : vector<1x18x18x128xf32> to vector<1x16x16x128xf32>
    %8 = vector.extract_strided_slice %6 {offsets = [0, 0, 1, 0], sizes = [1, 16, 16, 128], strides = [1, 1, 1, 1]} : vector<1x18x18x128xf32> to vector<1x16x16x128xf32>
    %9 = vector.extract_strided_slice %6 {offsets = [0, 0, 2, 0], sizes = [1, 16, 16, 128], strides = [1, 1, 1, 1]} : vector<1x18x18x128xf32> to vector<1x16x16x128xf32>
    %10 = vector.extract_strided_slice %6 {offsets = [0, 1, 0, 0], sizes = [1, 16, 16, 128], strides = [1, 1, 1, 1]} : vector<1x18x18x128xf32> to vector<1x16x16x128xf32>
    %11 = vector.extract_strided_slice %6 {offsets = [0, 1, 1, 0], sizes = [1, 16, 16, 128], strides = [1, 1, 1, 1]} : vector<1x18x18x128xf32> to vector<1x16x16x128xf32>
    %12 = vector.extract_strided_slice %6 {offsets = [0, 1, 2, 0], sizes = [1, 16, 16, 128], strides = [1, 1, 1, 1]} : vector<1x18x18x128xf32> to vector<1x16x16x128xf32>
    %13 = vector.extract_strided_slice %6 {offsets = [0, 2, 0, 0], sizes = [1, 16, 16, 128], strides = [1, 1, 1, 1]} : vector<1x18x18x128xf32> to vector<1x16x16x128xf32>
    %14 = vector.extract_strided_slice %6 {offsets = [0, 2, 1, 0], sizes = [1, 16, 16, 128], strides = [1, 1, 1, 1]} : vector<1x18x18x128xf32> to vector<1x16x16x128xf32>
    %15 = vector.extract_strided_slice %6 {offsets = [0, 2, 2, 0], sizes = [1, 16, 16, 128], strides = [1, 1, 1, 1]} : vector<1x18x18x128xf32> to vector<1x16x16x128xf32>
    %16 = tpu.concatenate %7, %8, %9, %10, %11, %12, %13, %14, %15 in 3 : vector<1x16x16x128xf32>, vector<1x16x16x128xf32>, vector<1x16x16x128xf32>, vector<1x16x16x128xf32>, vector<1x16x16x128xf32>, vector<1x16x16x128xf32>, vector<1x16x16x128xf32>, vector<1x16x16x128xf32>, vector<1x16x16x128xf32> -> vector<1x16x16x1152xf32>
    %17 = vector.shape_cast %16 : vector<1x16x16x1152xf32> to vector<256x1152xf32>
    %c0_15 = arith.constant 0 : index
    %c0_16 = arith.constant 0 : index
    %c0_17 = arith.constant 0 : index
    %18 = vector.load %arg2[%c0_15, %c0_16, %c0_17] : memref<2x1152x128xf32, #tpu.memory_space<vmem>>, vector<1x1152x128xf32>
    %19 = vector.shape_cast %18 : vector<1x1152x128xf32> to vector<1152x128xf32>
    %cst_18 = arith.constant dense<0.000000e+00> : vector<256x128xf32>
    %20 = tpu.matmul %17, %19, %cst_18 {dimension_numbers = #tpu.dot_dimension_numbers<[1], [0], [0], [1], [0, 0, 1, 1], [], []>} : vector<256x1152xf32>, vector<1152x128xf32>, vector<256x128xf32> -> vector<256x128xf32>
    %cst_19 = arith.constant 0.000000e+00 : f32
    %21 = vector.broadcast %cst_19 : f32 to vector<256x128xf32>
    %22 = arith.maximumf %20, %21 : vector<256x128xf32>
    %c0_20 = arith.constant 0 : index
    %c0_21 = arith.constant 0 : index
    %c0_22 = arith.constant 0 : index
    %23 = vector.load %arg3[%c0_20, %c0_21, %c0_22] : memref<2x128x128xf32, #tpu.memory_space<vmem>>, vector<1x128x128xf32>
    %24 = vector.shape_cast %23 : vector<1x128x128xf32> to vector<128x128xf32>
    %cst_23 = arith.constant dense<0.000000e+00> : vector<256x128xf32>
    %25 = tpu.matmul %22, %24, %cst_23 {dimension_numbers = #tpu.dot_dimension_numbers<[1], [0], [0], [1], [0, 0, 1, 1], [], []>} : vector<256x128xf32>, vector<128x128xf32>, vector<256x128xf32> -> vector<256x128xf32>
    %26 = vector.shape_cast %25 : vector<256x128xf32> to vector<1x16x16x128xf32>
    %27 = arith.addf %2, %26 : vector<1x16x16x128xf32>
    %cst_24 = arith.constant 0.000000e+00 : f32
    %28 = vector.broadcast %cst_24 : f32 to vector<1x16x16x128xf32>
    %29 = arith.maximumf %27, %28 : vector<1x16x16x128xf32>
    %c0_25 = arith.constant 0 : index
    %c1_26 = arith.constant 1 : index
    %c1_27 = arith.constant 1 : index
    %c0_28 = arith.constant 0 : index
    %30 = vector.load %arg5[%c0_25, %c1_26, %c1_27, %c0_28] : memref<1x18x18x128xf32, #tpu.memory_space<vmem>>, vector<1x16x16x128xf32>
    tpu.vector_store %arg5[%c0_25, %c1_26, %c1_27, %c0_28], %29 {strides = array<i32>} : memref<1x18x18x128xf32, #tpu.memory_space<vmem>>, vector<1x16x16x128xf32>,
    %c0_29 = arith.constant 0 : index
    %c0_30 = arith.constant 0 : index
    %c0_31 = arith.constant 0 : index
    %c0_32 = arith.constant 0 : index
    %31 = vector.load %arg5[%c0_29, %c0_30, %c0_31, %c0_32] : memref<1x18x18x128xf32, #tpu.memory_space<vmem>>, vector<1x18x18x128xf32>
    %32 = vector.extract_strided_slice %31 {offsets = [0, 0, 0, 0], sizes = [1, 16, 16, 128], strides = [1, 1, 1, 1]} : vector<1x18x18x128xf32> to vector<1x16x16x128xf32>
    %33 = vector.extract_strided_slice %31 {offsets = [0, 0, 1, 0], sizes = [1, 16, 16, 128], strides = [1, 1, 1, 1]} : vector<1x18x18x128xf32> to vector<1x16x16x128xf32>
    %34 = vector.extract_strided_slice %31 {offsets = [0, 0, 2, 0], sizes = [1, 16, 16, 128], strides = [1, 1, 1, 1]} : vector<1x18x18x128xf32> to vector<1x16x16x128xf32>
    %35 = vector.extract_strided_slice %31 {offsets = [0, 1, 0, 0], sizes = [1, 16, 16, 128], strides = [1, 1, 1, 1]} : vector<1x18x18x128xf32> to vector<1x16x16x128xf32>
    %36 = vector.extract_strided_slice %31 {offsets = [0, 1, 1, 0], sizes = [1, 16, 16, 128], strides = [1, 1, 1, 1]} : vector<1x18x18x128xf32> to vector<1x16x16x128xf32>
    %37 = vector.extract_strided_slice %31 {offsets = [0, 1, 2, 0], sizes = [1, 16, 16, 128], strides = [1, 1, 1, 1]} : vector<1x18x18x128xf32> to vector<1x16x16x128xf32>
    %38 = vector.extract_strided_slice %31 {offsets = [0, 2, 0, 0], sizes = [1, 16, 16, 128], strides = [1, 1, 1, 1]} : vector<1x18x18x128xf32> to vector<1x16x16x128xf32>
    %39 = vector.extract_strided_slice %31 {offsets = [0, 2, 1, 0], sizes = [1, 16, 16, 128], strides = [1, 1, 1, 1]} : vector<1x18x18x128xf32> to vector<1x16x16x128xf32>
    %40 = vector.extract_strided_slice %31 {offsets = [0, 2, 2, 0], sizes = [1, 16, 16, 128], strides = [1, 1, 1, 1]} : vector<1x18x18x128xf32> to vector<1x16x16x128xf32>
    %41 = tpu.concatenate %32, %33, %34, %35, %36, %37, %38, %39, %40 in 3 : vector<1x16x16x128xf32>, vector<1x16x16x128xf32>, vector<1x16x16x128xf32>, vector<1x16x16x128xf32>, vector<1x16x16x128xf32>, vector<1x16x16x128xf32>, vector<1x16x16x128xf32>, vector<1x16x16x128xf32>, vector<1x16x16x128xf32> -> vector<1x16x16x1152xf32>
    %42 = vector.shape_cast %41 : vector<1x16x16x1152xf32> to vector<256x1152xf32>
    %c1_33 = arith.constant 1 : index
    %c0_34 = arith.constant 0 : index
    %c0_35 = arith.constant 0 : index
    %43 = vector.load %arg2[%c1_33, %c0_34, %c0_35] : memref<2x1152x128xf32, #tpu.memory_space<vmem>>, vector<1x1152x128xf32>
    %44 = vector.shape_cast %43 : vector<1x1152x128xf32> to vector<1152x128xf32>
    %cst_36 = arith.constant dense<0.000000e+00> : vector<256x128xf32>
    %45 = tpu.matmul %42, %44, %cst_36 {dimension_numbers = #tpu.dot_dimension_numbers<[1], [0], [0], [1], [0, 0, 1, 1], [], []>} : vector<256x1152xf32>, vector<1152x128xf32>, vector<256x128xf32> -> vector<256x128xf32>
    %cst_37 = arith.constant 0.000000e+00 : f32
    %46 = vector.broadcast %cst_37 : f32 to vector<256x128xf32>
    %47 = arith.maximumf %45, %46 : vector<256x128xf32>
    %c1_38 = arith.constant 1 : index
    %c0_39 = arith.constant 0 : index
    %c0_40 = arith.constant 0 : index
    %48 = vector.load %arg3[%c1_38, %c0_39, %c0_40] : memref<2x128x128xf32, #tpu.memory_space<vmem>>, vector<1x128x128xf32>
    %49 = vector.shape_cast %48 : vector<1x128x128xf32> to vector<128x128xf32>
    %cst_41 = arith.constant dense<0.000000e+00> : vector<256x128xf32>
    %50 = tpu.matmul %47, %49, %cst_41 {dimension_numbers = #tpu.dot_dimension_numbers<[1], [0], [0], [1], [0, 0, 1, 1], [], []>} : vector<256x128xf32>, vector<128x128xf32>, vector<256x128xf32> -> vector<256x128xf32>
    %51 = vector.shape_cast %50 : vector<256x128xf32> to vector<1x16x16x128xf32>
    %52 = arith.addf %27, %51 : vector<1x16x16x128xf32>
    %cst_42 = arith.constant 0.000000e+00 : f32
    %53 = vector.broadcast %cst_42 : f32 to vector<1x16x16x128xf32>
    %54 = arith.maximumf %52, %53 : vector<1x16x16x128xf32>
    %c0_43 = arith.constant 0 : index
    %c0_44 = arith.constant 0 : index
    %c0_45 = arith.constant 0 : index
    %c0_46 = arith.constant 0 : index
    %55 = vector.load %arg4[%c0_43, %c0_44, %c0_45, %c0_46] : memref<1x16x16x128xf32, #tpu.memory_space<vmem>>, vector<1x16x16x128xf32>
    tpu.vector_store %arg4[%c0_43, %c0_44, %c0_45, %c0_46], %54 {strides = array<i32>} : memref<1x16x16x128xf32, #tpu.memory_space<vmem>>, vector<1x16x16x128xf32>,
    return
  }
  func.func @transform_0(%arg0: i32) -> (i32, i32, i32, i32) {
    %c0_i32 = arith.constant 0 : i32
    %c0_i32_0 = arith.constant 0 : i32
    %c0_i32_1 = arith.constant 0 : i32
    %c0_i32_2 = arith.constant 0 : i32
    return %arg0, %c0_i32, %c0_i32_0, %c0_i32_1 : i32, i32, i32, i32
  }
  func.func @transform_1(%arg0: i32) -> (i32, i32, i32) {
    %c0_i32 = arith.constant 0 : i32
    %c0_i32_0 = arith.constant 0 : i32
    %c0_i32_1 = arith.constant 0 : i32
    %c0_i32_2 = arith.constant 0 : i32
    return %c0_i32, %c0_i32_0, %c0_i32_1 : i32, i32, i32
  }
  func.func @transform_2(%arg0: i32) -> (i32, i32, i32) {
    %c0_i32 = arith.constant 0 : i32
    %c0_i32_0 = arith.constant 0 : i32
    %c0_i32_1 = arith.constant 0 : i32
    %c0_i32_2 = arith.constant 0 : i32
    return %c0_i32, %c0_i32_0, %c0_i32_1 : i32, i32, i32
  }
  func.func @transform_3(%arg0: i32) -> (i32, i32, i32, i32) {
    %c0_i32 = arith.constant 0 : i32
    %c0_i32_0 = arith.constant 0 : i32
    %c0_i32_1 = arith.constant 0 : i32
    %c0_i32_2 = arith.constant 0 : i32
    return %arg0, %c0_i32, %c0_i32_0, %c0_i32_1 : i32, i32, i32, i32
  }
}

</mosaic_0001>

<llo_original>
// kernel: tpu_custom_call.1
$region0: #{tpu_custom_call.1}
  #allocation0 [shape = 'u32[]', space=smem, size = 0x4, offset = 0x4, fixed_abs, tag = 'smem constant byte address 0x4 - core index']
  #allocation1 [shape = 'u32[144,128]{1,0:T(1,128)}', space=vmem, size = 0x12000, scoped, tag = 'internal scratch']
  #allocation2 [shape = 'f32[1,18,18,128]{3,2,1,0:T(8,128)}', space=vmem, size = 0x36000, scoped, tag = 'scratch operand']
  %s0 = inlined_call_operand.hbm [shape: f32[2,16,16,128], index: 0, kind: input, shape index: {}]
  %s1 = inlined_call_operand.hbm [shape: f32[2,1152,128], index: 1, kind: input, shape index: {}]
  %s2 = inlined_call_operand.hbm [shape: f32[2,128,128], index: 2, kind: input, shape index: {}]
  %s3 = inlined_call_operand.hbm [shape: f32[2,16,16,128], index: 3, kind: output, shape index: {}]
  %s4 = sld [smem:[#allocation0]]
  $region57: #{tpu_custom_call.1} parent=0
    _
  %s6 = ssub.s32 1, %s4
  %s7 = scalar_select 0, %s6, %s4
  $region1: #{tpu_custom_call.1} parent=0
    #allocation3 [shape = 'u8[262144]{0}', space=vmem, size = 0x40000, scoped, tag = 'input window, operand 0']
    #allocation4 [shape = 's32[2]{0}', space=sflag, size = 0x8, scoped, tag = 'scoped memory for tpu_custom_call.1']
    #allocation5 [shape = 's32[2]{0}', space=sflag, size = 0x8, scoped, tag = 'scoped memory for tpu_custom_call.1']
    #allocation6 [shape = 'u8[1179648]{0}', space=vmem, size = 0x120000, scoped, tag = 'input window, operand 1, single buffered']
    #allocation7 [shape = 's32[1]{0}', space=sflag, size = 0x4, scoped, tag = 'scoped memory for tpu_custom_call.1']
    #allocation8 [shape = 'u8[131072]{0}', space=vmem, size = 0x20000, scoped, tag = 'input window, operand 2, single buffered']
    #allocation9 [shape = 'u8[262144]{0}', space=vmem, size = 0x40000, scoped, tag = 'output window, operand 0']
    %8 = vsyncpa [#allocation4], 0
    %s9 = scalar_lea.sflag [#allocation4], 1
    %10 = vsyncpa %s9, 0
    %11 = vsyncpa [#allocation7], 0
    %12 = vsyncpa [#allocation5], 0
    %s13 = scalar_lea.sflag [#allocation5], 1
    %14 = vsyncpa %s13, 0
    loop: start=0, step=1, limit=4
    $region2: #{tpu_custom_call.1} parent=1 // loop_pre_header
      _
    $region3: #{tpu_custom_call.1} parent=1 // loop_header
      %s16 = sphi 0, %s20
      %p17 = scmp.ge.s32.totalorder %s16, 4
      %s26 = sphi 0, %s28
      %s29 = sphi 0, %s26
      %s30 = sphi 0, %s29
      %s46 = sphi 0, %s30
      %s50 = sphi 0, %s50
      %s52 = sphi 0, %s50
      %s53 = sphi 0, %s52
      %s67 = sphi 0, %s53
      %s71 = sphi 0, %s71
      %s73 = sphi 0, %s71
      %s74 = sphi 0, %s73
      %s88 = sphi 0, %s74
      %s94 = sphi 0, %s96
      %s97 = sphi 0, %s94
      %s98 = sphi 0, %s97
      %s114 = sphi 0, %s98
    $region4: #{tpu_custom_call.1} parent=1 // loop_header_branch
      %19 = sbr.rel (%p17) target = $region8
    $region5: #{tpu_custom_call.1} parent=1 // loop_body
      %s21 = ssub.s32 %s16, 1
      %s22 = ssub.s32 %s16, 2
      %s23 = sadd.s32 %s16, 1
      %s24 = ssub.s32 %s16, %s23
      %p25 = scmp.eq.s32.totalorder %s24, 0
      %s27 = sadd.s32 %s26, 1
      %s28 = scalar_select %p25, %s26, %s27
      %p31 = pneg %p25
      %p32 = scmp.eq.s32.totalorder %s16, 1
      %p33 = por %p31, %p32
      %p34 = scmp.ne.s32.totalorder %s26, %s29
      %p35 = scmp.eq.s32.totalorder %s16, 0
      %p36 = por %p34, %p35
      %p37 = scmp.ne.s32.totalorder %s26, %s29
      %p38 = scmp.eq.s32.totalorder %s21, 1
      %p39 = por %p37, %p38
      %p40 = scmp.ne.s32.totalorder %s29, %s30
      %p41 = scmp.eq.s32.totalorder %s21, 0
      %p42 = por %p40, %p41
      %p43 = scmp.ne.s32.totalorder %s29, %s30
      %p44 = scmp.eq.s32.totalorder %s22, 1
      %p45 = por %p43, %p44
      %p47 = scmp.ne.s32.totalorder %s30, %s46
      %p48 = scmp.eq.s32.totalorder %s22, 0
      %p49 = por %p47, %p48
      %s51 = sadd.s32 %s50, 1
      %p54 = scmp.eq.s32.totalorder %s16, 1
      %p55 = scmp.ne.s32.totalorder %s50, %s52
      %p56 = scmp.eq.s32.totalorder %s16, 0
      %p57 = por %p55, %p56
      %p58 = scmp.ne.s32.totalorder %s50, %s52
      %p59 = scmp.eq.s32.totalorder %s21, 1
      %p60 = por %p58, %p59
      %p61 = scmp.ne.s32.totalorder %s52, %s53
      %p62 = scmp.eq.s32.totalorder %s21, 0
      %p63 = por %p61, %p62
      %p64 = scmp.ne.s32.totalorder %s52, %s53
      %p65 = scmp.eq.s32.totalorder %s22, 1
      %p66 = por %p64, %p65
      %p68 = scmp.ne.s32.totalorder %s53, %s67
      %p69 = scmp.eq.s32.totalorder %s22, 0
      %p70 = por %p68, %p69
      %s72 = sadd.s32 %s71, 1
      %p75 = scmp.eq.s32.totalorder %s16, 1
      %p76 = scmp.ne.s32.totalorder %s71, %s73
      %p77 = scmp.eq.s32.totalorder %s16, 0
      %p78 = por %p76, %p77
      %p79 = scmp.ne.s32.totalorder %s71, %s73
      %p80 = scmp.eq.s32.totalorder %s21, 1
      %p81 = por %p79, %p80
      %p82 = scmp.ne.s32.totalorder %s73, %s74
      %p83 = scmp.eq.s32.totalorder %s21, 0
      %p84 = por %p82, %p83
      %p85 = scmp.ne.s32.totalorder %s73, %s74
      %p86 = scmp.eq.s32.totalorder %s22, 1
      %p87 = por %p85, %p86
      %p89 = scmp.ne.s32.totalorder %s74, %s88
      %p90 = scmp.eq.s32.totalorder %s22, 0
      %p91 = por %p89, %p90
      %s92 = ssub.s32 %s16, %s23
      %p93 = scmp.eq.s32.totalorder %s92, 0
      %s95 = sadd.s32 %s94, 1
      %s96 = scalar_select %p93, %s94, %s95
      %p99 = pneg %p93
      %p100 = scmp.eq.s32.totalorder %s16, 1
      %p101 = por %p99, %p100
      %p102 = scmp.ne.s32.totalorder %s94, %s97
      %p103 = scmp.eq.s32.totalorder %s16, 0
      %p104 = por %p102, %p103
      %p105 = scmp.ne.s32.totalorder %s94, %s97
      %p106 = scmp.eq.s32.totalorder %s21, 1
      %p107 = por %p105, %p106
      %p108 = scmp.ne.s32.totalorder %s97, %s98
      %p109 = scmp.eq.s32.totalorder %s21, 0
      %p110 = por %p108, %p109
      %p111 = scmp.ne.s32.totalorder %s97, %s98
      %p112 = scmp.eq.s32.totalorder %s22, 1
      %p113 = por %p111, %p112
      %p115 = scmp.ne.s32.totalorder %s98, %s114
      %p116 = scmp.eq.s32.totalorder %s22, 0
      %p117 = por %p115, %p116
      %p118 = scmp.le.s32.totalorder 1, %s16
      %p119 = scmp.lt.s32.totalorder %s16, 3
      %p120 = pnand %p118, %p119
      %p121 = pneg %p120
      // Predicated region
      $region9: #{tpu_custom_call.1} parent=5 // pred_check
        _
      $region10: #{tpu_custom_call.1} parent=5 // pred_check_branch
        %123 = sbr.rel (%p120) target = $region12
      $region11: #{tpu_custom_call.1} parent=5 // pred_region
        %s124 = ssub.s32 %s16, 1
        // Predicated region
        $region13: #{tpu_custom_call.1} parent=11 // pred_check
          %p125 = pneg %p63
        $region14: #{tpu_custom_call.1} parent=11 // pred_check_branch
          %127 = sbr.rel (%p125) target = $region16
        $region15: #{tpu_custom_call.1} parent=11 // pred_region
          %s129 = ssub.s32 36864, 36864
          %130 = vsyncadd [#allocation7], %s129
          %s131 = sshll.u32 [#allocation6], 4
          %s132 = int_to_ptr.vmem [resolvable:$true] %s131
          %137 = dma.hbm_to_vmem [thread:$0]  %s1, 36864, %s132, [#allocation7], 128, 128, 8
        $region16: #{tpu_custom_call.1} parent=11 // pred_fallthru
          _
        // Predicated region
        $region17: #{tpu_custom_call.1} parent=11 // pred_check
          %p138 = pneg %p84
        $region18: #{tpu_custom_call.1} parent=11 // pred_check_branch
          %140 = sbr.rel (%p138) target = $region20
        $region19: #{tpu_custom_call.1} parent=11 // pred_region
          %s142 = ssub.s32 4096, 4096
          %143 = vsyncadd [#allocation7], %s142
          %s144 = sshll.u32 [#allocation8], 4
          %s145 = int_to_ptr.vmem [resolvable:$true] %s144
          %150 = dma.hbm_to_vmem [thread:$0]  %s2, 4096, %s145, [#allocation7], 128, 128, 8
        $region20: #{tpu_custom_call.1} parent=11 // pred_fallthru
          _
      $region12: #{tpu_custom_call.1} parent=5 // pred_fallthru
        _
      %p151 = scmp.lt.s32.totalorder %s16, 2
      // Predicated region
      $region21: #{tpu_custom_call.1} parent=5 // pred_check
        %p152 = pneg %p151
      $region22: #{tpu_custom_call.1} parent=5 // pred_check_branch
        %154 = sbr.rel (%p152) target = $region24
      $region23: #{tpu_custom_call.1} parent=5 // pred_region
        // Predicated region
        $region25: #{tpu_custom_call.1} parent=23 // pred_check
          %p155 = pneg %p36
        $region26: #{tpu_custom_call.1} parent=23 // pred_check_branch
          %157 = sbr.rel (%p155) target = $region28
        $region27: #{tpu_custom_call.1} parent=23 // pred_region
          %s158 = sand.u32 %s26, 1
          %s159 = scalar_lea.sflag [#allocation4], %s158
          %s160 = sand.u32 %s26, 1
          %s161 = smul.addr %s160, 256
          %s162 = scalar_lea.vmem [#allocation3], %s161
          %s164 = ssub.s32 4096, 4096
          %165 = vsyncadd %s159, %s164
          %s166 = smul.addr %s16, 32
          %s167 = smul.addr %s166, 128
          %s168 = scalar_lea.hbm %s0, %s167
          %s169 = sshll.u32 %s162, 4
          %s170 = int_to_ptr.vmem [resolvable:$true] %s169
          %175 = dma.hbm_to_vmem [thread:$0]  %s168, 4096, %s170, %s159, 128, 128, 8
        $region28: #{tpu_custom_call.1} parent=23 // pred_fallthru
          _
      $region24: #{tpu_custom_call.1} parent=5 // pred_fallthru
        _
      %p176 = scmp.le.s32.totalorder 1, %s16
      %p177 = scmp.lt.s32.totalorder %s16, 3
      %p178 = pnand %p176, %p177
      %p179 = pneg %p178
      // Predicated region
      $region29: #{tpu_custom_call.1} parent=5 // pred_check
        _
      $region30: #{tpu_custom_call.1} parent=5 // pred_check_branch
        %181 = sbr.rel (%p178) target = $region32
      $region31: #{tpu_custom_call.1} parent=5 // pred_region
        %s182 = ssub.s32 %s16, 1
        %s183 = sand.u32 %s29, 1
        %s184 = scalar_lea.sflag [#allocation4], %s183
        %s185 = sand.u32 %s29, 1
        %s186 = smul.addr %s185, 256
        %s187 = scalar_lea.vmem [#allocation3], %s186
        // Predicated region
        $region33: #{tpu_custom_call.1} parent=31 // pred_check
          %p188 = pneg %p42
        $region34: #{tpu_custom_call.1} parent=31 // pred_check_branch
          %190 = sbr.rel (%p188) target = $region36
        $region35: #{tpu_custom_call.1} parent=31 // pred_region
          %191 = dma.done %s184, 4096
        $region36: #{tpu_custom_call.1} parent=31 // pred_fallthru
          _
        // Predicated region
        $region37: #{tpu_custom_call.1} parent=31 // pred_check
          %p192 = pneg %p63
        $region38: #{tpu_custom_call.1} parent=31 // pred_check_branch
          %194 = sbr.rel (%p192) target = $region40
        $region39: #{tpu_custom_call.1} parent=31 // pred_region
          %195 = dma.done [#allocation7], 36864
        $region40: #{tpu_custom_call.1} parent=31 // pred_fallthru
          _
        // Predicated region
        $region41: #{tpu_custom_call.1} parent=31 // pred_check
          %p196 = pneg %p84
        $region42: #{tpu_custom_call.1} parent=31 // pred_check_branch
          %198 = sbr.rel (%p196) target = $region44
        $region43: #{tpu_custom_call.1} parent=31 // pred_region
          %199 = dma.done [#allocation7], 4096
        $region44: #{tpu_custom_call.1} parent=31 // pred_fallthru
          _
        %s200 = sand.u32 %s29, 1
        %s201 = scalar_lea.sflag [#allocation4], %s200
        %s202 = sand.u32 %s29, 1
        %s203 = smul.addr %s202, 256
        %s204 = scalar_lea.vmem [#allocation3], %s203
        %p205 = pneg %p42
        %p206 = pneg %p39
        %p207 = pneg %p63
        %p208 = pneg %p60
        %p209 = pneg %p84
        %p210 = pneg %p81
        %p211 = pneg %p110
        %p212 = pneg %p107
        %s213 = sand.u32 %s97, 1
        %s214 = scalar_lea.sflag [#allocation5], %s213
        %s215 = sand.u32 %s97, 1
        %s216 = smul.addr %s215, 256
        %s217 = scalar_lea.vmem [#allocation9], %s216
        %218 = vst [vmem:[#allocation2] sm:$0xff] 0.0
        %219 = vst [vmem:[#allocation2 + $0x8] sm:$0xff] 0.0
        %220 = vst [vmem:[#allocation2 + $0x10] sm:$0x3] 0.0
        %221 = vst [vmem:[#allocation2 + $0x18] sm:$0xff] 0.0
        %222 = vst [vmem:[#allocation2 + $0x20] sm:$0xff] 0.0
        %223 = vst [vmem:[#allocation2 + $0x28] sm:$0x3] 0.0
        %224 = vst [vmem:[#allocation2 + $0x30] sm:$0xff] 0.0
        %225 = vst [vmem:[#allocation2 + $0x38] sm:$0xff] 0.0
        %226 = vst [vmem:[#allocation2 + $0x40] sm:$0x3] 0.0
        %227 = vst [vmem:[#allocation2 + $0x48] sm:$0xff] 0.0
        %228 = vst [vmem:[#allocation2 + $0x50] sm:$0xff] 0.0
        %229 = vst [vmem:[#allocation2 + $0x58] sm:$0x3] 0.0
        %230 = vst [vmem:[#allocation2 + $0x60] sm:$0xff] 0.0
        %231 = vst [vmem:[#allocation2 + $0x68] sm:$0xff] 0.0
        %232 = vst [vmem:[#allocation2 + $0x70] sm:$0x3] 0.0
        %233 = vst [vmem:[#allocation2 + $0x78] sm:$0xff] 0.0
        %234 = vst [vmem:[#allocation2 + $0x80] sm:$0xff] 0.0
        %235 = vst [vmem:[#allocation2 + $0x88] sm:$0x3] 0.0
        %236 = vst [vmem:[#allocation2 + $0x90] sm:$0xff] 0.0
        %237 = vst [vmem:[#allocation2 + $0x98] sm:$0xff] 0.0
        %238 = vst [vmem:[#allocation2 + $0xa0] sm:$0x3] 0.0
        %239 = vst [vmem:[#allocation2 + $0xa8] sm:$0xff] 0.0
        %240 = vst [vmem:[#allocation2 + $0xb0] sm:$0xff] 0.0
        %241 = vst [vmem:[#allocation2 + $0xb8] sm:$0x3] 0.0
        %242 = vst [vmem:[#allocation2 + $0xc0] sm:$0xff] 0.0
        %243 = vst [vmem:[#allocation2 + $0xc8] sm:$0xff] 0.0
        %244 = vst [vmem:[#allocation2 + $0xd0] sm:$0x3] 0.0
        %245 = vst [vmem:[#allocation2 + $0xd8] sm:$0xff] 0.0
        %246 = vst [vmem:[#allocation2 + $0xe0] sm:$0xff] 0.0
        %247 = vst [vmem:[#allocation2 + $0xe8] sm:$0x3] 0.0
        %248 = vst [vmem:[#allocation2 + $0xf0] sm:$0xff] 0.0
        %249 = vst [vmem:[#allocation2 + $0xf8] sm:$0xff] 0.0
        %250 = vst [vmem:[#allocation2 + $0x100] sm:$0x3] 0.0
        %251 = vst [vmem:[#allocation2 + $0x108] sm:$0xff] 0.0
        %252 = vst [vmem:[#allocation2 + $0x110] sm:$0xff] 0.0
        %253 = vst [vmem:[#allocation2 + $0x118] sm:$0x3] 0.0
        %254 = vst [vmem:[#allocation2 + $0x120] sm:$0xff] 0.0
        %255 = vst [vmem:[#allocation2 + $0x128] sm:$0xff] 0.0
        %256 = vst [vmem:[#allocation2 + $0x130] sm:$0x3] 0.0
        %257 = vst [vmem:[#allocation2 + $0x138] sm:$0xff] 0.0
        %258 = vst [vmem:[#allocation2 + $0x140] sm:$0xff] 0.0
        %259 = vst [vmem:[#allocation2 + $0x148] sm:$0x3] 0.0
        %260 = vst [vmem:[#allocation2 + $0x150] sm:$0xff] 0.0
        %261 = vst [vmem:[#allocation2 + $0x158] sm:$0xff] 0.0
        %262 = vst [vmem:[#allocation2 + $0x160] sm:$0x3] 0.0
        %263 = vst [vmem:[#allocation2 + $0x168] sm:$0xff] 0.0
        %264 = vst [vmem:[#allocation2 + $0x170] sm:$0xff] 0.0
        %265 = vst [vmem:[#allocation2 + $0x178] sm:$0x3] 0.0
        %266 = vst [vmem:[#allocation2 + $0x180] sm:$0xff] 0.0
        %267 = vst [vmem:[#allocation2 + $0x188] sm:$0xff] 0.0
        %268 = vst [vmem:[#allocation2 + $0x190] sm:$0x3] 0.0
        %269 = vst [vmem:[#allocation2 + $0x198] sm:$0xff] 0.0
        %270 = vst [vmem:[#allocation2 + $0x1a0] sm:$0xff] 0.0
        %271 = vst [vmem:[#allocation2 + $0x1a8] sm:$0x3] 0.0
        %v272 = vld [vmem:[%s187] sm:$0xff]
        %v273 = vld [vmem:[%s187 + $0x8] sm:$0xff]
        %v274 = vld [vmem:[%s187 + $0x10] sm:$0xff]
        %v275 = vld [vmem:[%s187 + $0x18] sm:$0xff]
        %v276 = vld [vmem:[%s187 + $0x20] sm:$0xff]
        %v277 = vld [vmem:[%s187 + $0x28] sm:$0xff]
        %v278 = vld [vmem:[%s187 + $0x30] sm:$0xff]
        %v279 = vld [vmem:[%s187 + $0x38] sm:$0xff]
        %v280 = vld [vmem:[%s187 + $0x40] sm:$0xff]
        %v281 = vld [vmem:[%s187 + $0x48] sm:$0xff]
        %v282 = vld [vmem:[%s187 + $0x50] sm:$0xff]
        %v283 = vld [vmem:[%s187 + $0x58] sm:$0xff]
        %v284 = vld [vmem:[%s187 + $0x60] sm:$0xff]
        %v285 = vld [vmem:[%s187 + $0x68] sm:$0xff]
        %v286 = vld [vmem:[%s187 + $0x70] sm:$0xff]
        %v287 = vld [vmem:[%s187 + $0x78] sm:$0xff]
        %v288 = vld [vmem:[%s187 + $0x80] sm:$0xff]
        %v289 = vld [vmem:[%s187 + $0x88] sm:$0xff]
        %v290 = vld [vmem:[%s187 + $0x90] sm:$0xff]
        %v291 = vld [vmem:[%s187 + $0x98] sm:$0xff]
        %v292 = vld [vmem:[%s187 + $0xa0] sm:$0xff]
        %v293 = vld [vmem:[%s187 + $0xa8] sm:$0xff]
        %v294 = vld [vmem:[%s187 + $0xb0] sm:$0xff]
        %v295 = vld [vmem:[%s187 + $0xb8] sm:$0xff]
        %v296 = vld [vmem:[%s187 + $0xc0] sm:$0xff]
        %v297 = vld [vmem:[%s187 + $0xc8] sm:$0xff]
        %v298 = vld [vmem:[%s187 + $0xd0] sm:$0xff]
        %v299 = vld [vmem:[%s187 + $0xd8] sm:$0xff]
        %v300 = vld [vmem:[%s187 + $0xe0] sm:$0xff]
        %v301 = vld [vmem:[%s187 + $0xe8] sm:$0xff]
        %v302 = vld [vmem:[%s187 + $0xf0] sm:$0xff]
        %v303 = vld [vmem:[%s187 + $0xf8] sm:$0xff]
        %v304 = vmax.f32 %v272, 0.0
        %v305 = vmax.f32 %v273, 0.0
        %v306 = vmax.f32 %v274, 0.0
        %v307 = vmax.f32 %v275, 0.0
        %v308 = vmax.f32 %v276, 0.0
        %v309 = vmax.f32 %v277, 0.0
        %v310 = vmax.f32 %v278, 0.0
        %v311 = vmax.f32 %v279, 0.0
        %v312 = vmax.f32 %v280, 0.0
        %v313 = vmax.f32 %v281, 0.0
        %v314 = vmax.f32 %v282, 0.0
        %v315 = vmax.f32 %v283, 0.0
        %v316 = vmax.f32 %v284, 0.0
        %v317 = vmax.f32 %v285, 0.0
        %v318 = vmax.f32 %v286, 0.0
        %v319 = vmax.f32 %v287, 0.0
        %v320 = vmax.f32 %v288, 0.0
        %v321 = vmax.f32 %v289, 0.0
        %v322 = vmax.f32 %v290, 0.0
        %v323 = vmax.f32 %v291, 0.0
        %v324 = vmax.f32 %v292, 0.0
        %v325 = vmax.f32 %v293, 0.0
        %v326 = vmax.f32 %v294, 0.0
        %v327 = vmax.f32 %v295, 0.0
        %v328 = vmax.f32 %v296, 0.0
        %v329 = vmax.f32 %v297, 0.0
        %v330 = vmax.f32 %v298, 0.0
        %v331 = vmax.f32 %v299, 0.0
        %v332 = vmax.f32 %v300, 0.0
        %v333 = vmax.f32 %v301, 0.0
        %v334 = vmax.f32 %v302, 0.0
        %v335 = vmax.f32 %v303, 0.0
        %s336 = scalar_lea.vmem [#allocation2], 24
        %337 = vst [vmem:[%s336 + $0x1] sm:$0xff] %v304
        %338 = vst [vmem:[%s336 + $0x9] sm:$0xff] %v305
        %339 = vst [vmem:[%s336 + $0x19] sm:$0xff] %v306
        %340 = vst [vmem:[%s336 + $0x21] sm:$0xff] %v307
        %341 = vst [vmem:[%s336 + $0x31] sm:$0xff] %v308
        %342 = vst [vmem:[%s336 + $0x39] sm:$0xff] %v309
        %343 = vst [vmem:[%s336 + $0x49] sm:$0xff] %v310
        %344 = vst [vmem:[%s336 + $0x51] sm:$0xff] %v311
        %345 = vst [vmem:[%s336 + $0x61] sm:$0xff] %v312
        %346 = vst [vmem:[%s336 + $0x69] sm:$0xff] %v313
        %347 = vst [vmem:[%s336 + $0x79] sm:$0xff] %v314
        %348 = vst [vmem:[%s336 + $0x81] sm:$0xff] %v315
        %349 = vst [vmem:[%s336 + $0x91] sm:$0xff] %v316
        %350 = vst [vmem:[%s336 + $0x99] sm:$0xff] %v317
        %351 = vst [vmem:[%s336 + $0xa9] sm:$0xff] %v318
        %352 = vst [vmem:[%s336 + $0xb1] sm:$0xff] %v319
        %353 = vst [vmem:[%s336 + $0xc1] sm:$0xff] %v320
        %354 = vst [vmem:[%s336 + $0xc9] sm:$0xff] %v321
        %355 = vst [vmem:[%s336 + $0xd9] sm:$0xff] %v322
        %356 = vst [vmem:[%s336 + $0xe1] sm:$0xff] %v323
        %357 = vst [vmem:[%s336 + $0xf1] sm:$0xff] %v324
        %358 = vst [vmem:[%s336 + $0xf9] sm:$0xff] %v325
        %359 = vst [vmem:[%s336 + $0x109] sm:$0xff] %v326
        %360 = vst [vmem:[%s336 + $0x111] sm:$0xff] %v327
        %361 = vst [vmem:[%s336 + $0x121] sm:$0xff] %v328
        %362 = vst [vmem:[%s336 + $0x129] sm:$0xff] %v329
        %363 = vst [vmem:[%s336 + $0x139] sm:$0xff] %v330
        %364 = vst [vmem:[%s336 + $0x141] sm:$0xff] %v331
        %365 = vst [vmem:[%s336 + $0x151] sm:$0xff] %v332
        %366 = vst [vmem:[%s336 + $0x159] sm:$0xff] %v333
        %367 = vst [vmem:[%s336 + $0x169] sm:$0xff] %v334
        %368 = vst [vmem:[%s336 + $0x171] sm:$0xff] %v335
        %v369 = vld [vmem:[#allocation2] sm:$0xff]
        %v370 = vld [vmem:[#allocation2 + $0x8] sm:$0xff]
        %v371 = vld [vmem:[#allocation2 + $0x10] sm:$0x3]
        %v372 = vld [vmem:[#allocation2 + $0x18] sm:$0xff]
        %v373 = vld [vmem:[#allocation2 + $0x20] sm:$0xff]
        %v374 = vld [vmem:[#allocation2 + $0x28] sm:$0x3]
        %v375 = vld [vmem:[#allocation2 + $0x30] sm:$0xff]
        %v376 = vld [vmem:[#allocation2 + $0x38] sm:$0xff]
        %v377 = vld [vmem:[#allocation2 + $0x40] sm:$0x3]
        %v378 = vld [vmem:[#allocation2 + $0x48] sm:$0xff]
        %v379 = vld [vmem:[#allocation2 + $0x50] sm:$0xff]
        %v380 = vld [vmem:[#allocation2 + $0x58] sm:$0x3]
        %v381 = vld [vmem:[#allocation2 + $0x60] sm:$0xff]
        %v382 = vld [vmem:[#allocation2 + $0x68] sm:$0xff]
        %v383 = vld [vmem:[#allocation2 + $0x70] sm:$0x3]
        %v384 = vld [vmem:[#allocation2 + $0x78] sm:$0xff]
        %v385 = vld [vmem:[#allocation2 + $0x80] sm:$0xff]
        %v386 = vld [vmem:[#allocation2 + $0x88] sm:$0x3]
        %v387 = vld [vmem:[#allocation2 + $0x90] sm:$0xff]
        %v388 = vld [vmem:[#allocation2 + $0x98] sm:$0xff]
        %v389 = vld [vmem:[#allocation2 + $0xa0] sm:$0x3]
        %v390 = vld [vmem:[#allocation2 + $0xa8] sm:$0xff]
        %v391 = vld [vmem:[#allocation2 + $0xb0] sm:$0xff]
        %v392 = vld [vmem:[#allocation2 + $0xb8] sm:$0x3]
        %v393 = vld [vmem:[#allocation2 + $0xc0] sm:$0xff]
        %v394 = vld [vmem:[#allocation2 + $0xc8] sm:$0xff]
        %v395 = vld [vmem:[#allocation2 + $0xd0] sm:$0x3]
        %v396 = vld [vmem:[#allocation2 + $0xd8] sm:$0xff]
        %v397 = vld [vmem:[#allocation2 + $0xe0] sm:$0xff]
        %v398 = vld [vmem:[#allocation2 + $0xe8] sm:$0x3]
        %v399 = vld [vmem:[#allocation2 + $0xf0] sm:$0xff]
        %v400 = vld [vmem:[#allocation2 + $0xf8] sm:$0xff]
        %v401 = vld [vmem:[#allocation2 + $0x100] sm:$0x3]
        %v402 = vld [vmem:[#allocation2 + $0x108] sm:$0xff]
        %v403 = vld [vmem:[#allocation2 + $0x110] sm:$0xff]
        %v404 = vld [vmem:[#allocation2 + $0x118] sm:$0x3]
        %v405 = vld [vmem:[#allocation2 + $0x120] sm:$0xff]
        %v406 = vld [vmem:[#allocation2 + $0x128] sm:$0xff]
        %v407 = vld [vmem:[#allocation2 + $0x130] sm:$0x3]
        %v408 = vld [vmem:[#allocation2 + $0x138] sm:$0xff]
        %v409 = vld [vmem:[#allocation2 + $0x140] sm:$0xff]
        %v410 = vld [vmem:[#allocation2 + $0x148] sm:$0x3]
        %v411 = vld [vmem:[#allocation2 + $0x150] sm:$0xff]
        %v412 = vld [vmem:[#allocation2 + $0x158] sm:$0xff]
        %v413 = vld [vmem:[#allocation2 + $0x160] sm:$0x3]
        %v414 = vld [vmem:[#allocation2 + $0x168] sm:$0xff]
        %v415 = vld [vmem:[#allocation2 + $0x170] sm:$0xff]
        %v416 = vld [vmem:[#allocation2 + $0x178] sm:$0x3]
        %v417 = vld [vmem:[#allocation2 + $0x180] sm:$0xff]
        %v418 = vld [vmem:[#allocation2 + $0x188] sm:$0xff]
        %v419 = vld [vmem:[#allocation2 + $0x190] sm:$0x3]
        %v420 = vld [vmem:[#allocation2 + $0x198] sm:$0xff]
        %v421 = vld [vmem:[#allocation2 + $0x1a0] sm:$0xff]
        %v422 = vld [vmem:[#allocation2 + $0x1a8] sm:$0x3]
        %vm471 = vcmask 1046528
        %v472 = vrot.slane %v369, 1
        %v473 = vrot.slane %v370, 1
        %v474 = vsel %vm471, %v472, %v473
        %v475 = vrot.slane %v371, 1
        %v476 = vsel %vm471, %v473, %v475
        %v477 = vrot.slane %v372, 1
        %v478 = vrot.slane %v373, 1
        %v479 = vsel %vm471, %v477, %v478
        %v480 = vrot.slane %v374, 1
        %v481 = vsel %vm471, %v478, %v480
        %v482 = vrot.slane %v375, 1
        %v483 = vrot.slane %v376, 1
        %v484 = vsel %vm471, %v482, %v483
        %v485 = vrot.slane %v377, 1
        %v486 = vsel %vm471, %v483, %v485
        %v487 = vrot.slane %v378, 1
        %v488 = vrot.slane %v379, 1
        %v489 = vsel %vm471, %v487, %v488
        %v490 = vrot.slane %v380, 1
        %v491 = vsel %vm471, %v488, %v490
        %v492 = vrot.slane %v381, 1
        %v493 = vrot.slane %v382, 1
        %v494 = vsel %vm471, %v492, %v493
        %v495 = vrot.slane %v383, 1
        %v496 = vsel %vm471, %v493, %v495
        %v497 = vrot.slane %v384, 1
        %v498 = vrot.slane %v385, 1
        %v499 = vsel %vm471, %v497, %v498
        %v500 = vrot.slane %v386, 1
        %v501 = vsel %vm471, %v498, %v500
        %v502 = vrot.slane %v387, 1
        %v503 = vrot.slane %v388, 1
        %v504 = vsel %vm471, %v502, %v503
        %v505 = vrot.slane %v389, 1
        %v506 = vsel %vm471, %v503, %v505
        %v507 = vrot.slane %v390, 1
        %v508 = vrot.slane %v391, 1
        %v509 = vsel %vm471, %v507, %v508
        %v510 = vrot.slane %v392, 1
        %v511 = vsel %vm471, %v508, %v510
        %v512 = vrot.slane %v393, 1
        %v513 = vrot.slane %v394, 1
        %v514 = vsel %vm471, %v512, %v513
        %v515 = vrot.slane %v395, 1
        %v516 = vsel %vm471, %v513, %v515
        %v517 = vrot.slane %v396, 1
        %v518 = vrot.slane %v397, 1
        %v519 = vsel %vm471, %v517, %v518
        %v520 = vrot.slane %v398, 1
        %v521 = vsel %vm471, %v518, %v520
        %v522 = vrot.slane %v399, 1
        %v523 = vrot.slane %v400, 1
        %v524 = vsel %vm471, %v522, %v523
        %v525 = vrot.slane %v401, 1
        %v526 = vsel %vm471, %v523, %v525
        %v527 = vrot.slane %v402, 1
        %v528 = vrot.slane %v403, 1
        %v529 = vsel %vm471, %v527, %v528
        %v530 = vrot.slane %v404, 1
        %v531 = vsel %vm471, %v528, %v530
        %v532 = vrot.slane %v405, 1
        %v533 = vrot.slane %v406, 1
        %v534 = vsel %vm471, %v532, %v533
        %v535 = vrot.slane %v407, 1
        %v536 = vsel %vm471, %v533, %v535
        %v537 = vrot.slane %v408, 1
        %v538 = vrot.slane %v409, 1
        %v539 = vsel %vm471, %v537, %v538
        %v540 = vrot.slane %v410, 1
        %v541 = vsel %vm471, %v538, %v540
        %v542 = vrot.slane %v411, 1
        %v543 = vrot.slane %v412, 1
        %v544 = vsel %vm471, %v542, %v543
        %v545 = vrot.slane %v413, 1
        %v546 = vsel %vm471, %v543, %v545
        %v547 = vrot.slane %v414, 1
        %v548 = vrot.slane %v415, 1
        %v549 = vsel %vm471, %v547, %v548
        %v550 = vrot.slane %v416, 1
        %v551 = vsel %vm471, %v548, %v550
        %vm584 = vcmask 1045504
        %v585 = vrot.slane %v369, 2
        %v586 = vrot.slane %v370, 2
        %v587 = vsel %vm584, %v585, %v586
        %v588 = vrot.slane %v371, 2
        %v589 = vsel %vm584, %v586, %v588
        %v590 = vrot.slane %v372, 2
        %v591 = vrot.slane %v373, 2
        %v592 = vsel %vm584, %v590, %v591
        %v593 = vrot.slane %v374, 2
        %v594 = vsel %vm584, %v591, %v593
        %v595 = vrot.slane %v375, 2
        %v596 = vrot.slane %v376, 2
        %v597 = vsel %vm584, %v595, %v596
        %v598 = vrot.slane %v377, 2
        %v599 = vsel %vm584, %v596, %v598
        %v600 = vrot.slane %v378, 2
        %v601 = vrot.slane %v379, 2
        %v602 = vsel %vm584, %v600, %v601
        %v603 = vrot.slane %v380, 2
        %v604 = vsel %vm584, %v601, %v603
        %v605 = vrot.slane %v381, 2
        %v606 = vrot.slane %v382, 2
        %v607 = vsel %vm584, %v605, %v606
        %v608 = vrot.slane %v383, 2
        %v609 = vsel %vm584, %v606, %v608
        %v610 = vrot.slane %v384, 2
        %v611 = vrot.slane %v385, 2
        %v612 = vsel %vm584, %v610, %v611
        %v613 = vrot.slane %v386, 2
        %v614 = vsel %vm584, %v611, %v613
        %v615 = vrot.slane %v387, 2
        %v616 = vrot.slane %v388, 2
        %v617 = vsel %vm584, %v615, %v616
        %v618 = vrot.slane %v389, 2
        %v619 = vsel %vm584, %v616, %v618
        %v620 = vrot.slane %v390, 2
        %v621 = vrot.slane %v391, 2
        %v622 = vsel %vm584, %v620, %v621
        %v623 = vrot.slane %v392, 2
        %v624 = vsel %vm584, %v621, %v623
        %v625 = vrot.slane %v393, 2
        %v626 = vrot.slane %v394, 2
        %v627 = vsel %vm584, %v625, %v626
        %v628 = vrot.slane %v395, 2
        %v629 = vsel %vm584, %v626, %v628
        %v630 = vrot.slane %v396, 2
        %v631 = vrot.slane %v397, 2
        %v632 = vsel %vm584, %v630, %v631
        %v633 = vrot.slane %v398, 2
        %v634 = vsel %vm584, %v631, %v633
        %v635 = vrot.slane %v399, 2
        %v636 = vrot.slane %v400, 2
        %v637 = vsel %vm584, %v635, %v636
        %v638 = vrot.slane %v401, 2
        %v639 = vsel %vm584, %v636, %v638
        %v640 = vrot.slane %v402, 2
        %v641 = vrot.slane %v403, 2
        %v642 = vsel %vm584, %v640, %v641
        %v643 = vrot.slane %v404, 2
        %v644 = vsel %vm584, %v641, %v643
        %v645 = vrot.slane %v405, 2
        %v646 = vrot.slane %v406, 2
        %v647 = vsel %vm584, %v645, %v646
        %v648 = vrot.slane %v407, 2
        %v649 = vsel %vm584, %v646, %v648
        %v650 = vrot.slane %v408, 2
        %v651 = vrot.slane %v409, 2
        %v652 = vsel %vm584, %v650, %v651
        %v653 = vrot.slane %v410, 2
        %v654 = vsel %vm584, %v651, %v653
        %v655 = vrot.slane %v411, 2
        %v656 = vrot.slane %v412, 2
        %v657 = vsel %vm584, %v655, %v656
        %v658 = vrot.slane %v413, 2
        %v659 = vsel %vm584, %v656, %v658
        %v660 = vrot.slane %v414, 2
        %v661 = vrot.slane %v415, 2
        %v662 = vsel %vm584, %v660, %v661
        %v663 = vrot.slane %v416, 2
        %v664 = vsel %vm584, %v661, %v663
        %v700 = vrot.slane %v417, 1
        %v701 = vrot.slane %v418, 1
        %v702 = vsel %vm471, %v700, %v701
        %v703 = vrot.slane %v419, 1
        %v704 = vsel %vm471, %v701, %v703
        %v707 = vrot.slane %v417, 2
        %v708 = vrot.slane %v418, 2
        %v709 = vsel %vm584, %v707, %v708
        %v710 = vrot.slane %v419, 2
        %v711 = vsel %vm584, %v708, %v710
        %v717 = vrot.slane %v420, 1
        %v718 = vrot.slane %v421, 1
        %v719 = vsel %vm471, %v717, %v718
        %v720 = vrot.slane %v422, 1
        %v721 = vsel %vm471, %v718, %v720
        %v724 = vrot.slane %v420, 2
        %v725 = vrot.slane %v421, 2
        %v726 = vsel %vm584, %v724, %v725
        %v727 = vrot.slane %v422, 2
        %v728 = vsel %vm584, %v725, %v727
        %v731 = vld [vmem:[#allocation6] sm:$0xff]
        %v732 = vld [vmem:[#allocation6 + $0x8] sm:$0xff]
        %v733 = vld [vmem:[#allocation6 + $0x10] sm:$0xff]
        %v734 = vld [vmem:[#allocation6 + $0x18] sm:$0xff]
        %v735 = vld [vmem:[#allocation6 + $0x20] sm:$0xff]
        %v736 = vld [vmem:[#allocation6 + $0x28] sm:$0xff]
        %v737 = vld [vmem:[#allocation6 + $0x30] sm:$0xff]
        %v738 = vld [vmem:[#allocation6 + $0x38] sm:$0xff]
        %v739 = vld [vmem:[#allocation6 + $0x40] sm:$0xff]
        %v740 = vld [vmem:[#allocation6 + $0x48] sm:$0xff]
        %v741 = vld [vmem:[#allocation6 + $0x50] sm:$0xff]
        %v742 = vld [vmem:[#allocation6 + $0x58] sm:$0xff]
        %v743 = vld [vmem:[#allocation6 + $0x60] sm:$0xff]
        %v744 = vld [vmem:[#allocation6 + $0x68] sm:$0xff]
        %v745 = vld [vmem:[#allocation6 + $0x70] sm:$0xff]
        %v746 = vld [vmem:[#allocation6 + $0x78] sm:$0xff]
        %v747 = vld [vmem:[#allocation6 + $0x80] sm:$0xff]
        %v748 = vld [vmem:[#allocation6 + $0x88] sm:$0xff]
        %v749 = vld [vmem:[#allocation6 + $0x90] sm:$0xff]
        %v750 = vld [vmem:[#allocation6 + $0x98] sm:$0xff]
        %v751 = vld [vmem:[#allocation6 + $0xa0] sm:$0xff]
        %v752 = vld [vmem:[#allocation6 + $0xa8] sm:$0xff]
        %v753 = vld [vmem:[#allocation6 + $0xb0] sm:$0xff]
        %v754 = vld [vmem:[#allocation6 + $0xb8] sm:$0xff]
        %v755 = vld [vmem:[#allocation6 + $0xc0] sm:$0xff]
        %v756 = vld [vmem:[#allocation6 + $0xc8] sm:$0xff]
        %v757 = vld [vmem:[#allocation6 + $0xd0] sm:$0xff]
        %v758 = vld [vmem:[#allocation6 + $0xd8] sm:$0xff]
        %v759 = vld [vmem:[#allocation6 + $0xe0] sm:$0xff]
        %v760 = vld [vmem:[#allocation6 + $0xe8] sm:$0xff]
        %v761 = vld [vmem:[#allocation6 + $0xf0] sm:$0xff]
        %v762 = vld [vmem:[#allocation6 + $0xf8] sm:$0xff]
        %v763 = vld [vmem:[#allocation6 + $0x100] sm:$0xff]
        %v764 = vld [vmem:[#allocation6 + $0x108] sm:$0xff]
        %v765 = vld [vmem:[#allocation6 + $0x110] sm:$0xff]
        %v766 = vld [vmem:[#allocation6 + $0x118] sm:$0xff]
        %v767 = vld [vmem:[#allocation6 + $0x120] sm:$0xff]
        %v768 = vld [vmem:[#allocation6 + $0x128] sm:$0xff]
        %v769 = vld [vmem:[#allocation6 + $0x130] sm:$0xff]
        %v770 = vld [vmem:[#allocation6 + $0x138] sm:$0xff]
        %v771 = vld [vmem:[#allocation6 + $0x140] sm:$0xff]
        %v772 = vld [vmem:[#allocation6 + $0x148] sm:$0xff]
        %v773 = vld [vmem:[#allocation6 + $0x150] sm:$0xff]
        %v774 = vld [vmem:[#allocation6 + $0x158] sm:$0xff]
        %v775 = vld [vmem:[#allocation6 + $0x160] sm:$0xff]
        %v776 = vld [vmem:[#allocation6 + $0x168] sm:$0xff]
        %v777 = vld [vmem:[#allocation6 + $0x170] sm:$0xff]
        %v778 = vld [vmem:[#allocation6 + $0x178] sm:$0xff]
        %v779 = vld [vmem:[#allocation6 + $0x180] sm:$0xff]
        %v780 = vld [vmem:[#allocation6 + $0x188] sm:$0xff]
        %v781 = vld [vmem:[#allocation6 + $0x190] sm:$0xff]
        %v782 = vld [vmem:[#allocation6 + $0x198] sm:$0xff]
        %v783 = vld [vmem:[#allocation6 + $0x1a0] sm:$0xff]
        %v784 = vld [vmem:[#allocation6 + $0x1a8] sm:$0xff]
        %v785 = vld [vmem:[#allocation6 + $0x1b0] sm:$0xff]
        %v786 = vld [vmem:[#allocation6 + $0x1b8] sm:$0xff]
        %v787 = vld [vmem:[#allocation6 + $0x1c0] sm:$0xff]
        %v788 = vld [vmem:[#allocation6 + $0x1c8] sm:$0xff]
        %v789 = vld [vmem:[#allocation6 + $0x1d0] sm:$0xff]
        %v790 = vld [vmem:[#allocation6 + $0x1d8] sm:$0xff]
        %v791 = vld [vmem:[#allocation6 + $0x1e0] sm:$0xff]
        %v792 = vld [vmem:[#allocation6 + $0x1e8] sm:$0xff]
        %v793 = vld [vmem:[#allocation6 + $0x1f0] sm:$0xff]
        %v794 = vld [vmem:[#allocation6 + $0x1f8] sm:$0xff]
        %v795 = vld [vmem:[#allocation6 + $0x200] sm:$0xff]
        %v796 = vld [vmem:[#allocation6 + $0x208] sm:$0xff]
        %v797 = vld [vmem:[#allocation6 + $0x210] sm:$0xff]
        %v798 = vld [vmem:[#allocation6 + $0x218] sm:$0xff]
        %v799 = vld [vmem:[#allocation6 + $0x220] sm:$0xff]
        %v800 = vld [vmem:[#allocation6 + $0x228] sm:$0xff]
        %v801 = vld [vmem:[#allocation6 + $0x230] sm:$0xff]
        %v802 = vld [vmem:[#allocation6 + $0x238] sm:$0xff]
        %v803 = vld [vmem:[#allocation6 + $0x240] sm:$0xff]
        %v804 = vld [vmem:[#allocation6 + $0x248] sm:$0xff]
        %v805 = vld [vmem:[#allocation6 + $0x250] sm:$0xff]
        %v806 = vld [vmem:[#allocation6 + $0x258] sm:$0xff]
        %v807 = vld [vmem:[#allocation6 + $0x260] sm:$0xff]
        %v808 = vld [vmem:[#allocation6 + $0x268] sm:$0xff]
        %v809 = vld [vmem:[#allocation6 + $0x270] sm:$0xff]
        %v810 = vld [vmem:[#allocation6 + $0x278] sm:$0xff]
        %v811 = vld [vmem:[#allocation6 + $0x280] sm:$0xff]
        %v812 = vld [vmem:[#allocation6 + $0x288] sm:$0xff]
        %v813 = vld [vmem:[#allocation6 + $0x290] sm:$0xff]
        %v814 = vld [vmem:[#allocation6 + $0x298] sm:$0xff]
        %v815 = vld [vmem:[#allocation6 + $0x2a0] sm:$0xff]
        %v816 = vld [vmem:[#allocation6 + $0x2a8] sm:$0xff]
        %v817 = vld [vmem:[#allocation6 + $0x2b0] sm:$0xff]
        %v818 = vld [vmem:[#allocation6 + $0x2b8] sm:$0xff]
        %v819 = vld [vmem:[#allocation6 + $0x2c0] sm:$0xff]
        %v820 = vld [vmem:[#allocation6 + $0x2c8] sm:$0xff]
        %v821 = vld [vmem:[#allocation6 + $0x2d0] sm:$0xff]
        %v822 = vld [vmem:[#allocation6 + $0x2d8] sm:$0xff]
        %v823 = vld [vmem:[#allocation6 + $0x2e0] sm:$0xff]
        %v824 = vld [vmem:[#allocation6 + $0x2e8] sm:$0xff]
        %v825 = vld [vmem:[#allocation6 + $0x2f0] sm:$0xff]
        %v826 = vld [vmem:[#allocation6 + $0x2f8] sm:$0xff]
        %v827 = vld [vmem:[#allocation6 + $0x300] sm:$0xff]
        %v828 = vld [vmem:[#allocation6 + $0x308] sm:$0xff]
        %v829 = vld [vmem:[#allocation6 + $0x310] sm:$0xff]
        %v830 = vld [vmem:[#allocation6 + $0x318] sm:$0xff]
        %v831 = vld [vmem:[#allocation6 + $0x320] sm:$0xff]
        %v832 = vld [vmem:[#allocation6 + $0x328] sm:$0xff]
        %v833 = vld [vmem:[#allocation6 + $0x330] sm:$0xff]
        %v834 = vld [vmem:[#allocation6 + $0x338] sm:$0xff]
        %v835 = vld [vmem:[#allocation6 + $0x340] sm:$0xff]
        %v836 = vld [vmem:[#allocation6 + $0x348] sm:$0xff]
        %v837 = vld [vmem:[#allocation6 + $0x350] sm:$0xff]
        %v838 = vld [vmem:[#allocation6 + $0x358] sm:$0xff]
        %v839 = vld [vmem:[#allocation6 + $0x360] sm:$0xff]
        %v840 = vld [vmem:[#allocation6 + $0x368] sm:$0xff]
        %v841 = vld [vmem:[#allocation6 + $0x370] sm:$0xff]
        %v842 = vld [vmem:[#allocation6 + $0x378] sm:$0xff]
        %v843 = vld [vmem:[#allocation6 + $0x380] sm:$0xff]
        %v844 = vld [vmem:[#allocation6 + $0x388] sm:$0xff]
        %v845 = vld [vmem:[#allocation6 + $0x390] sm:$0xff]
        %v846 = vld [vmem:[#allocation6 + $0x398] sm:$0xff]
        %v847 = vld [vmem:[#allocation6 + $0x3a0] sm:$0xff]
        %v848 = vld [vmem:[#allocation6 + $0x3a8] sm:$0xff]
        %v849 = vld [vmem:[#allocation6 + $0x3b0] sm:$0xff]
        %v850 = vld [vmem:[#allocation6 + $0x3b8] sm:$0xff]
        %v851 = vld [vmem:[#allocation6 + $0x3c0] sm:$0xff]
        %v852 = vld [vmem:[#allocation6 + $0x3c8] sm:$0xff]
        %v853 = vld [vmem:[#allocation6 + $0x3d0] sm:$0xff]
        %v854 = vld [vmem:[#allocation6 + $0x3d8] sm:$0xff]
        %v855 = vld [vmem:[#allocation6 + $0x3e0] sm:$0xff]
        %v856 = vld [vmem:[#allocation6 + $0x3e8] sm:$0xff]
        %v857 = vld [vmem:[#allocation6 + $0x3f0] sm:$0xff]
        %v858 = vld [vmem:[#allocation6 + $0x3f8] sm:$0xff]
        %v859 = vld [vmem:[#allocation6 + $0x400] sm:$0xff]
        %v860 = vld [vmem:[#allocation6 + $0x408] sm:$0xff]
        %v861 = vld [vmem:[#allocation6 + $0x410] sm:$0xff]
        %v862 = vld [vmem:[#allocation6 + $0x418] sm:$0xff]
        %v863 = vld [vmem:[#allocation6 + $0x420] sm:$0xff]
        %v864 = vld [vmem:[#allocation6 + $0x428] sm:$0xff]
        %v865 = vld [vmem:[#allocation6 + $0x430] sm:$0xff]
        %v866 = vld [vmem:[#allocation6 + $0x438] sm:$0xff]
        %v867 = vld [vmem:[#allocation6 + $0x440] sm:$0xff]
        %v868 = vld [vmem:[#allocation6 + $0x448] sm:$0xff]
        %v869 = vld [vmem:[#allocation6 + $0x450] sm:$0xff]
        %v870 = vld [vmem:[#allocation6 + $0x458] sm:$0xff]
        %v871 = vld [vmem:[#allocation6 + $0x460] sm:$0xff]
        %v872 = vld [vmem:[#allocation6 + $0x468] sm:$0xff]
        %v873 = vld [vmem:[#allocation6 + $0x470] sm:$0xff]
        %v874 = vld [vmem:[#allocation6 + $0x478] sm:$0xff]
        %875 = vmatprep.subr.mxu0 0.0
        %876 = vmatpush1.msra.mxu0 %v746
        %877 = vmatprep.subr.mxu0 0.0
        %878 = vmatpush1.msra.mxu0 %v745
        %879 = vmatprep.subr.mxu0 0.0
        %880 = vmatpush1.msra.mxu0 %v744
        %881 = vmatprep.subr.mxu0 0.0
        %882 = vmatpush1.msra.mxu0 %v743
        %883 = vmatprep.subr.mxu0 0.0
        %884 = vmatpush1.msra.mxu0 %v742
        %885 = vmatprep.subr.mxu0 0.0
        %886 = vmatpush1.msra.mxu0 %v741
        %887 = vmatprep.subr.mxu0 0.0
        %888 = vmatpush1.msra.mxu0 %v740
        %889 = vmatprep.subr.mxu0 0.0
        %890 = vmatpush1.msra.mxu0 %v739
        %891 = vmatprep.subr.mxu0 0.0
        %892 = vmatpush1.msra.mxu0 %v738
        %893 = vmatprep.subr.mxu0 0.0
        %894 = vmatpush1.msra.mxu0 %v737
        %895 = vmatprep.subr.mxu0 0.0
        %896 = vmatpush1.msra.mxu0 %v736
        %897 = vmatprep.subr.mxu0 0.0
        %898 = vmatpush1.msra.mxu0 %v735
        %899 = vmatprep.subr.mxu0 0.0
        %900 = vmatpush1.msra.mxu0 %v734
        %901 = vmatprep.subr.mxu0 0.0
        %902 = vmatpush1.msra.mxu0 %v733
        %903 = vmatprep.subr.mxu0 0.0
        %904 = vmatpush1.msra.mxu0 %v732
        %905 = vmatprep.subr.mxu0 0.0
        %906 = vmatpush1.msra.mxu0 %v731
        %907 = vmatprep.subr.mxu0 0.0
        %908 = vmatpush2.msra.mxu0 %v762
        %909 = vmatprep.subr.mxu0 0.0
        %910 = vmatpush2.msra.mxu0 %v761
        %911 = vmatprep.subr.mxu0 0.0
        %912 = vmatpush2.msra.mxu0 %v760
        %913 = vmatprep.subr.mxu0 0.0
        %914 = vmatpush2.msra.mxu0 %v759
        %915 = vmatprep.subr.mxu0 0.0
        %916 = vmatpush2.msra.mxu0 %v758
        %917 = vmatprep.subr.mxu0 0.0
        %918 = vmatpush2.msra.mxu0 %v757
        %919 = vmatprep.subr.mxu0 0.0
        %920 = vmatpush2.msra.mxu0 %v756
        %921 = vmatprep.subr.mxu0 0.0
        %922 = vmatpush2.msra.mxu0 %v755
        %923 = vmatprep.subr.mxu0 0.0
        %924 = vmatpush2.msra.mxu0 %v754
        %925 = vmatprep.subr.mxu0 0.0
        %926 = vmatpush2.msra.mxu0 %v753
        %927 = vmatprep.subr.mxu0 0.0
        %928 = vmatpush2.msra.mxu0 %v752
        %929 = vmatprep.subr.mxu0 0.0
        %930 = vmatpush2.msra.mxu0 %v751
        %931 = vmatprep.subr.mxu0 0.0
        %932 = vmatpush2.msra.mxu0 %v750
        %933 = vmatprep.subr.mxu0 0.0
        %934 = vmatpush2.msra.mxu0 %v749
        %935 = vmatprep.subr.mxu0 0.0
        %936 = vmatpush2.msra.mxu0 %v748
        %937 = vmatprep.subr.mxu0 0.0
        %938 = vmatpush2.msra.mxu0 %v747
        %939 = vmatprep.mubr.f32.mxu0 %v474
        %940 = vmatmul.mubr.f32.gmra.mxu0 %v369
        %v941 = vpop.f32.mrf.mxu0
        %v942 = vadd.f32 0.0, %v941
        %v943 = vpop.f32.mrf.mxu0
        %944 = vmatprep.mubr.f32.mxu0 %v476
        %945 = vmatmul.mubr.f32.gmra.mxu0 %v370
        %v946 = vpop.f32.mrf.mxu0
        %v947 = vadd.f32 0.0, %v946
        %v948 = vpop.f32.mrf.mxu0
        %949 = vmatprep.mubr.f32.mxu0 %v479
        %950 = vmatmul.mubr.f32.gmra.mxu0 %v372
        %v951 = vpop.f32.mrf.mxu0
        %v952 = vadd.f32 0.0, %v951
        %v953 = vpop.f32.mrf.mxu0
        %954 = vmatprep.mubr.f32.mxu0 %v481
        %955 = vmatmul.mubr.f32.gmra.mxu0 %v373
        %v956 = vpop.f32.mrf.mxu0
        %v957 = vadd.f32 0.0, %v956
        %v958 = vpop.f32.mrf.mxu0
        %959 = vmatprep.mubr.f32.mxu0 %v484
        %960 = vmatmul.mubr.f32.gmra.mxu0 %v375
        %v961 = vpop.f32.mrf.mxu0
        %v962 = vadd.f32 0.0, %v961
        %v963 = vpop.f32.mrf.mxu0
        %964 = vmatprep.mubr.f32.mxu0 %v486
        %965 = vmatmul.mubr.f32.gmra.mxu0 %v376
        %v966 = vpop.f32.mrf.mxu0
        %v967 = vadd.f32 0.0, %v966
        %v968 = vpop.f32.mrf.mxu0
        %969 = vmatprep.mubr.f32.mxu0 %v489
        %970 = vmatmul.mubr.f32.gmra.mxu0 %v378
        %v971 = vpop.f32.mrf.mxu0
        %v972 = vadd.f32 0.0, %v971
        %v973 = vpop.f32.mrf.mxu0
        %974 = vmatprep.mubr.f32.mxu0 %v491
        %975 = vmatmul.mubr.f32.gmra.mxu0 %v379
        %v976 = vpop.f32.mrf.mxu0
        %v977 = vadd.f32 0.0, %v976
        %v978 = vpop.f32.mrf.mxu0
        %979 = vmatprep.mubr.f32.mxu0 %v494
        %980 = vmatmul.mubr.f32.gmra.mxu0 %v381
        %v981 = vpop.f32.mrf.mxu0
        %v982 = vadd.f32 0.0, %v981
        %v983 = vpop.f32.mrf.mxu0
        %984 = vmatprep.mubr.f32.mxu0 %v496
        %985 = vmatmul.mubr.f32.gmra.mxu0 %v382
        %v986 = vpop.f32.mrf.mxu0
        %v987 = vadd.f32 0.0, %v986
        %v988 = vpop.f32.mrf.mxu0
        %989 = vmatprep.mubr.f32.mxu0 %v499
        %990 = vmatmul.mubr.f32.gmra.mxu0 %v384
        %v991 = vpop.f32.mrf.mxu0
        %v992 = vadd.f32 0.0, %v991
        %v993 = vpop.f32.mrf.mxu0
        %994 = vmatprep.mubr.f32.mxu0 %v501
        %995 = vmatmul.mubr.f32.gmra.mxu0 %v385
        %v996 = vpop.f32.mrf.mxu0
        %v997 = vadd.f32 0.0, %v996
        %v998 = vpop.f32.mrf.mxu0
        %999 = vmatprep.mubr.f32.mxu0 %v504
        %1000 = vmatmul.mubr.f32.gmra.mxu0 %v387
        %v1001 = vpop.f32.mrf.mxu0
        %v1002 = vadd.f32 0.0, %v1001
        %v1003 = vpop.f32.mrf.mxu0
        %1004 = vmatprep.mubr.f32.mxu0 %v506
        %1005 = vmatmul.mubr.f32.gmra.mxu0 %v388
        %v1006 = vpop.f32.mrf.mxu0
        %v1007 = vadd.f32 0.0, %v1006
        %v1008 = vpop.f32.mrf.mxu0
        %1009 = vmatprep.mubr.f32.mxu0 %v509
        %1010 = vmatmul.mubr.f32.gmra.mxu0 %v390
        %v1011 = vpop.f32.mrf.mxu0
        %v1012 = vadd.f32 0.0, %v1011
        %v1013 = vpop.f32.mrf.mxu0
        %1014 = vmatprep.mubr.f32.mxu0 %v511
        %1015 = vmatmul.mubr.f32.gmra.mxu0 %v391
        %v1016 = vpop.f32.mrf.mxu0
        %v1017 = vadd.f32 0.0, %v1016
        %v1018 = vpop.f32.mrf.mxu0
        %1019 = vmatprep.mubr.f32.mxu0 %v514
        %1020 = vmatmul.mubr.f32.gmra.mxu0 %v393
        %v1021 = vpop.f32.mrf.mxu0
        %v1022 = vadd.f32 0.0, %v1021
        %v1023 = vpop.f32.mrf.mxu0
        %1024 = vmatprep.mubr.f32.mxu0 %v516
        %1025 = vmatmul.mubr.f32.gmra.mxu0 %v394
        %v1026 = vpop.f32.mrf.mxu0
        %v1027 = vadd.f32 0.0, %v1026
        %v1028 = vpop.f32.mrf.mxu0
        %1029 = vmatprep.mubr.f32.mxu0 %v519
        %1030 = vmatmul.mubr.f32.gmra.mxu0 %v396
        %v1031 = vpop.f32.mrf.mxu0
        %v1032 = vadd.f32 0.0, %v1031
        %v1033 = vpop.f32.mrf.mxu0
        %1034 = vmatprep.mubr.f32.mxu0 %v521
        %1035 = vmatmul.mubr.f32.gmra.mxu0 %v397
        %v1036 = vpop.f32.mrf.mxu0
        %v1037 = vadd.f32 0.0, %v1036
        %v1038 = vpop.f32.mrf.mxu0
        %1039 = vmatprep.mubr.f32.mxu0 %v524
        %1040 = vmatmul.mubr.f32.gmra.mxu0 %v399
        %v1041 = vpop.f32.mrf.mxu0
        %v1042 = vadd.f32 0.0, %v1041
        %v1043 = vpop.f32.mrf.mxu0
        %1044 = vmatprep.mubr.f32.mxu0 %v526
        %1045 = vmatmul.mubr.f32.gmra.mxu0 %v400
        %v1046 = vpop.f32.mrf.mxu0
        %v1047 = vadd.f32 0.0, %v1046
        %v1048 = vpop.f32.mrf.mxu0
        %1049 = vmatprep.mubr.f32.mxu0 %v529
        %1050 = vmatmul.mubr.f32.gmra.mxu0 %v402
        %v1051 = vpop.f32.mrf.mxu0
        %v1052 = vadd.f32 0.0, %v1051
        %v1053 = vpop.f32.mrf.mxu0
        %1054 = vmatprep.mubr.f32.mxu0 %v531
        %1055 = vmatmul.mubr.f32.gmra.mxu0 %v403
        %v1056 = vpop.f32.mrf.mxu0
        %v1057 = vadd.f32 0.0, %v1056
        %v1058 = vpop.f32.mrf.mxu0
        %1059 = vmatprep.mubr.f32.mxu0 %v534
        %1060 = vmatmul.mubr.f32.gmra.mxu0 %v405
        %v1061 = vpop.f32.mrf.mxu0
        %v1062 = vadd.f32 0.0, %v1061
        %v1063 = vpop.f32.mrf.mxu0
        %1064 = vmatprep.mubr.f32.mxu0 %v536
        %1065 = vmatmul.mubr.f32.gmra.mxu0 %v406
        %v1066 = vpop.f32.mrf.mxu0
        %v1067 = vadd.f32 0.0, %v1066
        %v1068 = vpop.f32.mrf.mxu0
        %1069 = vmatprep.mubr.f32.mxu0 %v539
        %1070 = vmatmul.mubr.f32.gmra.mxu0 %v408
        %v1071 = vpop.f32.mrf.mxu0
        %v1072 = vadd.f32 0.0, %v1071
        %v1073 = vpop.f32.mrf.mxu0
        %1074 = vmatprep.mubr.f32.mxu0 %v541
        %1075 = vmatmul.mubr.f32.gmra.mxu0 %v409
        %v1076 = vpop.f32.mrf.mxu0
        %v1077 = vadd.f32 0.0, %v1076
        %v1078 = vpop.f32.mrf.mxu0
        %1079 = vmatprep.mubr.f32.mxu0 %v544
        %1080 = vmatmul.mubr.f32.gmra.mxu0 %v411
        %v1081 = vpop.f32.mrf.mxu0
        %v1082 = vadd.f32 0.0, %v1081
        %v1083 = vpop.f32.mrf.mxu0
        %1084 = vmatprep.mubr.f32.mxu0 %v546
        %1085 = vmatmul.mubr.f32.gmra.mxu0 %v412
        %v1086 = vpop.f32.mrf.mxu0
        %v1087 = vadd.f32 0.0, %v1086
        %v1088 = vpop.f32.mrf.mxu0
        %1089 = vmatprep.mubr.f32.mxu0 %v549
        %1090 = vmatmul.mubr.f32.gmra.mxu0 %v414
        %v1091 = vpop.f32.mrf.mxu0
        %v1092 = vadd.f32 0.0, %v1091
        %v1093 = vpop.f32.mrf.mxu0
        %1094 = vmatprep.mubr.f32.mxu0 %v551
        %1095 = vmatmul.mubr.f32.gmra.mxu0 %v415
        %v1096 = vpop.f32.mrf.mxu0
        %v1097 = vadd.f32 0.0, %v1096
        %v1098 = vpop.f32.mrf.mxu0
        %1099 = vdwg.mxu0
        %1100 = vmatprep.subr.mxu0 0.0
        %1101 = vmatpush1.msra.mxu0 %v778
        %1102 = vmatprep.subr.mxu0 0.0
        %1103 = vmatpush1.msra.mxu0 %v777
        %1104 = vmatprep.subr.mxu0 0.0
        %1105 = vmatpush1.msra.mxu0 %v776
        %1106 = vmatprep.subr.mxu0 0.0
        %1107 = vmatpush1.msra.mxu0 %v775
        %1108 = vmatprep.subr.mxu0 0.0
        %1109 = vmatpush1.msra.mxu0 %v774
        %1110 = vmatprep.subr.mxu0 0.0
        %1111 = vmatpush1.msra.mxu0 %v773
        %1112 = vmatprep.subr.mxu0 0.0
        %1113 = vmatpush1.msra.mxu0 %v772
        %1114 = vmatprep.subr.mxu0 0.0
        %1115 = vmatpush1.msra.mxu0 %v771
        %1116 = vmatprep.subr.mxu0 0.0
        %1117 = vmatpush1.msra.mxu0 %v770
        %1118 = vmatprep.subr.mxu0 0.0
        %1119 = vmatpush1.msra.mxu0 %v769
        %1120 = vmatprep.subr.mxu0 0.0
        %1121 = vmatpush1.msra.mxu0 %v768
        %1122 = vmatprep.subr.mxu0 0.0
        %1123 = vmatpush1.msra.mxu0 %v767
        %1124 = vmatprep.subr.mxu0 0.0
        %1125 = vmatpush1.msra.mxu0 %v766
        %1126 = vmatprep.subr.mxu0 0.0
        %1127 = vmatpush1.msra.mxu0 %v765
        %1128 = vmatprep.subr.mxu0 0.0
        %1129 = vmatpush1.msra.mxu0 %v764
        %1130 = vmatprep.subr.mxu0 0.0
        %1131 = vmatpush1.msra.mxu0 %v763
        %1132 = vmatprep.subr.mxu0 0.0
        %1133 = vmatpush2.msra.mxu0 %v794
        %1134 = vmatprep.subr.mxu0 0.0
        %1135 = vmatpush2.msra.mxu0 %v793
        %1136 = vmatprep.subr.mxu0 0.0
        %1137 = vmatpush2.msra.mxu0 %v792
        %1138 = vmatprep.subr.mxu0 0.0
        %1139 = vmatpush2.msra.mxu0 %v791
        %1140 = vmatprep.subr.mxu0 0.0
        %1141 = vmatpush2.msra.mxu0 %v790
        %1142 = vmatprep.subr.mxu0 0.0
        %1143 = vmatpush2.msra.mxu0 %v789
        %1144 = vmatprep.subr.mxu0 0.0
        %1145 = vmatpush2.msra.mxu0 %v788
        %1146 = vmatprep.subr.mxu0 0.0
        %1147 = vmatpush2.msra.mxu0 %v787
        %1148 = vmatprep.subr.mxu0 0.0
        %1149 = vmatpush2.msra.mxu0 %v786
        %1150 = vmatprep.subr.mxu0 0.0
        %1151 = vmatpush2.msra.mxu0 %v785
        %1152 = vmatprep.subr.mxu0 0.0
        %1153 = vmatpush2.msra.mxu0 %v784
        %1154 = vmatprep.subr.mxu0 0.0
        %1155 = vmatpush2.msra.mxu0 %v783
        %1156 = vmatprep.subr.mxu0 0.0
        %1157 = vmatpush2.msra.mxu0 %v782
        %1158 = vmatprep.subr.mxu0 0.0
        %1159 = vmatpush2.msra.mxu0 %v781
        %1160 = vmatprep.subr.mxu0 0.0
        %1161 = vmatpush2.msra.mxu0 %v780
        %1162 = vmatprep.subr.mxu0 0.0
        %1163 = vmatpush2.msra.mxu0 %v779
        %1164 = vmatprep.mubr.f32.mxu0 %v372
        %1165 = vmatmul.mubr.f32.gmra.mxu0 %v587
        %v1166 = vpop.f32.mrf.mxu0
        %v1167 = vadd.f32 %v942, %v1166
        %v1168 = vpop.f32.mrf.mxu0
        %1169 = vmatprep.mubr.f32.mxu0 %v373
        %1170 = vmatmul.mubr.f32.gmra.mxu0 %v589
        %v1171 = vpop.f32.mrf.mxu0
        %v1172 = vadd.f32 %v947, %v1171
        %v1173 = vpop.f32.mrf.mxu0
        %1174 = vmatprep.mubr.f32.mxu0 %v375
        %1175 = vmatmul.mubr.f32.gmra.mxu0 %v592
        %v1176 = vpop.f32.mrf.mxu0
        %v1177 = vadd.f32 %v952, %v1176
        %v1178 = vpop.f32.mrf.mxu0
        %1179 = vmatprep.mubr.f32.mxu0 %v376
        %1180 = vmatmul.mubr.f32.gmra.mxu0 %v594
        %v1181 = vpop.f32.mrf.mxu0
        %v1182 = vadd.f32 %v957, %v1181
        %v1183 = vpop.f32.mrf.mxu0
        %1184 = vmatprep.mubr.f32.mxu0 %v378
        %1185 = vmatmul.mubr.f32.gmra.mxu0 %v597
        %v1186 = vpop.f32.mrf.mxu0
        %v1187 = vadd.f32 %v962, %v1186
        %v1188 = vpop.f32.mrf.mxu0
        %1189 = vmatprep.mubr.f32.mxu0 %v379
        %1190 = vmatmul.mubr.f32.gmra.mxu0 %v599
        %v1191 = vpop.f32.mrf.mxu0
        %v1192 = vadd.f32 %v967, %v1191
        %v1193 = vpop.f32.mrf.mxu0
        %1194 = vmatprep.mubr.f32.mxu0 %v381
        %1195 = vmatmul.mubr.f32.gmra.mxu0 %v602
        %v1196 = vpop.f32.mrf.mxu0
        %v1197 = vadd.f32 %v972, %v1196
        %v1198 = vpop.f32.mrf.mxu0
        %1199 = vmatprep.mubr.f32.mxu0 %v382
        %1200 = vmatmul.mubr.f32.gmra.mxu0 %v604
        %v1201 = vpop.f32.mrf.mxu0
        %v1202 = vadd.f32 %v977, %v1201
        %v1203 = vpop.f32.mrf.mxu0
        %1204 = vmatprep.mubr.f32.mxu0 %v384
        %1205 = vmatmul.mubr.f32.gmra.mxu0 %v607
        %v1206 = vpop.f32.mrf.mxu0
        %v1207 = vadd.f32 %v982, %v1206
        %v1208 = vpop.f32.mrf.mxu0
        %1209 = vmatprep.mubr.f32.mxu0 %v385
        %1210 = vmatmul.mubr.f32.gmra.mxu0 %v609
        %v1211 = vpop.f32.mrf.mxu0
        %v1212 = vadd.f32 %v987, %v1211
        %v1213 = vpop.f32.mrf.mxu0
        %1214 = vmatprep.mubr.f32.mxu0 %v387
        %1215 = vmatmul.mubr.f32.gmra.mxu0 %v612
        %v1216 = vpop.f32.mrf.mxu0
        %v1217 = vadd.f32 %v992, %v1216
        %v1218 = vpop.f32.mrf.mxu0
        %1219 = vmatprep.mubr.f32.mxu0 %v388
        %1220 = vmatmul.mubr.f32.gmra.mxu0 %v614
        %v1221 = vpop.f32.mrf.mxu0
        %v1222 = vadd.f32 %v997, %v1221
        %v1223 = vpop.f32.mrf.mxu0
        %1224 = vmatprep.mubr.f32.mxu0 %v390
        %1225 = vmatmul.mubr.f32.gmra.mxu0 %v617
        %v1226 = vpop.f32.mrf.mxu0
        %v1227 = vadd.f32 %v1002, %v1226
        %v1228 = vpop.f32.mrf.mxu0
        %1229 = vmatprep.mubr.f32.mxu0 %v391
        %1230 = vmatmul.mubr.f32.gmra.mxu0 %v619
        %v1231 = vpop.f32.mrf.mxu0
        %v1232 = vadd.f32 %v1007, %v1231
        %v1233 = vpop.f32.mrf.mxu0
        %1234 = vmatprep.mubr.f32.mxu0 %v393
        %1235 = vmatmul.mubr.f32.gmra.mxu0 %v622
        %v1236 = vpop.f32.mrf.mxu0
        %v1237 = vadd.f32 %v1012, %v1236
        %v1238 = vpop.f32.mrf.mxu0
        %1239 = vmatprep.mubr.f32.mxu0 %v394
        %1240 = vmatmul.mubr.f32.gmra.mxu0 %v624
        %v1241 = vpop.f32.mrf.mxu0
        %v1242 = vadd.f32 %v1017, %v1241
        %v1243 = vpop.f32.mrf.mxu0
        %1244 = vmatprep.mubr.f32.mxu0 %v396
        %1245 = vmatmul.mubr.f32.gmra.mxu0 %v627
        %v1246 = vpop.f32.mrf.mxu0
        %v1247 = vadd.f32 %v1022, %v1246
        %v1248 = vpop.f32.mrf.mxu0
        %1249 = vmatprep.mubr.f32.mxu0 %v397
        %1250 = vmatmul.mubr.f32.gmra.mxu0 %v629
        %v1251 = vpop.f32.mrf.mxu0
        %v1252 = vadd.f32 %v1027, %v1251
        %v1253 = vpop.f32.mrf.mxu0
        %1254 = vmatprep.mubr.f32.mxu0 %v399
        %1255 = vmatmul.mubr.f32.gmra.mxu0 %v632
        %v1256 = vpop.f32.mrf.mxu0
        %v1257 = vadd.f32 %v1032, %v1256
        %v1258 = vpop.f32.mrf.mxu0
        %1259 = vmatprep.mubr.f32.mxu0 %v400
        %1260 = vmatmul.mubr.f32.gmra.mxu0 %v634
        %v1261 = vpop.f32.mrf.mxu0
        %v1262 = vadd.f32 %v1037, %v1261
        %v1263 = vpop.f32.mrf.mxu0
        %1264 = vmatprep.mubr.f32.mxu0 %v402
        %1265 = vmatmul.mubr.f32.gmra.mxu0 %v637
        %v1266 = vpop.f32.mrf.mxu0
        %v1267 = vadd.f32 %v1042, %v1266
        %v1268 = vpop.f32.mrf.mxu0
        %1269 = vmatprep.mubr.f32.mxu0 %v403
        %1270 = vmatmul.mubr.f32.gmra.mxu0 %v639
        %v1271 = vpop.f32.mrf.mxu0
        %v1272 = vadd.f32 %v1047, %v1271
        %v1273 = vpop.f32.mrf.mxu0
        %1274 = vmatprep.mubr.f32.mxu0 %v405
        %1275 = vmatmul.mubr.f32.gmra.mxu0 %v642
        %v1276 = vpop.f32.mrf.mxu0
        %v1277 = vadd.f32 %v1052, %v1276
        %v1278 = vpop.f32.mrf.mxu0
        %1279 = vmatprep.mubr.f32.mxu0 %v406
        %1280 = vmatmul.mubr.f32.gmra.mxu0 %v644
        %v1281 = vpop.f32.mrf.mxu0
        %v1282 = vadd.f32 %v1057, %v1281
        %v1283 = vpop.f32.mrf.mxu0
        %1284 = vmatprep.mubr.f32.mxu0 %v408
        %1285 = vmatmul.mubr.f32.gmra.mxu0 %v647
        %v1286 = vpop.f32.mrf.mxu0
        %v1287 = vadd.f32 %v1062, %v1286
        %v1288 = vpop.f32.mrf.mxu0
        %1289 = vmatprep.mubr.f32.mxu0 %v409
        %1290 = vmatmul.mubr.f32.gmra.mxu0 %v649
        %v1291 = vpop.f32.mrf.mxu0
        %v1292 = vadd.f32 %v1067, %v1291
        %v1293 = vpop.f32.mrf.mxu0
        %1294 = vmatprep.mubr.f32.mxu0 %v411
        %1295 = vmatmul.mubr.f32.gmra.mxu0 %v652
        %v1296 = vpop.f32.mrf.mxu0
        %v1297 = vadd.f32 %v1072, %v1296
        %v1298 = vpop.f32.mrf.mxu0
        %1299 = vmatprep.mubr.f32.mxu0 %v412
        %1300 = vmatmul.mubr.f32.gmra.mxu0 %v654
        %v1301 = vpop.f32.mrf.mxu0
        %v1302 = vadd.f32 %v1077, %v1301
        %v1303 = vpop.f32.mrf.mxu0
        %1304 = vmatprep.mubr.f32.mxu0 %v414
        %1305 = vmatmul.mubr.f32.gmra.mxu0 %v657
        %v1306 = vpop.f32.mrf.mxu0
        %v1307 = vadd.f32 %v1082, %v1306
        %v1308 = vpop.f32.mrf.mxu0
        %1309 = vmatprep.mubr.f32.mxu0 %v415
        %1310 = vmatmul.mubr.f32.gmra.mxu0 %v659
        %v1311 = vpop.f32.mrf.mxu0
        %v1312 = vadd.f32 %v1087, %v1311
        %v1313 = vpop.f32.mrf.mxu0
        %1314 = vmatprep.mubr.f32.mxu0 %v417
        %1315 = vmatmul.mubr.f32.gmra.mxu0 %v662
        %v1316 = vpop.f32.mrf.mxu0
        %v1317 = vadd.f32 %v1092, %v1316
        %v1318 = vpop.f32.mrf.mxu0
        %1319 = vmatprep.mubr.f32.mxu0 %v418
        %1320 = vmatmul.mubr.f32.gmra.mxu0 %v664
        %v1321 = vpop.f32.mrf.mxu0
        %v1322 = vadd.f32 %v1097, %v1321
        %v1323 = vpop.f32.mrf.mxu0
        %1324 = vdwg.mxu0
        %1325 = vmatprep.subr.mxu0 0.0
        %1326 = vmatpush1.msra.mxu0 %v810
        %1327 = vmatprep.subr.mxu0 0.0
        %1328 = vmatpush1.msra.mxu0 %v809
        %1329 = vmatprep.subr.mxu0 0.0
        %1330 = vmatpush1.msra.mxu0 %v808
        %1331 = vmatprep.subr.mxu0 0.0
        %1332 = vmatpush1.msra.mxu0 %v807
        %1333 = vmatprep.subr.mxu0 0.0
        %1334 = vmatpush1.msra.mxu0 %v806
        %1335 = vmatprep.subr.mxu0 0.0
        %1336 = vmatpush1.msra.mxu0 %v805
        %1337 = vmatprep.subr.mxu0 0.0
        %1338 = vmatpush1.msra.mxu0 %v804
        %1339 = vmatprep.subr.mxu0 0.0
        %1340 = vmatpush1.msra.mxu0 %v803
        %1341 = vmatprep.subr.mxu0 0.0
        %1342 = vmatpush1.msra.mxu0 %v802
        %1343 = vmatprep.subr.mxu0 0.0
        %1344 = vmatpush1.msra.mxu0 %v801
        %1345 = vmatprep.subr.mxu0 0.0
        %1346 = vmatpush1.msra.mxu0 %v800
        %1347 = vmatprep.subr.mxu0 0.0
        %1348 = vmatpush1.msra.mxu0 %v799
        %1349 = vmatprep.subr.mxu0 0.0
        %1350 = vmatpush1.msra.mxu0 %v798
        %1351 = vmatprep.subr.mxu0 0.0
        %1352 = vmatpush1.msra.mxu0 %v797
        %1353 = vmatprep.subr.mxu0 0.0
        %1354 = vmatpush1.msra.mxu0 %v796
        %1355 = vmatprep.subr.mxu0 0.0
        %1356 = vmatpush1.msra.mxu0 %v795
        %1357 = vmatprep.subr.mxu0 0.0
        %1358 = vmatpush2.msra.mxu0 %v826
        %1359 = vmatprep.subr.mxu0 0.0
        %1360 = vmatpush2.msra.mxu0 %v825
        %1361 = vmatprep.subr.mxu0 0.0
        %1362 = vmatpush2.msra.mxu0 %v824
        %1363 = vmatprep.subr.mxu0 0.0
        %1364 = vmatpush2.msra.mxu0 %v823
        %1365 = vmatprep.subr.mxu0 0.0
        %1366 = vmatpush2.msra.mxu0 %v822
        %1367 = vmatprep.subr.mxu0 0.0
        %1368 = vmatpush2.msra.mxu0 %v821
        %1369 = vmatprep.subr.mxu0 0.0
        %1370 = vmatpush2.msra.mxu0 %v820
        %1371 = vmatprep.subr.mxu0 0.0
        %1372 = vmatpush2.msra.mxu0 %v819
        %1373 = vmatprep.subr.mxu0 0.0
        %1374 = vmatpush2.msra.mxu0 %v818
        %1375 = vmatprep.subr.mxu0 0.0
        %1376 = vmatpush2.msra.mxu0 %v817
        %1377 = vmatprep.subr.mxu0 0.0
        %1378 = vmatpush2.msra.mxu0 %v816
        %1379 = vmatprep.subr.mxu0 0.0
        %1380 = vmatpush2.msra.mxu0 %v815
        %1381 = vmatprep.subr.mxu0 0.0
        %1382 = vmatpush2.msra.mxu0 %v814
        %1383 = vmatprep.subr.mxu0 0.0
        %1384 = vmatpush2.msra.mxu0 %v813
        %1385 = vmatprep.subr.mxu0 0.0
        %1386 = vmatpush2.msra.mxu0 %v812
        %1387 = vmatprep.subr.mxu0 0.0
        %1388 = vmatpush2.msra.mxu0 %v811
        %1389 = vmatprep.mubr.f32.mxu0 %v592
        %1390 = vmatmul.mubr.f32.gmra.mxu0 %v479
        %v1391 = vpop.f32.mrf.mxu0
        %v1392 = vadd.f32 %v1167, %v1391
        %v1393 = vpop.f32.mrf.mxu0
        %1394 = vmatprep.mubr.f32.mxu0 %v594
        %1395 = vmatmul.mubr.f32.gmra.mxu0 %v481
        %v1396 = vpop.f32.mrf.mxu0
        %v1397 = vadd.f32 %v1172, %v1396
        %v1398 = vpop.f32.mrf.mxu0
        %1399 = vmatprep.mubr.f32.mxu0 %v597
        %1400 = vmatmul.mubr.f32.gmra.mxu0 %v484
        %v1401 = vpop.f32.mrf.mxu0
        %v1402 = vadd.f32 %v1177, %v1401
        %v1403 = vpop.f32.mrf.mxu0
        %1404 = vmatprep.mubr.f32.mxu0 %v599
        %1405 = vmatmul.mubr.f32.gmra.mxu0 %v486
        %v1406 = vpop.f32.mrf.mxu0
        %v1407 = vadd.f32 %v1182, %v1406
        %v1408 = vpop.f32.mrf.mxu0
        %1409 = vmatprep.mubr.f32.mxu0 %v602
        %1410 = vmatmul.mubr.f32.gmra.mxu0 %v489
        %v1411 = vpop.f32.mrf.mxu0
        %v1412 = vadd.f32 %v1187, %v1411
        %v1413 = vpop.f32.mrf.mxu0
        %1414 = vmatprep.mubr.f32.mxu0 %v604
        %1415 = vmatmul.mubr.f32.gmra.mxu0 %v491
        %v1416 = vpop.f32.mrf.mxu0
        %v1417 = vadd.f32 %v1192, %v1416
        %v1418 = vpop.f32.mrf.mxu0
        %1419 = vmatprep.mubr.f32.mxu0 %v607
        %1420 = vmatmul.mubr.f32.gmra.mxu0 %v494
        %v1421 = vpop.f32.mrf.mxu0
        %v1422 = vadd.f32 %v1197, %v1421
        %v1423 = vpop.f32.mrf.mxu0
        %1424 = vmatprep.mubr.f32.mxu0 %v609
        %1425 = vmatmul.mubr.f32.gmra.mxu0 %v496
        %v1426 = vpop.f32.mrf.mxu0
        %v1427 = vadd.f32 %v1202, %v1426
        %v1428 = vpop.f32.mrf.mxu0
        %1429 = vmatprep.mubr.f32.mxu0 %v612
        %1430 = vmatmul.mubr.f32.gmra.mxu0 %v499
        %v1431 = vpop.f32.mrf.mxu0
        %v1432 = vadd.f32 %v1207, %v1431
        %v1433 = vpop.f32.mrf.mxu0
        %1434 = vmatprep.mubr.f32.mxu0 %v614
        %1435 = vmatmul.mubr.f32.gmra.mxu0 %v501
        %v1436 = vpop.f32.mrf.mxu0
        %v1437 = vadd.f32 %v1212, %v1436
        %v1438 = vpop.f32.mrf.mxu0
        %1439 = vmatprep.mubr.f32.mxu0 %v617
        %1440 = vmatmul.mubr.f32.gmra.mxu0 %v504
        %v1441 = vpop.f32.mrf.mxu0
        %v1442 = vadd.f32 %v1217, %v1441
        %v1443 = vpop.f32.mrf.mxu0
        %1444 = vmatprep.mubr.f32.mxu0 %v619
        %1445 = vmatmul.mubr.f32.gmra.mxu0 %v506
        %v1446 = vpop.f32.mrf.mxu0
        %v1447 = vadd.f32 %v1222, %v1446
        %v1448 = vpop.f32.mrf.mxu0
        %1449 = vmatprep.mubr.f32.mxu0 %v622
        %1450 = vmatmul.mubr.f32.gmra.mxu0 %v509
        %v1451 = vpop.f32.mrf.mxu0
        %v1452 = vadd.f32 %v1227, %v1451
        %v1453 = vpop.f32.mrf.mxu0
        %1454 = vmatprep.mubr.f32.mxu0 %v624
        %1455 = vmatmul.mubr.f32.gmra.mxu0 %v511
        %v1456 = vpop.f32.mrf.mxu0
        %v1457 = vadd.f32 %v1232, %v1456
        %v1458 = vpop.f32.mrf.mxu0
        %1459 = vmatprep.mubr.f32.mxu0 %v627
        %1460 = vmatmul.mubr.f32.gmra.mxu0 %v514
        %v1461 = vpop.f32.mrf.mxu0
        %v1462 = vadd.f32 %v1237, %v1461
        %v1463 = vpop.f32.mrf.mxu0
        %1464 = vmatprep.mubr.f32.mxu0 %v629
        %1465 = vmatmul.mubr.f32.gmra.mxu0 %v516
        %v1466 = vpop.f32.mrf.mxu0
        %v1467 = vadd.f32 %v1242, %v1466
        %v1468 = vpop.f32.mrf.mxu0
        %1469 = vmatprep.mubr.f32.mxu0 %v632
        %1470 = vmatmul.mubr.f32.gmra.mxu0 %v519
        %v1471 = vpop.f32.mrf.mxu0
        %v1472 = vadd.f32 %v1247, %v1471
        %v1473 = vpop.f32.mrf.mxu0
        %1474 = vmatprep.mubr.f32.mxu0 %v634
        %1475 = vmatmul.mubr.f32.gmra.mxu0 %v521
        %v1476 = vpop.f32.mrf.mxu0
        %v1477 = vadd.f32 %v1252, %v1476
        %v1478 = vpop.f32.mrf.mxu0
        %1479 = vmatprep.mubr.f32.mxu0 %v637
        %1480 = vmatmul.mubr.f32.gmra.mxu0 %v524
        %v1481 = vpop.f32.mrf.mxu0
        %v1482 = vadd.f32 %v1257, %v1481
        %v1483 = vpop.f32.mrf.mxu0
        %1484 = vmatprep.mubr.f32.mxu0 %v639
        %1485 = vmatmul.mubr.f32.gmra.mxu0 %v526
        %v1486 = vpop.f32.mrf.mxu0
        %v1487 = vadd.f32 %v1262, %v1486
        %v1488 = vpop.f32.mrf.mxu0
        %1489 = vmatprep.mubr.f32.mxu0 %v642
        %1490 = vmatmul.mubr.f32.gmra.mxu0 %v529
        %v1491 = vpop.f32.mrf.mxu0
        %v1492 = vadd.f32 %v1267, %v1491
        %v1493 = vpop.f32.mrf.mxu0
        %1494 = vmatprep.mubr.f32.mxu0 %v644
        %1495 = vmatmul.mubr.f32.gmra.mxu0 %v531
        %v1496 = vpop.f32.mrf.mxu0
        %v1497 = vadd.f32 %v1272, %v1496
        %v1498 = vpop.f32.mrf.mxu0
        %1499 = vmatprep.mubr.f32.mxu0 %v647
        %1500 = vmatmul.mubr.f32.gmra.mxu0 %v534
        %v1501 = vpop.f32.mrf.mxu0
        %v1502 = vadd.f32 %v1277, %v1501
        %v1503 = vpop.f32.mrf.mxu0
        %1504 = vmatprep.mubr.f32.mxu0 %v649
        %1505 = vmatmul.mubr.f32.gmra.mxu0 %v536
        %v1506 = vpop.f32.mrf.mxu0
        %v1507 = vadd.f32 %v1282, %v1506
        %v1508 = vpop.f32.mrf.mxu0
        %1509 = vmatprep.mubr.f32.mxu0 %v652
        %1510 = vmatmul.mubr.f32.gmra.mxu0 %v539
        %v1511 = vpop.f32.mrf.mxu0
        %v1512 = vadd.f32 %v1287, %v1511
        %v1513 = vpop.f32.mrf.mxu0
        %1514 = vmatprep.mubr.f32.mxu0 %v654
        %1515 = vmatmul.mubr.f32.gmra.mxu0 %v541
        %v1516 = vpop.f32.mrf.mxu0
        %v1517 = vadd.f32 %v1292, %v1516
        %v1518 = vpop.f32.mrf.mxu0
        %1519 = vmatprep.mubr.f32.mxu0 %v657
        %1520 = vmatmul.mubr.f32.gmra.mxu0 %v544
        %v1521 = vpop.f32.mrf.mxu0
        %v1522 = vadd.f32 %v1297, %v1521
        %v1523 = vpop.f32.mrf.mxu0
        %1524 = vmatprep.mubr.f32.mxu0 %v659
        %1525 = vmatmul.mubr.f32.gmra.mxu0 %v546
        %v1526 = vpop.f32.mrf.mxu0
        %v1527 = vadd.f32 %v1302, %v1526
        %v1528 = vpop.f32.mrf.mxu0
        %1529 = vmatprep.mubr.f32.mxu0 %v662
        %1530 = vmatmul.mubr.f32.gmra.mxu0 %v549
        %v1531 = vpop.f32.mrf.mxu0
        %v1532 = vadd.f32 %v1307, %v1531
        %v1533 = vpop.f32.mrf.mxu0
        %1534 = vmatprep.mubr.f32.mxu0 %v664
        %1535 = vmatmul.mubr.f32.gmra.mxu0 %v551
        %v1536 = vpop.f32.mrf.mxu0
        %v1537 = vadd.f32 %v1312, %v1536
        %v1538 = vpop.f32.mrf.mxu0
        %1539 = vmatprep.mubr.f32.mxu0 %v709
        %1540 = vmatmul.mubr.f32.gmra.mxu0 %v702
        %v1541 = vpop.f32.mrf.mxu0
        %v1542 = vadd.f32 %v1317, %v1541
        %v1543 = vpop.f32.mrf.mxu0
        %1544 = vmatprep.mubr.f32.mxu0 %v711
        %1545 = vmatmul.mubr.f32.gmra.mxu0 %v704
        %v1546 = vpop.f32.mrf.mxu0
        %v1547 = vadd.f32 %v1322, %v1546
        %v1548 = vpop.f32.mrf.mxu0
        %1549 = vdwg.mxu0
        %1550 = vmatprep.subr.mxu0 0.0
        %1551 = vmatpush1.msra.mxu0 %v842
        %1552 = vmatprep.subr.mxu0 0.0
        %1553 = vmatpush1.msra.mxu0 %v841
        %1554 = vmatprep.subr.mxu0 0.0
        %1555 = vmatpush1.msra.mxu0 %v840
        %1556 = vmatprep.subr.mxu0 0.0
        %1557 = vmatpush1.msra.mxu0 %v839
        %1558 = vmatprep.subr.mxu0 0.0
        %1559 = vmatpush1.msra.mxu0 %v838
        %1560 = vmatprep.subr.mxu0 0.0
        %1561 = vmatpush1.msra.mxu0 %v837
        %1562 = vmatprep.subr.mxu0 0.0
        %1563 = vmatpush1.msra.mxu0 %v836
        %1564 = vmatprep.subr.mxu0 0.0
        %1565 = vmatpush1.msra.mxu0 %v835
        %1566 = vmatprep.subr.mxu0 0.0
        %1567 = vmatpush1.msra.mxu0 %v834
        %1568 = vmatprep.subr.mxu0 0.0
        %1569 = vmatpush1.msra.mxu0 %v833
        %1570 = vmatprep.subr.mxu0 0.0
        %1571 = vmatpush1.msra.mxu0 %v832
        %1572 = vmatprep.subr.mxu0 0.0
        %1573 = vmatpush1.msra.mxu0 %v831
        %1574 = vmatprep.subr.mxu0 0.0
        %1575 = vmatpush1.msra.mxu0 %v830
        %1576 = vmatprep.subr.mxu0 0.0
        %1577 = vmatpush1.msra.mxu0 %v829
        %1578 = vmatprep.subr.mxu0 0.0
        %1579 = vmatpush1.msra.mxu0 %v828
        %1580 = vmatprep.subr.mxu0 0.0
        %1581 = vmatpush1.msra.mxu0 %v827
        %1582 = vmatprep.subr.mxu0 0.0
        %1583 = vmatpush2.msra.mxu0 %v858
        %1584 = vmatprep.subr.mxu0 0.0
        %1585 = vmatpush2.msra.mxu0 %v857
        %1586 = vmatprep.subr.mxu0 0.0
        %1587 = vmatpush2.msra.mxu0 %v856
        %1588 = vmatprep.subr.mxu0 0.0
        %1589 = vmatpush2.msra.mxu0 %v855
        %1590 = vmatprep.subr.mxu0 0.0
        %1591 = vmatpush2.msra.mxu0 %v854
        %1592 = vmatprep.subr.mxu0 0.0
        %1593 = vmatpush2.msra.mxu0 %v853
        %1594 = vmatprep.subr.mxu0 0.0
        %1595 = vmatpush2.msra.mxu0 %v852
        %1596 = vmatprep.subr.mxu0 0.0
        %1597 = vmatpush2.msra.mxu0 %v851
        %1598 = vmatprep.subr.mxu0 0.0
        %1599 = vmatpush2.msra.mxu0 %v850
        %1600 = vmatprep.subr.mxu0 0.0
        %1601 = vmatpush2.msra.mxu0 %v849
        %1602 = vmatprep.subr.mxu0 0.0
        %1603 = vmatpush2.msra.mxu0 %v848
        %1604 = vmatprep.subr.mxu0 0.0
        %1605 = vmatpush2.msra.mxu0 %v847
        %1606 = vmatprep.subr.mxu0 0.0
        %1607 = vmatpush2.msra.mxu0 %v846
        %1608 = vmatprep.subr.mxu0 0.0
        %1609 = vmatpush2.msra.mxu0 %v845
        %1610 = vmatprep.subr.mxu0 0.0
        %1611 = vmatpush2.msra.mxu0 %v844
        %1612 = vmatprep.subr.mxu0 0.0
        %1613 = vmatpush2.msra.mxu0 %v843
        %1614 = vmatprep.mubr.f32.mxu0 %v484
        %1615 = vmatmul.mubr.f32.gmra.mxu0 %v375
        %v1616 = vpop.f32.mrf.mxu0
        %v1617 = vadd.f32 %v1392, %v1616
        %v1618 = vpop.f32.mrf.mxu0
        %1619 = vmatprep.mubr.f32.mxu0 %v486
        %1620 = vmatmul.mubr.f32.gmra.mxu0 %v376
        %v1621 = vpop.f32.mrf.mxu0
        %v1622 = vadd.f32 %v1397, %v1621
        %v1623 = vpop.f32.mrf.mxu0
        %1624 = vmatprep.mubr.f32.mxu0 %v489
        %1625 = vmatmul.mubr.f32.gmra.mxu0 %v378
        %v1626 = vpop.f32.mrf.mxu0
        %v1627 = vadd.f32 %v1402, %v1626
        %v1628 = vpop.f32.mrf.mxu0
        %1629 = vmatprep.mubr.f32.mxu0 %v491
        %1630 = vmatmul.mubr.f32.gmra.mxu0 %v379
        %v1631 = vpop.f32.mrf.mxu0
        %v1632 = vadd.f32 %v1407, %v1631
        %v1633 = vpop.f32.mrf.mxu0
        %1634 = vmatprep.mubr.f32.mxu0 %v494
        %1635 = vmatmul.mubr.f32.gmra.mxu0 %v381
        %v1636 = vpop.f32.mrf.mxu0
        %v1637 = vadd.f32 %v1412, %v1636
        %v1638 = vpop.f32.mrf.mxu0
        %1639 = vmatprep.mubr.f32.mxu0 %v496
        %1640 = vmatmul.mubr.f32.gmra.mxu0 %v382
        %v1641 = vpop.f32.mrf.mxu0
        %v1642 = vadd.f32 %v1417, %v1641
        %v1643 = vpop.f32.mrf.mxu0
        %1644 = vmatprep.mubr.f32.mxu0 %v499
        %1645 = vmatmul.mubr.f32.gmra.mxu0 %v384
        %v1646 = vpop.f32.mrf.mxu0
        %v1647 = vadd.f32 %v1422, %v1646
        %v1648 = vpop.f32.mrf.mxu0
        %1649 = vmatprep.mubr.f32.mxu0 %v501
        %1650 = vmatmul.mubr.f32.gmra.mxu0 %v385
        %v1651 = vpop.f32.mrf.mxu0
        %v1652 = vadd.f32 %v1427, %v1651
        %v1653 = vpop.f32.mrf.mxu0
        %1654 = vmatprep.mubr.f32.mxu0 %v504
        %1655 = vmatmul.mubr.f32.gmra.mxu0 %v387
        %v1656 = vpop.f32.mrf.mxu0
        %v1657 = vadd.f32 %v1432, %v1656
        %v1658 = vpop.f32.mrf.mxu0
        %1659 = vmatprep.mubr.f32.mxu0 %v506
        %1660 = vmatmul.mubr.f32.gmra.mxu0 %v388
        %v1661 = vpop.f32.mrf.mxu0
        %v1662 = vadd.f32 %v1437, %v1661
        %v1663 = vpop.f32.mrf.mxu0
        %1664 = vmatprep.mubr.f32.mxu0 %v509
        %1665 = vmatmul.mubr.f32.gmra.mxu0 %v390
        %v1666 = vpop.f32.mrf.mxu0
        %v1667 = vadd.f32 %v1442, %v1666
        %v1668 = vpop.f32.mrf.mxu0
        %1669 = vmatprep.mubr.f32.mxu0 %v511
        %1670 = vmatmul.mubr.f32.gmra.mxu0 %v391
        %v1671 = vpop.f32.mrf.mxu0
        %v1672 = vadd.f32 %v1447, %v1671
        %v1673 = vpop.f32.mrf.mxu0
        %1674 = vmatprep.mubr.f32.mxu0 %v514
        %1675 = vmatmul.mubr.f32.gmra.mxu0 %v393
        %v1676 = vpop.f32.mrf.mxu0
        %v1677 = vadd.f32 %v1452, %v1676
        %v1678 = vpop.f32.mrf.mxu0
        %1679 = vmatprep.mubr.f32.mxu0 %v516
        %1680 = vmatmul.mubr.f32.gmra.mxu0 %v394
        %v1681 = vpop.f32.mrf.mxu0
        %v1682 = vadd.f32 %v1457, %v1681
        %v1683 = vpop.f32.mrf.mxu0
        %1684 = vmatprep.mubr.f32.mxu0 %v519
        %1685 = vmatmul.mubr.f32.gmra.mxu0 %v396
        %v1686 = vpop.f32.mrf.mxu0
        %v1687 = vadd.f32 %v1462, %v1686
        %v1688 = vpop.f32.mrf.mxu0
        %1689 = vmatprep.mubr.f32.mxu0 %v521
        %1690 = vmatmul.mubr.f32.gmra.mxu0 %v397
        %v1691 = vpop.f32.mrf.mxu0
        %v1692 = vadd.f32 %v1467, %v1691
        %v1693 = vpop.f32.mrf.mxu0
        %1694 = vmatprep.mubr.f32.mxu0 %v524
        %1695 = vmatmul.mubr.f32.gmra.mxu0 %v399
        %v1696 = vpop.f32.mrf.mxu0
        %v1697 = vadd.f32 %v1472, %v1696
        %v1698 = vpop.f32.mrf.mxu0
        %1699 = vmatprep.mubr.f32.mxu0 %v526
        %1700 = vmatmul.mubr.f32.gmra.mxu0 %v400
        %v1701 = vpop.f32.mrf.mxu0
        %v1702 = vadd.f32 %v1477, %v1701
        %v1703 = vpop.f32.mrf.mxu0
        %1704 = vmatprep.mubr.f32.mxu0 %v529
        %1705 = vmatmul.mubr.f32.gmra.mxu0 %v402
        %v1706 = vpop.f32.mrf.mxu0
        %v1707 = vadd.f32 %v1482, %v1706
        %v1708 = vpop.f32.mrf.mxu0
        %1709 = vmatprep.mubr.f32.mxu0 %v531
        %1710 = vmatmul.mubr.f32.gmra.mxu0 %v403
        %v1711 = vpop.f32.mrf.mxu0
        %v1712 = vadd.f32 %v1487, %v1711
        %v1713 = vpop.f32.mrf.mxu0
        %1714 = vmatprep.mubr.f32.mxu0 %v534
        %1715 = vmatmul.mubr.f32.gmra.mxu0 %v405
        %v1716 = vpop.f32.mrf.mxu0
        %v1717 = vadd.f32 %v1492, %v1716
        %v1718 = vpop.f32.mrf.mxu0
        %1719 = vmatprep.mubr.f32.mxu0 %v536
        %1720 = vmatmul.mubr.f32.gmra.mxu0 %v406
        %v1721 = vpop.f32.mrf.mxu0
        %v1722 = vadd.f32 %v1497, %v1721
        %v1723 = vpop.f32.mrf.mxu0
        %1724 = vmatprep.mubr.f32.mxu0 %v539
        %1725 = vmatmul.mubr.f32.gmra.mxu0 %v408
        %v1726 = vpop.f32.mrf.mxu0
        %v1727 = vadd.f32 %v1502, %v1726
        %v1728 = vpop.f32.mrf.mxu0
        %1729 = vmatprep.mubr.f32.mxu0 %v541
        %1730 = vmatmul.mubr.f32.gmra.mxu0 %v409
        %v1731 = vpop.f32.mrf.mxu0
        %v1732 = vadd.f32 %v1507, %v1731
        %v1733 = vpop.f32.mrf.mxu0
        %1734 = vmatprep.mubr.f32.mxu0 %v544
        %1735 = vmatmul.mubr.f32.gmra.mxu0 %v411
        %v1736 = vpop.f32.mrf.mxu0
        %v1737 = vadd.f32 %v1512, %v1736
        %v1738 = vpop.f32.mrf.mxu0
        %1739 = vmatprep.mubr.f32.mxu0 %v546
        %1740 = vmatmul.mubr.f32.gmra.mxu0 %v412
        %v1741 = vpop.f32.mrf.mxu0
        %v1742 = vadd.f32 %v1517, %v1741
        %v1743 = vpop.f32.mrf.mxu0
        %1744 = vmatprep.mubr.f32.mxu0 %v549
        %1745 = vmatmul.mubr.f32.gmra.mxu0 %v414
        %v1746 = vpop.f32.mrf.mxu0
        %v1747 = vadd.f32 %v1522, %v1746
        %v1748 = vpop.f32.mrf.mxu0
        %1749 = vmatprep.mubr.f32.mxu0 %v551
        %1750 = vmatmul.mubr.f32.gmra.mxu0 %v415
        %v1751 = vpop.f32.mrf.mxu0
        %v1752 = vadd.f32 %v1527, %v1751
        %v1753 = vpop.f32.mrf.mxu0
        %1754 = vmatprep.mubr.f32.mxu0 %v702
        %1755 = vmatmul.mubr.f32.gmra.mxu0 %v417
        %v1756 = vpop.f32.mrf.mxu0
        %v1757 = vadd.f32 %v1532, %v1756
        %v1758 = vpop.f32.mrf.mxu0
        %1759 = vmatprep.mubr.f32.mxu0 %v704
        %1760 = vmatmul.mubr.f32.gmra.mxu0 %v418
        %v1761 = vpop.f32.mrf.mxu0
        %v1762 = vadd.f32 %v1537, %v1761
        %v1763 = vpop.f32.mrf.mxu0
        %1764 = vmatprep.mubr.f32.mxu0 %v719
        %1765 = vmatmul.mubr.f32.gmra.mxu0 %v420
        %v1766 = vpop.f32.mrf.mxu0
        %v1767 = vadd.f32 %v1542, %v1766
        %v1768 = vpop.f32.mrf.mxu0
        %1769 = vmatprep.mubr.f32.mxu0 %v721
        %1770 = vmatmul.mubr.f32.gmra.mxu0 %v421
        %v1771 = vpop.f32.mrf.mxu0
        %v1772 = vadd.f32 %v1547, %v1771
        %v1773 = vpop.f32.mrf.mxu0
        %1774 = vdwg.mxu0
        %1775 = vmatprep.subr.mxu0 0.0
        %1776 = vmatpush1.msra.mxu0 %v874
        %1777 = vmatprep.subr.mxu0 0.0
        %1778 = vmatpush1.msra.mxu0 %v873
        %1779 = vmatprep.subr.mxu0 0.0
        %1780 = vmatpush1.msra.mxu0 %v872
        %1781 = vmatprep.subr.mxu0 0.0
        %1782 = vmatpush1.msra.mxu0 %v871
        %1783 = vmatprep.subr.mxu0 0.0
        %1784 = vmatpush1.msra.mxu0 %v870
        %1785 = vmatprep.subr.mxu0 0.0
        %1786 = vmatpush1.msra.mxu0 %v869
        %1787 = vmatprep.subr.mxu0 0.0
        %1788 = vmatpush1.msra.mxu0 %v868
        %1789 = vmatprep.subr.mxu0 0.0
        %1790 = vmatpush1.msra.mxu0 %v867
        %1791 = vmatprep.subr.mxu0 0.0
        %1792 = vmatpush1.msra.mxu0 %v866
        %1793 = vmatprep.subr.mxu0 0.0
        %1794 = vmatpush1.msra.mxu0 %v865
        %1795 = vmatprep.subr.mxu0 0.0
        %1796 = vmatpush1.msra.mxu0 %v864
        %1797 = vmatprep.subr.mxu0 0.0
        %1798 = vmatpush1.msra.mxu0 %v863
        %1799 = vmatprep.subr.mxu0 0.0
        %1800 = vmatpush1.msra.mxu0 %v862
        %1801 = vmatprep.subr.mxu0 0.0
        %1802 = vmatpush1.msra.mxu0 %v861
        %1803 = vmatprep.subr.mxu0 0.0
        %1804 = vmatpush1.msra.mxu0 %v860
        %1805 = vmatprep.subr.mxu0 0.0
        %1806 = vmatpush1.msra.mxu0 %v859
        %1807 = vmatprep.subr.mxu0 0.0
        %1808 = vmatpush2.msra.mxu0 0.0
        %1809 = vmatprep.subr.mxu0 0.0
        %1810 = vmatpush2.msra.mxu0 0.0
        %1811 = vmatprep.subr.mxu0 0.0
        %1812 = vmatpush2.msra.mxu0 0.0
        %1813 = vmatprep.subr.mxu0 0.0
        %1814 = vmatpush2.msra.mxu0 0.0
        %1815 = vmatprep.subr.mxu0 0.0
        %1816 = vmatpush2.msra.mxu0 0.0
        %1817 = vmatprep.subr.mxu0 0.0
        %1818 = vmatpush2.msra.mxu0 0.0
        %1819 = vmatprep.subr.mxu0 0.0
        %1820 = vmatpush2.msra.mxu0 0.0
        %1821 = vmatprep.subr.mxu0 0.0
        %1822 = vmatpush2.msra.mxu0 0.0
        %1823 = vmatprep.subr.mxu0 0.0
        %1824 = vmatpush2.msra.mxu0 0.0
        %1825 = vmatprep.subr.mxu0 0.0
        %1826 = vmatpush2.msra.mxu0 0.0
        %1827 = vmatprep.subr.mxu0 0.0
        %1828 = vmatpush2.msra.mxu0 0.0
        %1829 = vmatprep.subr.mxu0 0.0
        %1830 = vmatpush2.msra.mxu0 0.0
        %1831 = vmatprep.subr.mxu0 0.0
        %1832 = vmatpush2.msra.mxu0 0.0
        %1833 = vmatprep.subr.mxu0 0.0
        %1834 = vmatpush2.msra.mxu0 0.0
        %1835 = vmatprep.subr.mxu0 0.0
        %1836 = vmatpush2.msra.mxu0 0.0
        %1837 = vmatprep.subr.mxu0 0.0
        %1838 = vmatpush2.msra.mxu0 0.0
        %1839 = vmatprep.mubr.f32.mxu0 0.0
        %1840 = vmatmul.mubr.f32.gmra.mxu0 %v597
        %v1841 = vpop.f32.mrf.mxu0
        %v1842 = vadd.f32 %v1617, %v1841
        %v1843 = vpop.f32.mrf.mxu0
        %1844 = vmatprep.mubr.f32.mxu0 0.0
        %1845 = vmatmul.mubr.f32.gmra.mxu0 %v599
        %v1846 = vpop.f32.mrf.mxu0
        %v1847 = vadd.f32 %v1622, %v1846
        %v1848 = vpop.f32.mrf.mxu0
        %1849 = vmatprep.mubr.f32.mxu0 0.0
        %1850 = vmatmul.mubr.f32.gmra.mxu0 %v602
        %v1851 = vpop.f32.mrf.mxu0
        %v1852 = vadd.f32 %v1627, %v1851
        %v1853 = vpop.f32.mrf.mxu0
        %1854 = vmatprep.mubr.f32.mxu0 0.0
        %1855 = vmatmul.mubr.f32.gmra.mxu0 %v604
        %v1856 = vpop.f32.mrf.mxu0
        %v1857 = vadd.f32 %v1632, %v1856
        %v1858 = vpop.f32.mrf.mxu0
        %1859 = vmatprep.mubr.f32.mxu0 0.0
        %1860 = vmatmul.mubr.f32.gmra.mxu0 %v607
        %v1861 = vpop.f32.mrf.mxu0
        %v1862 = vadd.f32 %v1637, %v1861
        %v1863 = vpop.f32.mrf.mxu0
        %1864 = vmatprep.mubr.f32.mxu0 0.0
        %1865 = vmatmul.mubr.f32.gmra.mxu0 %v609
        %v1866 = vpop.f32.mrf.mxu0
        %v1867 = vadd.f32 %v1642, %v1866
        %v1868 = vpop.f32.mrf.mxu0
        %1869 = vmatprep.mubr.f32.mxu0 0.0
        %1870 = vmatmul.mubr.f32.gmra.mxu0 %v612
        %v1871 = vpop.f32.mrf.mxu0
        %v1872 = vadd.f32 %v1647, %v1871
        %v1873 = vpop.f32.mrf.mxu0
        %1874 = vmatprep.mubr.f32.mxu0 0.0
        %1875 = vmatmul.mubr.f32.gmra.mxu0 %v614
        %v1876 = vpop.f32.mrf.mxu0
        %v1877 = vadd.f32 %v1652, %v1876
        %v1878 = vpop.f32.mrf.mxu0
        %1879 = vmatprep.mubr.f32.mxu0 0.0
        %1880 = vmatmul.mubr.f32.gmra.mxu0 %v617
        %v1881 = vpop.f32.mrf.mxu0
        %v1882 = vadd.f32 %v1657, %v1881
        %v1883 = vpop.f32.mrf.mxu0
        %1884 = vmatprep.mubr.f32.mxu0 0.0
        %1885 = vmatmul.mubr.f32.gmra.mxu0 %v619
        %v1886 = vpop.f32.mrf.mxu0
        %v1887 = vadd.f32 %v1662, %v1886
        %v1888 = vpop.f32.mrf.mxu0
        %1889 = vmatprep.mubr.f32.mxu0 0.0
        %1890 = vmatmul.mubr.f32.gmra.mxu0 %v622
        %v1891 = vpop.f32.mrf.mxu0
        %v1892 = vadd.f32 %v1667, %v1891
        %v1893 = vpop.f32.mrf.mxu0
        %1894 = vmatprep.mubr.f32.mxu0 0.0
        %1895 = vmatmul.mubr.f32.gmra.mxu0 %v624
        %v1896 = vpop.f32.mrf.mxu0
        %v1897 = vadd.f32 %v1672, %v1896
        %v1898 = vpop.f32.mrf.mxu0
        %1899 = vmatprep.mubr.f32.mxu0 0.0
        %1900 = vmatmul.mubr.f32.gmra.mxu0 %v627
        %v1901 = vpop.f32.mrf.mxu0
        %v1902 = vadd.f32 %v1677, %v1901
        %v1903 = vpop.f32.mrf.mxu0
        %1904 = vmatprep.mubr.f32.mxu0 0.0
        %1905 = vmatmul.mubr.f32.gmra.mxu0 %v629
        %v1906 = vpop.f32.mrf.mxu0
        %v1907 = vadd.f32 %v1682, %v1906
        %v1908 = vpop.f32.mrf.mxu0
        %1909 = vmatprep.mubr.f32.mxu0 0.0
        %1910 = vmatmul.mubr.f32.gmra.mxu0 %v632
        %v1911 = vpop.f32.mrf.mxu0
        %v1912 = vadd.f32 %v1687, %v1911
        %v1913 = vpop.f32.mrf.mxu0
        %1914 = vmatprep.mubr.f32.mxu0 0.0
        %1915 = vmatmul.mubr.f32.gmra.mxu0 %v634
        %v1916 = vpop.f32.mrf.mxu0
        %v1917 = vadd.f32 %v1692, %v1916
        %v1918 = vpop.f32.mrf.mxu0
        %1919 = vmatprep.mubr.f32.mxu0 0.0
        %1920 = vmatmul.mubr.f32.gmra.mxu0 %v637
        %v1921 = vpop.f32.mrf.mxu0
        %v1922 = vadd.f32 %v1697, %v1921
        %v1923 = vpop.f32.mrf.mxu0
        %1924 = vmatprep.mubr.f32.mxu0 0.0
        %1925 = vmatmul.mubr.f32.gmra.mxu0 %v639
        %v1926 = vpop.f32.mrf.mxu0
        %v1927 = vadd.f32 %v1702, %v1926
        %v1928 = vpop.f32.mrf.mxu0
        %1929 = vmatprep.mubr.f32.mxu0 0.0
        %1930 = vmatmul.mubr.f32.gmra.mxu0 %v642
        %v1931 = vpop.f32.mrf.mxu0
        %v1932 = vadd.f32 %v1707, %v1931
        %v1933 = vpop.f32.mrf.mxu0
        %1934 = vmatprep.mubr.f32.mxu0 0.0
        %1935 = vmatmul.mubr.f32.gmra.mxu0 %v644
        %v1936 = vpop.f32.mrf.mxu0
        %v1937 = vadd.f32 %v1712, %v1936
        %v1938 = vpop.f32.mrf.mxu0
        %1939 = vmatprep.mubr.f32.mxu0 0.0
        %1940 = vmatmul.mubr.f32.gmra.mxu0 %v647
        %v1941 = vpop.f32.mrf.mxu0
        %v1942 = vadd.f32 %v1717, %v1941
        %v1943 = vpop.f32.mrf.mxu0
        %1944 = vmatprep.mubr.f32.mxu0 0.0
        %1945 = vmatmul.mubr.f32.gmra.mxu0 %v649
        %v1946 = vpop.f32.mrf.mxu0
        %v1947 = vadd.f32 %v1722, %v1946
        %v1948 = vpop.f32.mrf.mxu0
        %1949 = vmatprep.mubr.f32.mxu0 0.0
        %1950 = vmatmul.mubr.f32.gmra.mxu0 %v652
        %v1951 = vpop.f32.mrf.mxu0
        %v1952 = vadd.f32 %v1727, %v1951
        %v1953 = vpop.f32.mrf.mxu0
        %1954 = vmatprep.mubr.f32.mxu0 0.0
        %1955 = vmatmul.mubr.f32.gmra.mxu0 %v654
        %v1956 = vpop.f32.mrf.mxu0
        %v1957 = vadd.f32 %v1732, %v1956
        %v1958 = vpop.f32.mrf.mxu0
        %1959 = vmatprep.mubr.f32.mxu0 0.0
        %1960 = vmatmul.mubr.f32.gmra.mxu0 %v657
        %v1961 = vpop.f32.mrf.mxu0
        %v1962 = vadd.f32 %v1737, %v1961
        %v1963 = vpop.f32.mrf.mxu0
        %1964 = vmatprep.mubr.f32.mxu0 0.0
        %1965 = vmatmul.mubr.f32.gmra.mxu0 %v659
        %v1966 = vpop.f32.mrf.mxu0
        %v1967 = vadd.f32 %v1742, %v1966
        %v1968 = vpop.f32.mrf.mxu0
        %1969 = vmatprep.mubr.f32.mxu0 0.0
        %1970 = vmatmul.mubr.f32.gmra.mxu0 %v662
        %v1971 = vpop.f32.mrf.mxu0
        %v1972 = vadd.f32 %v1747, %v1971
        %v1973 = vpop.f32.mrf.mxu0
        %1974 = vmatprep.mubr.f32.mxu0 0.0
        %1975 = vmatmul.mubr.f32.gmra.mxu0 %v664
        %v1976 = vpop.f32.mrf.mxu0
        %v1977 = vadd.f32 %v1752, %v1976
        %v1978 = vpop.f32.mrf.mxu0
        %1979 = vmatprep.mubr.f32.mxu0 0.0
        %1980 = vmatmul.mubr.f32.gmra.mxu0 %v709
        %v1981 = vpop.f32.mrf.mxu0
        %v1982 = vadd.f32 %v1757, %v1981
        %v1983 = vpop.f32.mrf.mxu0
        %1984 = vmatprep.mubr.f32.mxu0 0.0
        %1985 = vmatmul.mubr.f32.gmra.mxu0 %v711
        %v1986 = vpop.f32.mrf.mxu0
        %v1987 = vadd.f32 %v1762, %v1986
        %v1988 = vpop.f32.mrf.mxu0
        %1989 = vmatprep.mubr.f32.mxu0 0.0
        %1990 = vmatmul.mubr.f32.gmra.mxu0 %v726
        %v1991 = vpop.f32.mrf.mxu0
        %v1992 = vadd.f32 %v1767, %v1991
        %v1993 = vpop.f32.mrf.mxu0
        %1994 = vmatprep.mubr.f32.mxu0 0.0
        %1995 = vmatmul.mubr.f32.gmra.mxu0 %v728
        %v1996 = vpop.f32.mrf.mxu0
        %v1997 = vadd.f32 %v1772, %v1996
        %v1998 = vpop.f32.mrf.mxu0
        %1999 = vdwg.mxu0
        %v2000 = vmax.f32 %v1842, 0.0
        %v2001 = vmax.f32 %v1847, 0.0
        %v2002 = vmax.f32 %v1852, 0.0
        %v2003 = vmax.f32 %v1857, 0.0
        %v2004 = vmax.f32 %v1862, 0.0
        %v2005 = vmax.f32 %v1867, 0.0
        %v2006 = vmax.f32 %v1872, 0.0
        %v2007 = vmax.f32 %v1877, 0.0
        %v2008 = vmax.f32 %v1882, 0.0
        %v2009 = vmax.f32 %v1887, 0.0
        %v2010 = vmax.f32 %v1892, 0.0
        %v2011 = vmax.f32 %v1897, 0.0
        %v2012 = vmax.f32 %v1902, 0.0
        %v2013 = vmax.f32 %v1907, 0.0
        %v2014 = vmax.f32 %v1912, 0.0
        %v2015 = vmax.f32 %v1917, 0.0
        %v2016 = vmax.f32 %v1922, 0.0
        %v2017 = vmax.f32 %v1927, 0.0
        %v2018 = vmax.f32 %v1932, 0.0
        %v2019 = vmax.f32 %v1937, 0.0
        %v2020 = vmax.f32 %v1942, 0.0
        %v2021 = vmax.f32 %v1947, 0.0
        %v2022 = vmax.f32 %v1952, 0.0
        %v2023 = vmax.f32 %v1957, 0.0
        %v2024 = vmax.f32 %v1962, 0.0
        %v2025 = vmax.f32 %v1967, 0.0
        %v2026 = vmax.f32 %v1972, 0.0
        %v2027 = vmax.f32 %v1977, 0.0
        %v2028 = vmax.f32 %v1982, 0.0
        %v2029 = vmax.f32 %v1987, 0.0
        %v2030 = vmax.f32 %v1992, 0.0
        %v2031 = vmax.f32 %v1997, 0.0
        %v2032 = vld [vmem:[#allocation8] sm:$0xff]
        %v2033 = vld [vmem:[#allocation8 + $0x8] sm:$0xff]
        %v2034 = vld [vmem:[#allocation8 + $0x10] sm:$0xff]
        %v2035 = vld [vmem:[#allocation8 + $0x18] sm:$0xff]
        %v2036 = vld [vmem:[#allocation8 + $0x20] sm:$0xff]
        %v2037 = vld [vmem:[#allocation8 + $0x28] sm:$0xff]
        %v2038 = vld [vmem:[#allocation8 + $0x30] sm:$0xff]
        %v2039 = vld [vmem:[#allocation8 + $0x38] sm:$0xff]
        %v2040 = vld [vmem:[#allocation8 + $0x40] sm:$0xff]
        %v2041 = vld [vmem:[#allocation8 + $0x48] sm:$0xff]
        %v2042 = vld [vmem:[#allocation8 + $0x50] sm:$0xff]
        %v2043 = vld [vmem:[#allocation8 + $0x58] sm:$0xff]
        %v2044 = vld [vmem:[#allocation8 + $0x60] sm:$0xff]
        %v2045 = vld [vmem:[#allocation8 + $0x68] sm:$0xff]
        %v2046 = vld [vmem:[#allocation8 + $0x70] sm:$0xff]
        %v2047 = vld [vmem:[#allocation8 + $0x78] sm:$0xff]
        %2048 = vmatprep.subr.mxu0 0.0
        %2049 = vmatpush1.msra.mxu0 %v2047
        %2050 = vmatprep.subr.mxu0 0.0
        %2051 = vmatpush1.msra.mxu0 %v2046
        %2052 = vmatprep.subr.mxu0 0.0
        %2053 = vmatpush1.msra.mxu0 %v2045
        %2054 = vmatprep.subr.mxu0 0.0
        %2055 = vmatpush1.msra.mxu0 %v2044
        %2056 = vmatprep.subr.mxu0 0.0
        %2057 = vmatpush1.msra.mxu0 %v2043
        %2058 = vmatprep.subr.mxu0 0.0
        %2059 = vmatpush1.msra.mxu0 %v2042
        %2060 = vmatprep.subr.mxu0 0.0
        %2061 = vmatpush1.msra.mxu0 %v2041
        %2062 = vmatprep.subr.mxu0 0.0
        %2063 = vmatpush1.msra.mxu0 %v2040
        %2064 = vmatprep.subr.mxu0 0.0
        %2065 = vmatpush1.msra.mxu0 %v2039
        %2066 = vmatprep.subr.mxu0 0.0
        %2067 = vmatpush1.msra.mxu0 %v2038
        %2068 = vmatprep.subr.mxu0 0.0
        %2069 = vmatpush1.msra.mxu0 %v2037
        %2070 = vmatprep.subr.mxu0 0.0
        %2071 = vmatpush1.msra.mxu0 %v2036
        %2072 = vmatprep.subr.mxu0 0.0
        %2073 = vmatpush1.msra.mxu0 %v2035
        %2074 = vmatprep.subr.mxu0 0.0
        %2075 = vmatpush1.msra.mxu0 %v2034
        %2076 = vmatprep.subr.mxu0 0.0
        %2077 = vmatpush1.msra.mxu0 %v2033
        %2078 = vmatprep.subr.mxu0 0.0
        %2079 = vmatpush1.msra.mxu0 %v2032
        %2080 = vmatprep.subr.mxu0 0.0
        %2081 = vmatpush2.msra.mxu0 0.0
        %2082 = vmatprep.subr.mxu0 0.0
        %2083 = vmatpush2.msra.mxu0 0.0
        %2084 = vmatprep.subr.mxu0 0.0
        %2085 = vmatpush2.msra.mxu0 0.0
        %2086 = vmatprep.subr.mxu0 0.0
        %2087 = vmatpush2.msra.mxu0 0.0
        %2088 = vmatprep.subr.mxu0 0.0
        %2089 = vmatpush2.msra.mxu0 0.0
        %2090 = vmatprep.subr.mxu0 0.0
        %2091 = vmatpush2.msra.mxu0 0.0
        %2092 = vmatprep.subr.mxu0 0.0
        %2093 = vmatpush2.msra.mxu0 0.0
        %2094 = vmatprep.subr.mxu0 0.0
        %2095 = vmatpush2.msra.mxu0 0.0
        %2096 = vmatprep.subr.mxu0 0.0
        %2097 = vmatpush2.msra.mxu0 0.0
        %2098 = vmatprep.subr.mxu0 0.0
        %2099 = vmatpush2.msra.mxu0 0.0
        %2100 = vmatprep.subr.mxu0 0.0
        %2101 = vmatpush2.msra.mxu0 0.0
        %2102 = vmatprep.subr.mxu0 0.0
        %2103 = vmatpush2.msra.mxu0 0.0
        %2104 = vmatprep.subr.mxu0 0.0
        %2105 = vmatpush2.msra.mxu0 0.0
        %2106 = vmatprep.subr.mxu0 0.0
        %2107 = vmatpush2.msra.mxu0 0.0
        %2108 = vmatprep.subr.mxu0 0.0
        %2109 = vmatpush2.msra.mxu0 0.0
        %2110 = vmatprep.subr.mxu0 0.0
        %2111 = vmatpush2.msra.mxu0 0.0
        %2112 = vmatprep.mubr.f32.mxu0 0.0
        %2113 = vmatmul.mubr.f32.gmra.mxu0 %v2000
        %v2114 = vpop.f32.mrf.mxu0
        %v2115 = vadd.f32 0.0, %v2114
        %v2116 = vpop.f32.mrf.mxu0
        %2117 = vmatprep.mubr.f32.mxu0 0.0
        %2118 = vmatmul.mubr.f32.gmra.mxu0 %v2001
        %v2119 = vpop.f32.mrf.mxu0
        %v2120 = vadd.f32 0.0, %v2119
        %v2121 = vpop.f32.mrf.mxu0
        %2122 = vmatprep.mubr.f32.mxu0 0.0
        %2123 = vmatmul.mubr.f32.gmra.mxu0 %v2002
        %v2124 = vpop.f32.mrf.mxu0
        %v2125 = vadd.f32 0.0, %v2124
        %v2126 = vpop.f32.mrf.mxu0
        %2127 = vmatprep.mubr.f32.mxu0 0.0
        %2128 = vmatmul.mubr.f32.gmra.mxu0 %v2003
        %v2129 = vpop.f32.mrf.mxu0
        %v2130 = vadd.f32 0.0, %v2129
        %v2131 = vpop.f32.mrf.mxu0
        %2132 = vmatprep.mubr.f32.mxu0 0.0
        %2133 = vmatmul.mubr.f32.gmra.mxu0 %v2004
        %v2134 = vpop.f32.mrf.mxu0
        %v2135 = vadd.f32 0.0, %v2134
        %v2136 = vpop.f32.mrf.mxu0
        %2137 = vmatprep.mubr.f32.mxu0 0.0
        %2138 = vmatmul.mubr.f32.gmra.mxu0 %v2005
        %v2139 = vpop.f32.mrf.mxu0
        %v2140 = vadd.f32 0.0, %v2139
        %v2141 = vpop.f32.mrf.mxu0
        %2142 = vmatprep.mubr.f32.mxu0 0.0
        %2143 = vmatmul.mubr.f32.gmra.mxu0 %v2006
        %v2144 = vpop.f32.mrf.mxu0
        %v2145 = vadd.f32 0.0, %v2144
        %v2146 = vpop.f32.mrf.mxu0
        %2147 = vmatprep.mubr.f32.mxu0 0.0
        %2148 = vmatmul.mubr.f32.gmra.mxu0 %v2007
        %v2149 = vpop.f32.mrf.mxu0
        %v2150 = vadd.f32 0.0, %v2149
        %v2151 = vpop.f32.mrf.mxu0
        %2152 = vmatprep.mubr.f32.mxu0 0.0
        %2153 = vmatmul.mubr.f32.gmra.mxu0 %v2008
        %v2154 = vpop.f32.mrf.mxu0
        %v2155 = vadd.f32 0.0, %v2154
        %v2156 = vpop.f32.mrf.mxu0
        %2157 = vmatprep.mubr.f32.mxu0 0.0
        %2158 = vmatmul.mubr.f32.gmra.mxu0 %v2009
        %v2159 = vpop.f32.mrf.mxu0
        %v2160 = vadd.f32 0.0, %v2159
        %v2161 = vpop.f32.mrf.mxu0
        %2162 = vmatprep.mubr.f32.mxu0 0.0
        %2163 = vmatmul.mubr.f32.gmra.mxu0 %v2010
        %v2164 = vpop.f32.mrf.mxu0
        %v2165 = vadd.f32 0.0, %v2164
        %v2166 = vpop.f32.mrf.mxu0
        %2167 = vmatprep.mubr.f32.mxu0 0.0
        %2168 = vmatmul.mubr.f32.gmra.mxu0 %v2011
        %v2169 = vpop.f32.mrf.mxu0
        %v2170 = vadd.f32 0.0, %v2169
        %v2171 = vpop.f32.mrf.mxu0
        %2172 = vmatprep.mubr.f32.mxu0 0.0
        %2173 = vmatmul.mubr.f32.gmra.mxu0 %v2012
        %v2174 = vpop.f32.mrf.mxu0
        %v2175 = vadd.f32 0.0, %v2174
        %v2176 = vpop.f32.mrf.mxu0
        %2177 = vmatprep.mubr.f32.mxu0 0.0
        %2178 = vmatmul.mubr.f32.gmra.mxu0 %v2013
        %v2179 = vpop.f32.mrf.mxu0
        %v2180 = vadd.f32 0.0, %v2179
        %v2181 = vpop.f32.mrf.mxu0
        %2182 = vmatprep.mubr.f32.mxu0 0.0
        %2183 = vmatmul.mubr.f32.gmra.mxu0 %v2014
        %v2184 = vpop.f32.mrf.mxu0
        %v2185 = vadd.f32 0.0, %v2184
        %v2186 = vpop.f32.mrf.mxu0
        %2187 = vmatprep.mubr.f32.mxu0 0.0
        %2188 = vmatmul.mubr.f32.gmra.mxu0 %v2015
        %v2189 = vpop.f32.mrf.mxu0
        %v2190 = vadd.f32 0.0, %v2189
        %v2191 = vpop.f32.mrf.mxu0
        %2192 = vmatprep.mubr.f32.mxu0 0.0
        %2193 = vmatmul.mubr.f32.gmra.mxu0 %v2016
        %v2194 = vpop.f32.mrf.mxu0
        %v2195 = vadd.f32 0.0, %v2194
        %v2196 = vpop.f32.mrf.mxu0
        %2197 = vmatprep.mubr.f32.mxu0 0.0
        %2198 = vmatmul.mubr.f32.gmra.mxu0 %v2017
        %v2199 = vpop.f32.mrf.mxu0
        %v2200 = vadd.f32 0.0, %v2199
        %v2201 = vpop.f32.mrf.mxu0
        %2202 = vmatprep.mubr.f32.mxu0 0.0
        %2203 = vmatmul.mubr.f32.gmra.mxu0 %v2018
        %v2204 = vpop.f32.mrf.mxu0
        %v2205 = vadd.f32 0.0, %v2204
        %v2206 = vpop.f32.mrf.mxu0
        %2207 = vmatprep.mubr.f32.mxu0 0.0
        %2208 = vmatmul.mubr.f32.gmra.mxu0 %v2019
        %v2209 = vpop.f32.mrf.mxu0
        %v2210 = vadd.f32 0.0, %v2209
        %v2211 = vpop.f32.mrf.mxu0
        %2212 = vmatprep.mubr.f32.mxu0 0.0
        %2213 = vmatmul.mubr.f32.gmra.mxu0 %v2020
        %v2214 = vpop.f32.mrf.mxu0
        %v2215 = vadd.f32 0.0, %v2214
        %v2216 = vpop.f32.mrf.mxu0
        %2217 = vmatprep.mubr.f32.mxu0 0.0
        %2218 = vmatmul.mubr.f32.gmra.mxu0 %v2021
        %v2219 = vpop.f32.mrf.mxu0
        %v2220 = vadd.f32 0.0, %v2219
        %v2221 = vpop.f32.mrf.mxu0
        %2222 = vmatprep.mubr.f32.mxu0 0.0
        %2223 = vmatmul.mubr.f32.gmra.mxu0 %v2022
        %v2224 = vpop.f32.mrf.mxu0
        %v2225 = vadd.f32 0.0, %v2224
        %v2226 = vpop.f32.mrf.mxu0
        %2227 = vmatprep.mubr.f32.mxu0 0.0
        %2228 = vmatmul.mubr.f32.gmra.mxu0 %v2023
        %v2229 = vpop.f32.mrf.mxu0
        %v2230 = vadd.f32 0.0, %v2229
        %v2231 = vpop.f32.mrf.mxu0
        %2232 = vmatprep.mubr.f32.mxu0 0.0
        %2233 = vmatmul.mubr.f32.gmra.mxu0 %v2024
        %v2234 = vpop.f32.mrf.mxu0
        %v2235 = vadd.f32 0.0, %v2234
        %v2236 = vpop.f32.mrf.mxu0
        %2237 = vmatprep.mubr.f32.mxu0 0.0
        %2238 = vmatmul.mubr.f32.gmra.mxu0 %v2025
        %v2239 = vpop.f32.mrf.mxu0
        %v2240 = vadd.f32 0.0, %v2239
        %v2241 = vpop.f32.mrf.mxu0
        %2242 = vmatprep.mubr.f32.mxu0 0.0
        %2243 = vmatmul.mubr.f32.gmra.mxu0 %v2026
        %v2244 = vpop.f32.mrf.mxu0
        %v2245 = vadd.f32 0.0, %v2244
        %v2246 = vpop.f32.mrf.mxu0
        %2247 = vmatprep.mubr.f32.mxu0 0.0
        %2248 = vmatmul.mubr.f32.gmra.mxu0 %v2027
        %v2249 = vpop.f32.mrf.mxu0
        %v2250 = vadd.f32 0.0, %v2249
        %v2251 = vpop.f32.mrf.mxu0
        %2252 = vmatprep.mubr.f32.mxu0 0.0
        %2253 = vmatmul.mubr.f32.gmra.mxu0 %v2028
        %v2254 = vpop.f32.mrf.mxu0
        %v2255 = vadd.f32 0.0, %v2254
        %v2256 = vpop.f32.mrf.mxu0
        %2257 = vmatprep.mubr.f32.mxu0 0.0
        %2258 = vmatmul.mubr.f32.gmra.mxu0 %v2029
        %v2259 = vpop.f32.mrf.mxu0
        %v2260 = vadd.f32 0.0, %v2259
        %v2261 = vpop.f32.mrf.mxu0
        %2262 = vmatprep.mubr.f32.mxu0 0.0
        %2263 = vmatmul.mubr.f32.gmra.mxu0 %v2030
        %v2264 = vpop.f32.mrf.mxu0
        %v2265 = vadd.f32 0.0, %v2264
        %v2266 = vpop.f32.mrf.mxu0
        %2267 = vmatprep.mubr.f32.mxu0 0.0
        %2268 = vmatmul.mubr.f32.gmra.mxu0 %v2031
        %v2269 = vpop.f32.mrf.mxu0
        %v2270 = vadd.f32 0.0, %v2269
        %v2271 = vpop.f32.mrf.mxu0
        %2272 = vdwg.mxu0
        %v2273 = vadd.f32 %v272, %v2115
        %v2274 = vadd.f32 %v273, %v2120
        %v2275 = vadd.f32 %v274, %v2125
        %v2276 = vadd.f32 %v275, %v2130
        %v2277 = vadd.f32 %v276, %v2135
        %v2278 = vadd.f32 %v277, %v2140
        %v2279 = vadd.f32 %v278, %v2145
        %v2280 = vadd.f32 %v279, %v2150
        %v2281 = vadd.f32 %v280, %v2155
        %v2282 = vadd.f32 %v281, %v2160
        %v2283 = vadd.f32 %v282, %v2165
        %v2284 = vadd.f32 %v283, %v2170
        %v2285 = vadd.f32 %v284, %v2175
        %v2286 = vadd.f32 %v285, %v2180
        %v2287 = vadd.f32 %v286, %v2185
        %v2288 = vadd.f32 %v287, %v2190
        %v2289 = vadd.f32 %v288, %v2195
        %v2290 = vadd.f32 %v289, %v2200
        %v2291 = vadd.f32 %v290, %v2205
        %v2292 = vadd.f32 %v291, %v2210
        %v2293 = vadd.f32 %v292, %v2215
        %v2294 = vadd.f32 %v293, %v2220
        %v2295 = vadd.f32 %v294, %v2225
        %v2296 = vadd.f32 %v295, %v2230
        %v2297 = vadd.f32 %v296, %v2235
        %v2298 = vadd.f32 %v297, %v2240
        %v2299 = vadd.f32 %v298, %v2245
        %v2300 = vadd.f32 %v299, %v2250
        %v2301 = vadd.f32 %v300, %v2255
        %v2302 = vadd.f32 %v301, %v2260
        %v2303 = vadd.f32 %v302, %v2265
        %v2304 = vadd.f32 %v303, %v2270
        %v2305 = vmax.f32 %v2273, 0.0
        %v2306 = vmax.f32 %v2274, 0.0
        %v2307 = vmax.f32 %v2275, 0.0
        %v2308 = vmax.f32 %v2276, 0.0
        %v2309 = vmax.f32 %v2277, 0.0
        %v2310 = vmax.f32 %v2278, 0.0
        %v2311 = vmax.f32 %v2279, 0.0
        %v2312 = vmax.f32 %v2280, 0.0
        %v2313 = vmax.f32 %v2281, 0.0
        %v2314 = vmax.f32 %v2282, 0.0
        %v2315 = vmax.f32 %v2283, 0.0
        %v2316 = vmax.f32 %v2284, 0.0
        %v2317 = vmax.f32 %v2285, 0.0
        %v2318 = vmax.f32 %v2286, 0.0
        %v2319 = vmax.f32 %v2287, 0.0
        %v2320 = vmax.f32 %v2288, 0.0
        %v2321 = vmax.f32 %v2289, 0.0
        %v2322 = vmax.f32 %v2290, 0.0
        %v2323 = vmax.f32 %v2291, 0.0
        %v2324 = vmax.f32 %v2292, 0.0
        %v2325 = vmax.f32 %v2293, 0.0
        %v2326 = vmax.f32 %v2294, 0.0
        %v2327 = vmax.f32 %v2295, 0.0
        %v2328 = vmax.f32 %v2296, 0.0
        %v2329 = vmax.f32 %v2297, 0.0
        %v2330 = vmax.f32 %v2298, 0.0
        %v2331 = vmax.f32 %v2299, 0.0
        %v2332 = vmax.f32 %v2300, 0.0
        %v2333 = vmax.f32 %v2301, 0.0
        %v2334 = vmax.f32 %v2302, 0.0
        %v2335 = vmax.f32 %v2303, 0.0
        %v2336 = vmax.f32 %v2304, 0.0
        %2337 = vst [vmem:[%s336 + $0x1] sm:$0xff] %v2305
        %2338 = vst [vmem:[%s336 + $0x9] sm:$0xff] %v2306
        %2339 = vst [vmem:[%s336 + $0x19] sm:$0xff] %v2307
        %2340 = vst [vmem:[%s336 + $0x21] sm:$0xff] %v2308
        %2341 = vst [vmem:[%s336 + $0x31] sm:$0xff] %v2309
        %2342 = vst [vmem:[%s336 + $0x39] sm:$0xff] %v2310
        %2343 = vst [vmem:[%s336 + $0x49] sm:$0xff] %v2311
        %2344 = vst [vmem:[%s336 + $0x51] sm:$0xff] %v2312
        %2345 = vst [vmem:[%s336 + $0x61] sm:$0xff] %v2313
        %2346 = vst [vmem:[%s336 + $0x69] sm:$0xff] %v2314
        %2347 = vst [vmem:[%s336 + $0x79] sm:$0xff] %v2315
        %2348 = vst [vmem:[%s336 + $0x81] sm:$0xff] %v2316
        %2349 = vst [vmem:[%s336 + $0x91] sm:$0xff] %v2317
        %2350 = vst [vmem:[%s336 + $0x99] sm:$0xff] %v2318
        %2351 = vst [vmem:[%s336 + $0xa9] sm:$0xff] %v2319
        %2352 = vst [vmem:[%s336 + $0xb1] sm:$0xff] %v2320
        %2353 = vst [vmem:[%s336 + $0xc1] sm:$0xff] %v2321
        %2354 = vst [vmem:[%s336 + $0xc9] sm:$0xff] %v2322
        %2355 = vst [vmem:[%s336 + $0xd9] sm:$0xff] %v2323
        %2356 = vst [vmem:[%s336 + $0xe1] sm:$0xff] %v2324
        %2357 = vst [vmem:[%s336 + $0xf1] sm:$0xff] %v2325
        %2358 = vst [vmem:[%s336 + $0xf9] sm:$0xff] %v2326
        %2359 = vst [vmem:[%s336 + $0x109] sm:$0xff] %v2327
        %2360 = vst [vmem:[%s336 + $0x111] sm:$0xff] %v2328
        %2361 = vst [vmem:[%s336 + $0x121] sm:$0xff] %v2329
        %2362 = vst [vmem:[%s336 + $0x129] sm:$0xff] %v2330
        %2363 = vst [vmem:[%s336 + $0x139] sm:$0xff] %v2331
        %2364 = vst [vmem:[%s336 + $0x141] sm:$0xff] %v2332
        %2365 = vst [vmem:[%s336 + $0x151] sm:$0xff] %v2333
        %2366 = vst [vmem:[%s336 + $0x159] sm:$0xff] %v2334
        %2367 = vst [vmem:[%s336 + $0x169] sm:$0xff] %v2335
        %2368 = vst [vmem:[%s336 + $0x171] sm:$0xff] %v2336
        %v2369 = vld [vmem:[#allocation2] sm:$0xff]
        %v2370 = vld [vmem:[#allocation2 + $0x8] sm:$0xff]
        %v2371 = vld [vmem:[#allocation2 + $0x10] sm:$0x3]
        %v2372 = vld [vmem:[#allocation2 + $0x18] sm:$0xff]
        %v2373 = vld [vmem:[#allocation2 + $0x20] sm:$0xff]
        %v2374 = vld [vmem:[#allocation2 + $0x28] sm:$0x3]
        %v2375 = vld [vmem:[#allocation2 + $0x30] sm:$0xff]
        %v2376 = vld [vmem:[#allocation2 + $0x38] sm:$0xff]
        %v2377 = vld [vmem:[#allocation2 + $0x40] sm:$0x3]
        %v2378 = vld [vmem:[#allocation2 + $0x48] sm:$0xff]
        %v2379 = vld [vmem:[#allocation2 + $0x50] sm:$0xff]
        %v2380 = vld [vmem:[#allocation2 + $0x58] sm:$0x3]
        %v2381 = vld [vmem:[#allocation2 + $0x60] sm:$0xff]
        %v2382 = vld [vmem:[#allocation2 + $0x68] sm:$0xff]
        %v2383 = vld [vmem:[#allocation2 + $0x70] sm:$0x3]
        %v2384 = vld [vmem:[#allocation2 + $0x78] sm:$0xff]
        %v2385 = vld [vmem:[#allocation2 + $0x80] sm:$0xff]
        %v2386 = vld [vmem:[#allocation2 + $0x88] sm:$0x3]
        %v2387 = vld [vmem:[#allocation2 + $0x90] sm:$0xff]
        %v2388 = vld [vmem:[#allocation2 + $0x98] sm:$0xff]
        %v2389 = vld [vmem:[#allocation2 + $0xa0] sm:$0x3]
        %v2390 = vld [vmem:[#allocation2 + $0xa8] sm:$0xff]
        %v2391 = vld [vmem:[#allocation2 + $0xb0] sm:$0xff]
        %v2392 = vld [vmem:[#allocation2 + $0xb8] sm:$0x3]
        %v2393 = vld [vmem:[#allocation2 + $0xc0] sm:$0xff]
        %v2394 = vld [vmem:[#allocation2 + $0xc8] sm:$0xff]
        %v2395 = vld [vmem:[#allocation2 + $0xd0] sm:$0x3]
        %v2396 = vld [vmem:[#allocation2 + $0xd8] sm:$0xff]
        %v2397 = vld [vmem:[#allocation2 + $0xe0] sm:$0xff]
        %v2398 = vld [vmem:[#allocation2 + $0xe8] sm:$0x3]
        %v2399 = vld [vmem:[#allocation2 + $0xf0] sm:$0xff]
        %v2400 = vld [vmem:[#allocation2 + $0xf8] sm:$0xff]
        %v2401 = vld [vmem:[#allocation2 + $0x100] sm:$0x3]
        %v2402 = vld [vmem:[#allocation2 + $0x108] sm:$0xff]
        %v2403 = vld [vmem:[#allocation2 + $0x110] sm:$0xff]
        %v2404 = vld [vmem:[#allocation2 + $0x118] sm:$0x3]
        %v2405 = vld [vmem:[#allocation2 + $0x120] sm:$0xff]
        %v2406 = vld [vmem:[#allocation2 + $0x128] sm:$0xff]
        %v2407 = vld [vmem:[#allocation2 + $0x130] sm:$0x3]
        %v2408 = vld [vmem:[#allocation2 + $0x138] sm:$0xff]
        %v2409 = vld [vmem:[#allocation2 + $0x140] sm:$0xff]
        %v2410 = vld [vmem:[#allocation2 + $0x148] sm:$0x3]
        %v2411 = vld [vmem:[#allocation2 + $0x150] sm:$0xff]
        %v2412 = vld [vmem:[#allocation2 + $0x158] sm:$0xff]
        %v2413 = vld [vmem:[#allocation2 + $0x160] sm:$0x3]
        %v2414 = vld [vmem:[#allocation2 + $0x168] sm:$0xff]
        %v2415 = vld [vmem:[#allocation2 + $0x170] sm:$0xff]
        %v2416 = vld [vmem:[#allocation2 + $0x178] sm:$0x3]
        %v2417 = vld [vmem:[#allocation2 + $0x180] sm:$0xff]
        %v2418 = vld [vmem:[#allocation2 + $0x188] sm:$0xff]
        %v2419 = vld [vmem:[#allocation2 + $0x190] sm:$0x3]
        %v2420 = vld [vmem:[#allocation2 + $0x198] sm:$0xff]
        %v2421 = vld [vmem:[#allocation2 + $0x1a0] sm:$0xff]
        %v2422 = vld [vmem:[#allocation2 + $0x1a8] sm:$0x3]
        %v2471 = vrot.slane %v2369, 1
        %v2472 = vrot.slane %v2370, 1
        %v2473 = vsel %vm471, %v2471, %v2472
        %v2474 = vrot.slane %v2371, 1
        %v2475 = vsel %vm471, %v2472, %v2474
        %v2476 = vrot.slane %v2372, 1
        %v2477 = vrot.slane %v2373, 1
        %v2478 = vsel %vm471, %v2476, %v2477
        %v2479 = vrot.slane %v2374, 1
        %v2480 = vsel %vm471, %v2477, %v2479
        %v2481 = vrot.slane %v2375, 1
        %v2482 = vrot.slane %v2376, 1
        %v2483 = vsel %vm471, %v2481, %v2482
        %v2484 = vrot.slane %v2377, 1
        %v2485 = vsel %vm471, %v2482, %v2484
        %v2486 = vrot.slane %v2378, 1
        %v2487 = vrot.slane %v2379, 1
        %v2488 = vsel %vm471, %v2486, %v2487
        %v2489 = vrot.slane %v2380, 1
        %v2490 = vsel %vm471, %v2487, %v2489
        %v2491 = vrot.slane %v2381, 1
        %v2492 = vrot.slane %v2382, 1
        %v2493 = vsel %vm471, %v2491, %v2492
        %v2494 = vrot.slane %v2383, 1
        %v2495 = vsel %vm471, %v2492, %v2494
        %v2496 = vrot.slane %v2384, 1
        %v2497 = vrot.slane %v2385, 1
        %v2498 = vsel %vm471, %v2496, %v2497
        %v2499 = vrot.slane %v2386, 1
        %v2500 = vsel %vm471, %v2497, %v2499
        %v2501 = vrot.slane %v2387, 1
        %v2502 = vrot.slane %v2388, 1
        %v2503 = vsel %vm471, %v2501, %v2502
        %v2504 = vrot.slane %v2389, 1
        %v2505 = vsel %vm471, %v2502, %v2504
        %v2506 = vrot.slane %v2390, 1
        %v2507 = vrot.slane %v2391, 1
        %v2508 = vsel %vm471, %v2506, %v2507
        %v2509 = vrot.slane %v2392, 1
        %v2510 = vsel %vm471, %v2507, %v2509
        %v2511 = vrot.slane %v2393, 1
        %v2512 = vrot.slane %v2394, 1
        %v2513 = vsel %vm471, %v2511, %v2512
        %v2514 = vrot.slane %v2395, 1
        %v2515 = vsel %vm471, %v2512, %v2514
        %v2516 = vrot.slane %v2396, 1
        %v2517 = vrot.slane %v2397, 1
        %v2518 = vsel %vm471, %v2516, %v2517
        %v2519 = vrot.slane %v2398, 1
        %v2520 = vsel %vm471, %v2517, %v2519
        %v2521 = vrot.slane %v2399, 1
        %v2522 = vrot.slane %v2400, 1
        %v2523 = vsel %vm471, %v2521, %v2522
        %v2524 = vrot.slane %v2401, 1
        %v2525 = vsel %vm471, %v2522, %v2524
        %v2526 = vrot.slane %v2402, 1
        %v2527 = vrot.slane %v2403, 1
        %v2528 = vsel %vm471, %v2526, %v2527
        %v2529 = vrot.slane %v2404, 1
        %v2530 = vsel %vm471, %v2527, %v2529
        %v2531 = vrot.slane %v2405, 1
        %v2532 = vrot.slane %v2406, 1
        %v2533 = vsel %vm471, %v2531, %v2532
        %v2534 = vrot.slane %v2407, 1
        %v2535 = vsel %vm471, %v2532, %v2534
        %v2536 = vrot.slane %v2408, 1
        %v2537 = vrot.slane %v2409, 1
        %v2538 = vsel %vm471, %v2536, %v2537
        %v2539 = vrot.slane %v2410, 1
        %v2540 = vsel %vm471, %v2537, %v2539
        %v2541 = vrot.slane %v2411, 1
        %v2542 = vrot.slane %v2412, 1
        %v2543 = vsel %vm471, %v2541, %v2542
        %v2544 = vrot.slane %v2413, 1
        %v2545 = vsel %vm471, %v2542, %v2544
        %v2546 = vrot.slane %v2414, 1
        %v2547 = vrot.slane %v2415, 1
        %v2548 = vsel %vm471, %v2546, %v2547
        %v2549 = vrot.slane %v2416, 1
        %v2550 = vsel %vm471, %v2547, %v2549
        %v2583 = vrot.slane %v2369, 2
        %v2584 = vrot.slane %v2370, 2
        %v2585 = vsel %vm584, %v2583, %v2584
        %v2586 = vrot.slane %v2371, 2
        %v2587 = vsel %vm584, %v2584, %v2586
        %v2588 = vrot.slane %v2372, 2
        %v2589 = vrot.slane %v2373, 2
        %v2590 = vsel %vm584, %v2588, %v2589
        %v2591 = vrot.slane %v2374, 2
        %v2592 = vsel %vm584, %v2589, %v2591
        %v2593 = vrot.slane %v2375, 2
        %v2594 = vrot.slane %v2376, 2
        %v2595 = vsel %vm584, %v2593, %v2594
        %v2596 = vrot.slane %v2377, 2
        %v2597 = vsel %vm584, %v2594, %v2596
        %v2598 = vrot.slane %v2378, 2
        %v2599 = vrot.slane %v2379, 2
        %v2600 = vsel %vm584, %v2598, %v2599
        %v2601 = vrot.slane %v2380, 2
        %v2602 = vsel %vm584, %v2599, %v2601
        %v2603 = vrot.slane %v2381, 2
        %v2604 = vrot.slane %v2382, 2
        %v2605 = vsel %vm584, %v2603, %v2604
        %v2606 = vrot.slane %v2383, 2
        %v2607 = vsel %vm584, %v2604, %v2606
        %v2608 = vrot.slane %v2384, 2
        %v2609 = vrot.slane %v2385, 2
        %v2610 = vsel %vm584, %v2608, %v2609
        %v2611 = vrot.slane %v2386, 2
        %v2612 = vsel %vm584, %v2609, %v2611
        %v2613 = vrot.slane %v2387, 2
        %v2614 = vrot.slane %v2388, 2
        %v2615 = vsel %vm584, %v2613, %v2614
        %v2616 = vrot.slane %v2389, 2
        %v2617 = vsel %vm584, %v2614, %v2616
        %v2618 = vrot.slane %v2390, 2
        %v2619 = vrot.slane %v2391, 2
        %v2620 = vsel %vm584, %v2618, %v2619
        %v2621 = vrot.slane %v2392, 2
        %v2622 = vsel %vm584, %v2619, %v2621
        %v2623 = vrot.slane %v2393, 2
        %v2624 = vrot.slane %v2394, 2
        %v2625 = vsel %vm584, %v2623, %v2624
        %v2626 = vrot.slane %v2395, 2
        %v2627 = vsel %vm584, %v2624, %v2626
        %v2628 = vrot.slane %v2396, 2
        %v2629 = vrot.slane %v2397, 2
        %v2630 = vsel %vm584, %v2628, %v2629
        %v2631 = vrot.slane %v2398, 2
        %v2632 = vsel %vm584, %v2629, %v2631
        %v2633 = vrot.slane %v2399, 2
        %v2634 = vrot.slane %v2400, 2
        %v2635 = vsel %vm584, %v2633, %v2634
        %v2636 = vrot.slane %v2401, 2
        %v2637 = vsel %vm584, %v2634, %v2636
        %v2638 = vrot.slane %v2402, 2
        %v2639 = vrot.slane %v2403, 2
        %v2640 = vsel %vm584, %v2638, %v2639
        %v2641 = vrot.slane %v2404, 2
        %v2642 = vsel %vm584, %v2639, %v2641
        %v2643 = vrot.slane %v2405, 2
        %v2644 = vrot.slane %v2406, 2
        %v2645 = vsel %vm584, %v2643, %v2644
        %v2646 = vrot.slane %v2407, 2
        %v2647 = vsel %vm584, %v2644, %v2646
        %v2648 = vrot.slane %v2408, 2
        %v2649 = vrot.slane %v2409, 2
        %v2650 = vsel %vm584, %v2648, %v2649
        %v2651 = vrot.slane %v2410, 2
        %v2652 = vsel %vm584, %v2649, %v2651
        %v2653 = vrot.slane %v2411, 2
        %v2654 = vrot.slane %v2412, 2
        %v2655 = vsel %vm584, %v2653, %v2654
        %v2656 = vrot.slane %v2413, 2
        %v2657 = vsel %vm584, %v2654, %v2656
        %v2658 = vrot.slane %v2414, 2
        %v2659 = vrot.slane %v2415, 2
        %v2660 = vsel %vm584, %v2658, %v2659
        %v2661 = vrot.slane %v2416, 2
        %v2662 = vsel %vm584, %v2659, %v2661
        %v2698 = vrot.slane %v2417, 1
        %v2699 = vrot.slane %v2418, 1
        %v2700 = vsel %vm471, %v2698, %v2699
        %v2701 = vrot.slane %v2419, 1
        %v2702 = vsel %vm471, %v2699, %v2701
        %v2705 = vrot.slane %v2417, 2
        %v2706 = vrot.slane %v2418, 2
        %v2707 = vsel %vm584, %v2705, %v2706
        %v2708 = vrot.slane %v2419, 2
        %v2709 = vsel %vm584, %v2706, %v2708
        %v2715 = vrot.slane %v2420, 1
        %v2716 = vrot.slane %v2421, 1
        %v2717 = vsel %vm471, %v2715, %v2716
        %v2718 = vrot.slane %v2422, 1
        %v2719 = vsel %vm471, %v2716, %v2718
        %v2722 = vrot.slane %v2420, 2
        %v2723 = vrot.slane %v2421, 2
        %v2724 = vsel %vm584, %v2722, %v2723
        %v2725 = vrot.slane %v2422, 2
        %v2726 = vsel %vm584, %v2723, %v2725
        %s2729 = scalar_lea.vmem [#allocation6], 1152
        %v2730 = vld [vmem:[%s2729] sm:$0xff]
        %v2731 = vld [vmem:[%s2729 + $0x8] sm:$0xff]
        %v2732 = vld [vmem:[%s2729 + $0x10] sm:$0xff]
        %v2733 = vld [vmem:[%s2729 + $0x18] sm:$0xff]
        %v2734 = vld [vmem:[%s2729 + $0x20] sm:$0xff]
        %v2735 = vld [vmem:[%s2729 + $0x28] sm:$0xff]
        %v2736 = vld [vmem:[%s2729 + $0x30] sm:$0xff]
        %v2737 = vld [vmem:[%s2729 + $0x38] sm:$0xff]
        %v2738 = vld [vmem:[%s2729 + $0x40] sm:$0xff]
        %v2739 = vld [vmem:[%s2729 + $0x48] sm:$0xff]
        %v2740 = vld [vmem:[%s2729 + $0x50] sm:$0xff]
        %v2741 = vld [vmem:[%s2729 + $0x58] sm:$0xff]
        %v2742 = vld [vmem:[%s2729 + $0x60] sm:$0xff]
        %v2743 = vld [vmem:[%s2729 + $0x68] sm:$0xff]
        %v2744 = vld [vmem:[%s2729 + $0x70] sm:$0xff]
        %v2745 = vld [vmem:[%s2729 + $0x78] sm:$0xff]
        %v2746 = vld [vmem:[%s2729 + $0x80] sm:$0xff]
        %v2747 = vld [vmem:[%s2729 + $0x88] sm:$0xff]
        %v2748 = vld [vmem:[%s2729 + $0x90] sm:$0xff]
        %v2749 = vld [vmem:[%s2729 + $0x98] sm:$0xff]
        %v2750 = vld [vmem:[%s2729 + $0xa0] sm:$0xff]
        %v2751 = vld [vmem:[%s2729 + $0xa8] sm:$0xff]
        %v2752 = vld [vmem:[%s2729 + $0xb0] sm:$0xff]
        %v2753 = vld [vmem:[%s2729 + $0xb8] sm:$0xff]
        %v2754 = vld [vmem:[%s2729 + $0xc0] sm:$0xff]
        %v2755 = vld [vmem:[%s2729 + $0xc8] sm:$0xff]
        %v2756 = vld [vmem:[%s2729 + $0xd0] sm:$0xff]
        %v2757 = vld [vmem:[%s2729 + $0xd8] sm:$0xff]
        %v2758 = vld [vmem:[%s2729 + $0xe0] sm:$0xff]
        %v2759 = vld [vmem:[%s2729 + $0xe8] sm:$0xff]
        %v2760 = vld [vmem:[%s2729 + $0xf0] sm:$0xff]
        %v2761 = vld [vmem:[%s2729 + $0xf8] sm:$0xff]
        %v2762 = vld [vmem:[%s2729 + $0x100] sm:$0xff]
        %v2763 = vld [vmem:[%s2729 + $0x108] sm:$0xff]
        %v2764 = vld [vmem:[%s2729 + $0x110] sm:$0xff]
        %v2765 = vld [vmem:[%s2729 + $0x118] sm:$0xff]
        %v2766 = vld [vmem:[%s2729 + $0x120] sm:$0xff]
        %v2767 = vld [vmem:[%s2729 + $0x128] sm:$0xff]
        %v2768 = vld [vmem:[%s2729 + $0x130] sm:$0xff]
        %v2769 = vld [vmem:[%s2729 + $0x138] sm:$0xff]
        %v2770 = vld [vmem:[%s2729 + $0x140] sm:$0xff]
        %v2771 = vld [vmem:[%s2729 + $0x148] sm:$0xff]
        %v2772 = vld [vmem:[%s2729 + $0x150] sm:$0xff]
        %v2773 = vld [vmem:[%s2729 + $0x158] sm:$0xff]
        %v2774 = vld [vmem:[%s2729 + $0x160] sm:$0xff]
        %v2775 = vld [vmem:[%s2729 + $0x168] sm:$0xff]
        %v2776 = vld [vmem:[%s2729 + $0x170] sm:$0xff]
        %v2777 = vld [vmem:[%s2729 + $0x178] sm:$0xff]
        %v2778 = vld [vmem:[%s2729 + $0x180] sm:$0xff]
        %v2779 = vld [vmem:[%s2729 + $0x188] sm:$0xff]
        %v2780 = vld [vmem:[%s2729 + $0x190] sm:$0xff]
        %v2781 = vld [vmem:[%s2729 + $0x198] sm:$0xff]
        %v2782 = vld [vmem:[%s2729 + $0x1a0] sm:$0xff]
        %v2783 = vld [vmem:[%s2729 + $0x1a8] sm:$0xff]
        %v2784 = vld [vmem:[%s2729 + $0x1b0] sm:$0xff]
        %v2785 = vld [vmem:[%s2729 + $0x1b8] sm:$0xff]
        %v2786 = vld [vmem:[%s2729 + $0x1c0] sm:$0xff]
        %v2787 = vld [vmem:[%s2729 + $0x1c8] sm:$0xff]
        %v2788 = vld [vmem:[%s2729 + $0x1d0] sm:$0xff]
        %v2789 = vld [vmem:[%s2729 + $0x1d8] sm:$0xff]
        %v2790 = vld [vmem:[%s2729 + $0x1e0] sm:$0xff]
        %v2791 = vld [vmem:[%s2729 + $0x1e8] sm:$0xff]
        %v2792 = vld [vmem:[%s2729 + $0x1f0] sm:$0xff]
        %v2793 = vld [vmem:[%s2729 + $0x1f8] sm:$0xff]
        %v2794 = vld [vmem:[%s2729 + $0x200] sm:$0xff]
        %v2795 = vld [vmem:[%s2729 + $0x208] sm:$0xff]
        %v2796 = vld [vmem:[%s2729 + $0x210] sm:$0xff]
        %v2797 = vld [vmem:[%s2729 + $0x218] sm:$0xff]
        %v2798 = vld [vmem:[%s2729 + $0x220] sm:$0xff]
        %v2799 = vld [vmem:[%s2729 + $0x228] sm:$0xff]
        %v2800 = vld [vmem:[%s2729 + $0x230] sm:$0xff]
        %v2801 = vld [vmem:[%s2729 + $0x238] sm:$0xff]
        %v2802 = vld [vmem:[%s2729 + $0x240] sm:$0xff]
        %v2803 = vld [vmem:[%s2729 + $0x248] sm:$0xff]
        %v2804 = vld [vmem:[%s2729 + $0x250] sm:$0xff]
        %v2805 = vld [vmem:[%s2729 + $0x258] sm:$0xff]
        %v2806 = vld [vmem:[%s2729 + $0x260] sm:$0xff]
        %v2807 = vld [vmem:[%s2729 + $0x268] sm:$0xff]
        %v2808 = vld [vmem:[%s2729 + $0x270] sm:$0xff]
        %v2809 = vld [vmem:[%s2729 + $0x278] sm:$0xff]
        %v2810 = vld [vmem:[%s2729 + $0x280] sm:$0xff]
        %v2811 = vld [vmem:[%s2729 + $0x288] sm:$0xff]
        %v2812 = vld [vmem:[%s2729 + $0x290] sm:$0xff]
        %v2813 = vld [vmem:[%s2729 + $0x298] sm:$0xff]
        %v2814 = vld [vmem:[%s2729 + $0x2a0] sm:$0xff]
        %v2815 = vld [vmem:[%s2729 + $0x2a8] sm:$0xff]
        %v2816 = vld [vmem:[%s2729 + $0x2b0] sm:$0xff]
        %v2817 = vld [vmem:[%s2729 + $0x2b8] sm:$0xff]
        %v2818 = vld [vmem:[%s2729 + $0x2c0] sm:$0xff]
        %v2819 = vld [vmem:[%s2729 + $0x2c8] sm:$0xff]
        %v2820 = vld [vmem:[%s2729 + $0x2d0] sm:$0xff]
        %v2821 = vld [vmem:[%s2729 + $0x2d8] sm:$0xff]
        %v2822 = vld [vmem:[%s2729 + $0x2e0] sm:$0xff]
        %v2823 = vld [vmem:[%s2729 + $0x2e8] sm:$0xff]
        %v2824 = vld [vmem:[%s2729 + $0x2f0] sm:$0xff]
        %v2825 = vld [vmem:[%s2729 + $0x2f8] sm:$0xff]
        %v2826 = vld [vmem:[%s2729 + $0x300] sm:$0xff]
        %v2827 = vld [vmem:[%s2729 + $0x308] sm:$0xff]
        %v2828 = vld [vmem:[%s2729 + $0x310] sm:$0xff]
        %v2829 = vld [vmem:[%s2729 + $0x318] sm:$0xff]
        %v2830 = vld [vmem:[%s2729 + $0x320] sm:$0xff]
        %v2831 = vld [vmem:[%s2729 + $0x328] sm:$0xff]
        %v2832 = vld [vmem:[%s2729 + $0x330] sm:$0xff]
        %v2833 = vld [vmem:[%s2729 + $0x338] sm:$0xff]
        %v2834 = vld [vmem:[%s2729 + $0x340] sm:$0xff]
        %v2835 = vld [vmem:[%s2729 + $0x348] sm:$0xff]
        %v2836 = vld [vmem:[%s2729 + $0x350] sm:$0xff]
        %v2837 = vld [vmem:[%s2729 + $0x358] sm:$0xff]
        %v2838 = vld [vmem:[%s2729 + $0x360] sm:$0xff]
        %v2839 = vld [vmem:[%s2729 + $0x368] sm:$0xff]
        %v2840 = vld [vmem:[%s2729 + $0x370] sm:$0xff]
        %v2841 = vld [vmem:[%s2729 + $0x378] sm:$0xff]
        %v2842 = vld [vmem:[%s2729 + $0x380] sm:$0xff]
        %v2843 = vld [vmem:[%s2729 + $0x388] sm:$0xff]
        %v2844 = vld [vmem:[%s2729 + $0x390] sm:$0xff]
        %v2845 = vld [vmem:[%s2729 + $0x398] sm:$0xff]
        %v2846 = vld [vmem:[%s2729 + $0x3a0] sm:$0xff]
        %v2847 = vld [vmem:[%s2729 + $0x3a8] sm:$0xff]
        %v2848 = vld [vmem:[%s2729 + $0x3b0] sm:$0xff]
        %v2849 = vld [vmem:[%s2729 + $0x3b8] sm:$0xff]
        %v2850 = vld [vmem:[%s2729 + $0x3c0] sm:$0xff]
        %v2851 = vld [vmem:[%s2729 + $0x3c8] sm:$0xff]
        %v2852 = vld [vmem:[%s2729 + $0x3d0] sm:$0xff]
        %v2853 = vld [vmem:[%s2729 + $0x3d8] sm:$0xff]
        %v2854 = vld [vmem:[%s2729 + $0x3e0] sm:$0xff]
        %v2855 = vld [vmem:[%s2729 + $0x3e8] sm:$0xff]
        %v2856 = vld [vmem:[%s2729 + $0x3f0] sm:$0xff]
        %v2857 = vld [vmem:[%s2729 + $0x3f8] sm:$0xff]
        %v2858 = vld [vmem:[%s2729 + $0x400] sm:$0xff]
        %v2859 = vld [vmem:[%s2729 + $0x408] sm:$0xff]
        %v2860 = vld [vmem:[%s2729 + $0x410] sm:$0xff]
        %v2861 = vld [vmem:[%s2729 + $0x418] sm:$0xff]
        %v2862 = vld [vmem:[%s2729 + $0x420] sm:$0xff]
        %v2863 = vld [vmem:[%s2729 + $0x428] sm:$0xff]
        %v2864 = vld [vmem:[%s2729 + $0x430] sm:$0xff]
        %v2865 = vld [vmem:[%s2729 + $0x438] sm:$0xff]
        %v2866 = vld [vmem:[%s2729 + $0x440] sm:$0xff]
        %v2867 = vld [vmem:[%s2729 + $0x448] sm:$0xff]
        %v2868 = vld [vmem:[%s2729 + $0x450] sm:$0xff]
        %v2869 = vld [vmem:[%s2729 + $0x458] sm:$0xff]
        %v2870 = vld [vmem:[%s2729 + $0x460] sm:$0xff]
        %v2871 = vld [vmem:[%s2729 + $0x468] sm:$0xff]
        %v2872 = vld [vmem:[%s2729 + $0x470] sm:$0xff]
        %v2873 = vld [vmem:[%s2729 + $0x478] sm:$0xff]
        %2874 = vmatprep.subr.mxu0 0.0
        %2875 = vmatpush1.msra.mxu0 %v2745
        %2876 = vmatprep.subr.mxu0 0.0
        %2877 = vmatpush1.msra.mxu0 %v2744
        %2878 = vmatprep.subr.mxu0 0.0
        %2879 = vmatpush1.msra.mxu0 %v2743
        %2880 = vmatprep.subr.mxu0 0.0
        %2881 = vmatpush1.msra.mxu0 %v2742
        %2882 = vmatprep.subr.mxu0 0.0
        %2883 = vmatpush1.msra.mxu0 %v2741
        %2884 = vmatprep.subr.mxu0 0.0
        %2885 = vmatpush1.msra.mxu0 %v2740
        %2886 = vmatprep.subr.mxu0 0.0
        %2887 = vmatpush1.msra.mxu0 %v2739
        %2888 = vmatprep.subr.mxu0 0.0
        %2889 = vmatpush1.msra.mxu0 %v2738
        %2890 = vmatprep.subr.mxu0 0.0
        %2891 = vmatpush1.msra.mxu0 %v2737
        %2892 = vmatprep.subr.mxu0 0.0
        %2893 = vmatpush1.msra.mxu0 %v2736
        %2894 = vmatprep.subr.mxu0 0.0
        %2895 = vmatpush1.msra.mxu0 %v2735
        %2896 = vmatprep.subr.mxu0 0.0
        %2897 = vmatpush1.msra.mxu0 %v2734
        %2898 = vmatprep.subr.mxu0 0.0
        %2899 = vmatpush1.msra.mxu0 %v2733
        %2900 = vmatprep.subr.mxu0 0.0
        %2901 = vmatpush1.msra.mxu0 %v2732
        %2902 = vmatprep.subr.mxu0 0.0
        %2903 = vmatpush1.msra.mxu0 %v2731
        %2904 = vmatprep.subr.mxu0 0.0
        %2905 = vmatpush1.msra.mxu0 %v2730
        %2906 = vmatprep.subr.mxu0 0.0
        %2907 = vmatpush2.msra.mxu0 %v2761
        %2908 = vmatprep.subr.mxu0 0.0
        %2909 = vmatpush2.msra.mxu0 %v2760
        %2910 = vmatprep.subr.mxu0 0.0
        %2911 = vmatpush2.msra.mxu0 %v2759
        %2912 = vmatprep.subr.mxu0 0.0
        %2913 = vmatpush2.msra.mxu0 %v2758
        %2914 = vmatprep.subr.mxu0 0.0
        %2915 = vmatpush2.msra.mxu0 %v2757
        %2916 = vmatprep.subr.mxu0 0.0
        %2917 = vmatpush2.msra.mxu0 %v2756
        %2918 = vmatprep.subr.mxu0 0.0
        %2919 = vmatpush2.msra.mxu0 %v2755
        %2920 = vmatprep.subr.mxu0 0.0
        %2921 = vmatpush2.msra.mxu0 %v2754
        %2922 = vmatprep.subr.mxu0 0.0
        %2923 = vmatpush2.msra.mxu0 %v2753
        %2924 = vmatprep.subr.mxu0 0.0
        %2925 = vmatpush2.msra.mxu0 %v2752
        %2926 = vmatprep.subr.mxu0 0.0
        %2927 = vmatpush2.msra.mxu0 %v2751
        %2928 = vmatprep.subr.mxu0 0.0
        %2929 = vmatpush2.msra.mxu0 %v2750
        %2930 = vmatprep.subr.mxu0 0.0
        %2931 = vmatpush2.msra.mxu0 %v2749
        %2932 = vmatprep.subr.mxu0 0.0
        %2933 = vmatpush2.msra.mxu0 %v2748
        %2934 = vmatprep.subr.mxu0 0.0
        %2935 = vmatpush2.msra.mxu0 %v2747
        %2936 = vmatprep.subr.mxu0 0.0
        %2937 = vmatpush2.msra.mxu0 %v2746
        %2938 = vmatprep.mubr.f32.mxu0 %v2473
        %2939 = vmatmul.mubr.f32.gmra.mxu0 %v2369
        %v2940 = vpop.f32.mrf.mxu0
        %v2941 = vadd.f32 0.0, %v2940
        %v2942 = vpop.f32.mrf.mxu0
        %2943 = vmatprep.mubr.f32.mxu0 %v2475
        %2944 = vmatmul.mubr.f32.gmra.mxu0 %v2370
        %v2945 = vpop.f32.mrf.mxu0
        %v2946 = vadd.f32 0.0, %v2945
        %v2947 = vpop.f32.mrf.mxu0
        %2948 = vmatprep.mubr.f32.mxu0 %v2478
        %2949 = vmatmul.mubr.f32.gmra.mxu0 %v2372
        %v2950 = vpop.f32.mrf.mxu0
        %v2951 = vadd.f32 0.0, %v2950
        %v2952 = vpop.f32.mrf.mxu0
        %2953 = vmatprep.mubr.f32.mxu0 %v2480
        %2954 = vmatmul.mubr.f32.gmra.mxu0 %v2373
        %v2955 = vpop.f32.mrf.mxu0
        %v2956 = vadd.f32 0.0, %v2955
        %v2957 = vpop.f32.mrf.mxu0
        %2958 = vmatprep.mubr.f32.mxu0 %v2483
        %2959 = vmatmul.mubr.f32.gmra.mxu0 %v2375
        %v2960 = vpop.f32.mrf.mxu0
        %v2961 = vadd.f32 0.0, %v2960
        %v2962 = vpop.f32.mrf.mxu0
        %2963 = vmatprep.mubr.f32.mxu0 %v2485
        %2964 = vmatmul.mubr.f32.gmra.mxu0 %v2376
        %v2965 = vpop.f32.mrf.mxu0
        %v2966 = vadd.f32 0.0, %v2965
        %v2967 = vpop.f32.mrf.mxu0
        %2968 = vmatprep.mubr.f32.mxu0 %v2488
        %2969 = vmatmul.mubr.f32.gmra.mxu0 %v2378
        %v2970 = vpop.f32.mrf.mxu0
        %v2971 = vadd.f32 0.0, %v2970
        %v2972 = vpop.f32.mrf.mxu0
        %2973 = vmatprep.mubr.f32.mxu0 %v2490
        %2974 = vmatmul.mubr.f32.gmra.mxu0 %v2379
        %v2975 = vpop.f32.mrf.mxu0
        %v2976 = vadd.f32 0.0, %v2975
        %v2977 = vpop.f32.mrf.mxu0
        %2978 = vmatprep.mubr.f32.mxu0 %v2493
        %2979 = vmatmul.mubr.f32.gmra.mxu0 %v2381
        %v2980 = vpop.f32.mrf.mxu0
        %v2981 = vadd.f32 0.0, %v2980
        %v2982 = vpop.f32.mrf.mxu0
        %2983 = vmatprep.mubr.f32.mxu0 %v2495
        %2984 = vmatmul.mubr.f32.gmra.mxu0 %v2382
        %v2985 = vpop.f32.mrf.mxu0
        %v2986 = vadd.f32 0.0, %v2985
        %v2987 = vpop.f32.mrf.mxu0
        %2988 = vmatprep.mubr.f32.mxu0 %v2498
        %2989 = vmatmul.mubr.f32.gmra.mxu0 %v2384
        %v2990 = vpop.f32.mrf.mxu0
        %v2991 = vadd.f32 0.0, %v2990
        %v2992 = vpop.f32.mrf.mxu0
        %2993 = vmatprep.mubr.f32.mxu0 %v2500
        %2994 = vmatmul.mubr.f32.gmra.mxu0 %v2385
        %v2995 = vpop.f32.mrf.mxu0
        %v2996 = vadd.f32 0.0, %v2995
        %v2997 = vpop.f32.mrf.mxu0
        %2998 = vmatprep.mubr.f32.mxu0 %v2503
        %2999 = vmatmul.mubr.f32.gmra.mxu0 %v2387
        %v3000 = vpop.f32.mrf.mxu0
        %v3001 = vadd.f32 0.0, %v3000
        %v3002 = vpop.f32.mrf.mxu0
        %3003 = vmatprep.mubr.f32.mxu0 %v2505
        %3004 = vmatmul.mubr.f32.gmra.mxu0 %v2388
        %v3005 = vpop.f32.mrf.mxu0
        %v3006 = vadd.f32 0.0, %v3005
        %v3007 = vpop.f32.mrf.mxu0
        %3008 = vmatprep.mubr.f32.mxu0 %v2508
        %3009 = vmatmul.mubr.f32.gmra.mxu0 %v2390
        %v3010 = vpop.f32.mrf.mxu0
        %v3011 = vadd.f32 0.0, %v3010
        %v3012 = vpop.f32.mrf.mxu0
        %3013 = vmatprep.mubr.f32.mxu0 %v2510
        %3014 = vmatmul.mubr.f32.gmra.mxu0 %v2391
        %v3015 = vpop.f32.mrf.mxu0
        %v3016 = vadd.f32 0.0, %v3015
        %v3017 = vpop.f32.mrf.mxu0
        %3018 = vmatprep.mubr.f32.mxu0 %v2513
        %3019 = vmatmul.mubr.f32.gmra.mxu0 %v2393
        %v3020 = vpop.f32.mrf.mxu0
        %v3021 = vadd.f32 0.0, %v3020
        %v3022 = vpop.f32.mrf.mxu0
        %3023 = vmatprep.mubr.f32.mxu0 %v2515
        %3024 = vmatmul.mubr.f32.gmra.mxu0 %v2394
        %v3025 = vpop.f32.mrf.mxu0
        %v3026 = vadd.f32 0.0, %v3025
        %v3027 = vpop.f32.mrf.mxu0
        %3028 = vmatprep.mubr.f32.mxu0 %v2518
        %3029 = vmatmul.mubr.f32.gmra.mxu0 %v2396
        %v3030 = vpop.f32.mrf.mxu0
        %v3031 = vadd.f32 0.0, %v3030
        %v3032 = vpop.f32.mrf.mxu0
        %3033 = vmatprep.mubr.f32.mxu0 %v2520
        %3034 = vmatmul.mubr.f32.gmra.mxu0 %v2397
        %v3035 = vpop.f32.mrf.mxu0
        %v3036 = vadd.f32 0.0, %v3035
        %v3037 = vpop.f32.mrf.mxu0
        %3038 = vmatprep.mubr.f32.mxu0 %v2523
        %3039 = vmatmul.mubr.f32.gmra.mxu0 %v2399
        %v3040 = vpop.f32.mrf.mxu0
        %v3041 = vadd.f32 0.0, %v3040
        %v3042 = vpop.f32.mrf.mxu0
        %3043 = vmatprep.mubr.f32.mxu0 %v2525
        %3044 = vmatmul.mubr.f32.gmra.mxu0 %v2400
        %v3045 = vpop.f32.mrf.mxu0
        %v3046 = vadd.f32 0.0, %v3045
        %v3047 = vpop.f32.mrf.mxu0
        %3048 = vmatprep.mubr.f32.mxu0 %v2528
        %3049 = vmatmul.mubr.f32.gmra.mxu0 %v2402
        %v3050 = vpop.f32.mrf.mxu0
        %v3051 = vadd.f32 0.0, %v3050
        %v3052 = vpop.f32.mrf.mxu0
        %3053 = vmatprep.mubr.f32.mxu0 %v2530
        %3054 = vmatmul.mubr.f32.gmra.mxu0 %v2403
        %v3055 = vpop.f32.mrf.mxu0
        %v3056 = vadd.f32 0.0, %v3055
        %v3057 = vpop.f32.mrf.mxu0
        %3058 = vmatprep.mubr.f32.mxu0 %v2533
        %3059 = vmatmul.mubr.f32.gmra.mxu0 %v2405
        %v3060 = vpop.f32.mrf.mxu0
        %v3061 = vadd.f32 0.0, %v3060
        %v3062 = vpop.f32.mrf.mxu0
        %3063 = vmatprep.mubr.f32.mxu0 %v2535
        %3064 = vmatmul.mubr.f32.gmra.mxu0 %v2406
        %v3065 = vpop.f32.mrf.mxu0
        %v3066 = vadd.f32 0.0, %v3065
        %v3067 = vpop.f32.mrf.mxu0
        %3068 = vmatprep.mubr.f32.mxu0 %v2538
        %3069 = vmatmul.mubr.f32.gmra.mxu0 %v2408
        %v3070 = vpop.f32.mrf.mxu0
        %v3071 = vadd.f32 0.0, %v3070
        %v3072 = vpop.f32.mrf.mxu0
        %3073 = vmatprep.mubr.f32.mxu0 %v2540
        %3074 = vmatmul.mubr.f32.gmra.mxu0 %v2409
        %v3075 = vpop.f32.mrf.mxu0
        %v3076 = vadd.f32 0.0, %v3075
        %v3077 = vpop.f32.mrf.mxu0
        %3078 = vmatprep.mubr.f32.mxu0 %v2543
        %3079 = vmatmul.mubr.f32.gmra.mxu0 %v2411
        %v3080 = vpop.f32.mrf.mxu0
        %v3081 = vadd.f32 0.0, %v3080
        %v3082 = vpop.f32.mrf.mxu0
        %3083 = vmatprep.mubr.f32.mxu0 %v2545
        %3084 = vmatmul.mubr.f32.gmra.mxu0 %v2412
        %v3085 = vpop.f32.mrf.mxu0
        %v3086 = vadd.f32 0.0, %v3085
        %v3087 = vpop.f32.mrf.mxu0
        %3088 = vmatprep.mubr.f32.mxu0 %v2548
        %3089 = vmatmul.mubr.f32.gmra.mxu0 %v2414
        %v3090 = vpop.f32.mrf.mxu0
        %v3091 = vadd.f32 0.0, %v3090
        %v3092 = vpop.f32.mrf.mxu0
        %3093 = vmatprep.mubr.f32.mxu0 %v2550
        %3094 = vmatmul.mubr.f32.gmra.mxu0 %v2415
        %v3095 = vpop.f32.mrf.mxu0
        %v3096 = vadd.f32 0.0, %v3095
        %v3097 = vpop.f32.mrf.mxu0
        %3098 = vdwg.mxu0
        %3099 = vmatprep.subr.mxu0 0.0
        %3100 = vmatpush1.msra.mxu0 %v2777
        %3101 = vmatprep.subr.mxu0 0.0
        %3102 = vmatpush1.msra.mxu0 %v2776
        %3103 = vmatprep.subr.mxu0 0.0
        %3104 = vmatpush1.msra.mxu0 %v2775
        %3105 = vmatprep.subr.mxu0 0.0
        %3106 = vmatpush1.msra.mxu0 %v2774
        %3107 = vmatprep.subr.mxu0 0.0
        %3108 = vmatpush1.msra.mxu0 %v2773
        %3109 = vmatprep.subr.mxu0 0.0
        %3110 = vmatpush1.msra.mxu0 %v2772
        %3111 = vmatprep.subr.mxu0 0.0
        %3112 = vmatpush1.msra.mxu0 %v2771
        %3113 = vmatprep.subr.mxu0 0.0
        %3114 = vmatpush1.msra.mxu0 %v2770
        %3115 = vmatprep.subr.mxu0 0.0
        %3116 = vmatpush1.msra.mxu0 %v2769
        %3117 = vmatprep.subr.mxu0 0.0
        %3118 = vmatpush1.msra.mxu0 %v2768
        %3119 = vmatprep.subr.mxu0 0.0
        %3120 = vmatpush1.msra.mxu0 %v2767
        %3121 = vmatprep.subr.mxu0 0.0
        %3122 = vmatpush1.msra.mxu0 %v2766
        %3123 = vmatprep.subr.mxu0 0.0
        %3124 = vmatpush1.msra.mxu0 %v2765
        %3125 = vmatprep.subr.mxu0 0.0
        %3126 = vmatpush1.msra.mxu0 %v2764
        %3127 = vmatprep.subr.mxu0 0.0
        %3128 = vmatpush1.msra.mxu0 %v2763
        %3129 = vmatprep.subr.mxu0 0.0
        %3130 = vmatpush1.msra.mxu0 %v2762
        %3131 = vmatprep.subr.mxu0 0.0
        %3132 = vmatpush2.msra.mxu0 %v2793
        %3133 = vmatprep.subr.mxu0 0.0
        %3134 = vmatpush2.msra.mxu0 %v2792
        %3135 = vmatprep.subr.mxu0 0.0
        %3136 = vmatpush2.msra.mxu0 %v2791
        %3137 = vmatprep.subr.mxu0 0.0
        %3138 = vmatpush2.msra.mxu0 %v2790
        %3139 = vmatprep.subr.mxu0 0.0
        %3140 = vmatpush2.msra.mxu0 %v2789
        %3141 = vmatprep.subr.mxu0 0.0
        %3142 = vmatpush2.msra.mxu0 %v2788
        %3143 = vmatprep.subr.mxu0 0.0
        %3144 = vmatpush2.msra.mxu0 %v2787
        %3145 = vmatprep.subr.mxu0 0.0
        %3146 = vmatpush2.msra.mxu0 %v2786
        %3147 = vmatprep.subr.mxu0 0.0
        %3148 = vmatpush2.msra.mxu0 %v2785
        %3149 = vmatprep.subr.mxu0 0.0
        %3150 = vmatpush2.msra.mxu0 %v2784
        %3151 = vmatprep.subr.mxu0 0.0
        %3152 = vmatpush2.msra.mxu0 %v2783
        %3153 = vmatprep.subr.mxu0 0.0
        %3154 = vmatpush2.msra.mxu0 %v2782
        %3155 = vmatprep.subr.mxu0 0.0
        %3156 = vmatpush2.msra.mxu0 %v2781
        %3157 = vmatprep.subr.mxu0 0.0
        %3158 = vmatpush2.msra.mxu0 %v2780
        %3159 = vmatprep.subr.mxu0 0.0
        %3160 = vmatpush2.msra.mxu0 %v2779
        %3161 = vmatprep.subr.mxu0 0.0
        %3162 = vmatpush2.msra.mxu0 %v2778
        %3163 = vmatprep.mubr.f32.mxu0 %v2372
        %3164 = vmatmul.mubr.f32.gmra.mxu0 %v2585
        %v3165 = vpop.f32.mrf.mxu0
        %v3166 = vadd.f32 %v2941, %v3165
        %v3167 = vpop.f32.mrf.mxu0
        %3168 = vmatprep.mubr.f32.mxu0 %v2373
        %3169 = vmatmul.mubr.f32.gmra.mxu0 %v2587
        %v3170 = vpop.f32.mrf.mxu0
        %v3171 = vadd.f32 %v2946, %v3170
        %v3172 = vpop.f32.mrf.mxu0
        %3173 = vmatprep.mubr.f32.mxu0 %v2375
        %3174 = vmatmul.mubr.f32.gmra.mxu0 %v2590
        %v3175 = vpop.f32.mrf.mxu0
        %v3176 = vadd.f32 %v2951, %v3175
        %v3177 = vpop.f32.mrf.mxu0
        %3178 = vmatprep.mubr.f32.mxu0 %v2376
        %3179 = vmatmul.mubr.f32.gmra.mxu0 %v2592
        %v3180 = vpop.f32.mrf.mxu0
        %v3181 = vadd.f32 %v2956, %v3180
        %v3182 = vpop.f32.mrf.mxu0
        %3183 = vmatprep.mubr.f32.mxu0 %v2378
        %3184 = vmatmul.mubr.f32.gmra.mxu0 %v2595
        %v3185 = vpop.f32.mrf.mxu0
        %v3186 = vadd.f32 %v2961, %v3185
        %v3187 = vpop.f32.mrf.mxu0
        %3188 = vmatprep.mubr.f32.mxu0 %v2379
        %3189 = vmatmul.mubr.f32.gmra.mxu0 %v2597
        %v3190 = vpop.f32.mrf.mxu0
        %v3191 = vadd.f32 %v2966, %v3190
        %v3192 = vpop.f32.mrf.mxu0
        %3193 = vmatprep.mubr.f32.mxu0 %v2381
        %3194 = vmatmul.mubr.f32.gmra.mxu0 %v2600
        %v3195 = vpop.f32.mrf.mxu0
        %v3196 = vadd.f32 %v2971, %v3195
        %v3197 = vpop.f32.mrf.mxu0
        %3198 = vmatprep.mubr.f32.mxu0 %v2382
        %3199 = vmatmul.mubr.f32.gmra.mxu0 %v2602
        %v3200 = vpop.f32.mrf.mxu0
        %v3201 = vadd.f32 %v2976, %v3200
        %v3202 = vpop.f32.mrf.mxu0
        %3203 = vmatprep.mubr.f32.mxu0 %v2384
        %3204 = vmatmul.mubr.f32.gmra.mxu0 %v2605
        %v3205 = vpop.f32.mrf.mxu0
        %v3206 = vadd.f32 %v2981, %v3205
        %v3207 = vpop.f32.mrf.mxu0
        %3208 = vmatprep.mubr.f32.mxu0 %v2385
        %3209 = vmatmul.mubr.f32.gmra.mxu0 %v2607
        %v3210 = vpop.f32.mrf.mxu0
        %v3211 = vadd.f32 %v2986, %v3210
        %v3212 = vpop.f32.mrf.mxu0
        %3213 = vmatprep.mubr.f32.mxu0 %v2387
        %3214 = vmatmul.mubr.f32.gmra.mxu0 %v2610
        %v3215 = vpop.f32.mrf.mxu0
        %v3216 = vadd.f32 %v2991, %v3215
        %v3217 = vpop.f32.mrf.mxu0
        %3218 = vmatprep.mubr.f32.mxu0 %v2388
        %3219 = vmatmul.mubr.f32.gmra.mxu0 %v2612
        %v3220 = vpop.f32.mrf.mxu0
        %v3221 = vadd.f32 %v2996, %v3220
        %v3222 = vpop.f32.mrf.mxu0
        %3223 = vmatprep.mubr.f32.mxu0 %v2390
        %3224 = vmatmul.mubr.f32.gmra.mxu0 %v2615
        %v3225 = vpop.f32.mrf.mxu0
        %v3226 = vadd.f32 %v3001, %v3225
        %v3227 = vpop.f32.mrf.mxu0
        %3228 = vmatprep.mubr.f32.mxu0 %v2391
        %3229 = vmatmul.mubr.f32.gmra.mxu0 %v2617
        %v3230 = vpop.f32.mrf.mxu0
        %v3231 = vadd.f32 %v3006, %v3230
        %v3232 = vpop.f32.mrf.mxu0
        %3233 = vmatprep.mubr.f32.mxu0 %v2393
        %3234 = vmatmul.mubr.f32.gmra.mxu0 %v2620
        %v3235 = vpop.f32.mrf.mxu0
        %v3236 = vadd.f32 %v3011, %v3235
        %v3237 = vpop.f32.mrf.mxu0
        %3238 = vmatprep.mubr.f32.mxu0 %v2394
        %3239 = vmatmul.mubr.f32.gmra.mxu0 %v2622
        %v3240 = vpop.f32.mrf.mxu0
        %v3241 = vadd.f32 %v3016, %v3240
        %v3242 = vpop.f32.mrf.mxu0
        %3243 = vmatprep.mubr.f32.mxu0 %v2396
        %3244 = vmatmul.mubr.f32.gmra.mxu0 %v2625
        %v3245 = vpop.f32.mrf.mxu0
        %v3246 = vadd.f32 %v3021, %v3245
        %v3247 = vpop.f32.mrf.mxu0
        %3248 = vmatprep.mubr.f32.mxu0 %v2397
        %3249 = vmatmul.mubr.f32.gmra.mxu0 %v2627
        %v3250 = vpop.f32.mrf.mxu0
        %v3251 = vadd.f32 %v3026, %v3250
        %v3252 = vpop.f32.mrf.mxu0
        %3253 = vmatprep.mubr.f32.mxu0 %v2399
        %3254 = vmatmul.mubr.f32.gmra.mxu0 %v2630
        %v3255 = vpop.f32.mrf.mxu0
        %v3256 = vadd.f32 %v3031, %v3255
        %v3257 = vpop.f32.mrf.mxu0
        %3258 = vmatprep.mubr.f32.mxu0 %v2400
        %3259 = vmatmul.mubr.f32.gmra.mxu0 %v2632
        %v3260 = vpop.f32.mrf.mxu0
        %v3261 = vadd.f32 %v3036, %v3260
        %v3262 = vpop.f32.mrf.mxu0
        %3263 = vmatprep.mubr.f32.mxu0 %v2402
        %3264 = vmatmul.mubr.f32.gmra.mxu0 %v2635
        %v3265 = vpop.f32.mrf.mxu0
        %v3266 = vadd.f32 %v3041, %v3265
        %v3267 = vpop.f32.mrf.mxu0
        %3268 = vmatprep.mubr.f32.mxu0 %v2403
        %3269 = vmatmul.mubr.f32.gmra.mxu0 %v2637
        %v3270 = vpop.f32.mrf.mxu0
        %v3271 = vadd.f32 %v3046, %v3270
        %v3272 = vpop.f32.mrf.mxu0
        %3273 = vmatprep.mubr.f32.mxu0 %v2405
        %3274 = vmatmul.mubr.f32.gmra.mxu0 %v2640
        %v3275 = vpop.f32.mrf.mxu0
        %v3276 = vadd.f32 %v3051, %v3275
        %v3277 = vpop.f32.mrf.mxu0
        %3278 = vmatprep.mubr.f32.mxu0 %v2406
        %3279 = vmatmul.mubr.f32.gmra.mxu0 %v2642
        %v3280 = vpop.f32.mrf.mxu0
        %v3281 = vadd.f32 %v3056, %v3280
        %v3282 = vpop.f32.mrf.mxu0
        %3283 = vmatprep.mubr.f32.mxu0 %v2408
        %3284 = vmatmul.mubr.f32.gmra.mxu0 %v2645
        %v3285 = vpop.f32.mrf.mxu0
        %v3286 = vadd.f32 %v3061, %v3285
        %v3287 = vpop.f32.mrf.mxu0
        %3288 = vmatprep.mubr.f32.mxu0 %v2409
        %3289 = vmatmul.mubr.f32.gmra.mxu0 %v2647
        %v3290 = vpop.f32.mrf.mxu0
        %v3291 = vadd.f32 %v3066, %v3290
        %v3292 = vpop.f32.mrf.mxu0
        %3293 = vmatprep.mubr.f32.mxu0 %v2411
        %3294 = vmatmul.mubr.f32.gmra.mxu0 %v2650
        %v3295 = vpop.f32.mrf.mxu0
        %v3296 = vadd.f32 %v3071, %v3295
        %v3297 = vpop.f32.mrf.mxu0
        %3298 = vmatprep.mubr.f32.mxu0 %v2412
        %3299 = vmatmul.mubr.f32.gmra.mxu0 %v2652
        %v3300 = vpop.f32.mrf.mxu0
        %v3301 = vadd.f32 %v3076, %v3300
        %v3302 = vpop.f32.mrf.mxu0
        %3303 = vmatprep.mubr.f32.mxu0 %v2414
        %3304 = vmatmul.mubr.f32.gmra.mxu0 %v2655
        %v3305 = vpop.f32.mrf.mxu0
        %v3306 = vadd.f32 %v3081, %v3305
        %v3307 = vpop.f32.mrf.mxu0
        %3308 = vmatprep.mubr.f32.mxu0 %v2415
        %3309 = vmatmul.mubr.f32.gmra.mxu0 %v2657
        %v3310 = vpop.f32.mrf.mxu0
        %v3311 = vadd.f32 %v3086, %v3310
        %v3312 = vpop.f32.mrf.mxu0
        %3313 = vmatprep.mubr.f32.mxu0 %v2417
        %3314 = vmatmul.mubr.f32.gmra.mxu0 %v2660
        %v3315 = vpop.f32.mrf.mxu0
        %v3316 = vadd.f32 %v3091, %v3315
        %v3317 = vpop.f32.mrf.mxu0
        %3318 = vmatprep.mubr.f32.mxu0 %v2418
        %3319 = vmatmul.mubr.f32.gmra.mxu0 %v2662
        %v3320 = vpop.f32.mrf.mxu0
        %v3321 = vadd.f32 %v3096, %v3320
        %v3322 = vpop.f32.mrf.mxu0
        %3323 = vdwg.mxu0
        %3324 = vmatprep.subr.mxu0 0.0
        %3325 = vmatpush1.msra.mxu0 %v2809
        %3326 = vmatprep.subr.mxu0 0.0
        %3327 = vmatpush1.msra.mxu0 %v2808
        %3328 = vmatprep.subr.mxu0 0.0
        %3329 = vmatpush1.msra.mxu0 %v2807
        %3330 = vmatprep.subr.mxu0 0.0
        %3331 = vmatpush1.msra.mxu0 %v2806
        %3332 = vmatprep.subr.mxu0 0.0
        %3333 = vmatpush1.msra.mxu0 %v2805
        %3334 = vmatprep.subr.mxu0 0.0
        %3335 = vmatpush1.msra.mxu0 %v2804
        %3336 = vmatprep.subr.mxu0 0.0
        %3337 = vmatpush1.msra.mxu0 %v2803
        %3338 = vmatprep.subr.mxu0 0.0
        %3339 = vmatpush1.msra.mxu0 %v2802
        %3340 = vmatprep.subr.mxu0 0.0
        %3341 = vmatpush1.msra.mxu0 %v2801
        %3342 = vmatprep.subr.mxu0 0.0
        %3343 = vmatpush1.msra.mxu0 %v2800
        %3344 = vmatprep.subr.mxu0 0.0
        %3345 = vmatpush1.msra.mxu0 %v2799
        %3346 = vmatprep.subr.mxu0 0.0
        %3347 = vmatpush1.msra.mxu0 %v2798
        %3348 = vmatprep.subr.mxu0 0.0
        %3349 = vmatpush1.msra.mxu0 %v2797
        %3350 = vmatprep.subr.mxu0 0.0
        %3351 = vmatpush1.msra.mxu0 %v2796
        %3352 = vmatprep.subr.mxu0 0.0
        %3353 = vmatpush1.msra.mxu0 %v2795
        %3354 = vmatprep.subr.mxu0 0.0
        %3355 = vmatpush1.msra.mxu0 %v2794
        %3356 = vmatprep.subr.mxu0 0.0
        %3357 = vmatpush2.msra.mxu0 %v2825
        %3358 = vmatprep.subr.mxu0 0.0
        %3359 = vmatpush2.msra.mxu0 %v2824
        %3360 = vmatprep.subr.mxu0 0.0
        %3361 = vmatpush2.msra.mxu0 %v2823
        %3362 = vmatprep.subr.mxu0 0.0
        %3363 = vmatpush2.msra.mxu0 %v2822
        %3364 = vmatprep.subr.mxu0 0.0
        %3365 = vmatpush2.msra.mxu0 %v2821
        %3366 = vmatprep.subr.mxu0 0.0
        %3367 = vmatpush2.msra.mxu0 %v2820
        %3368 = vmatprep.subr.mxu0 0.0
        %3369 = vmatpush2.msra.mxu0 %v2819
        %3370 = vmatprep.subr.mxu0 0.0
        %3371 = vmatpush2.msra.mxu0 %v2818
        %3372 = vmatprep.subr.mxu0 0.0
        %3373 = vmatpush2.msra.mxu0 %v2817
        %3374 = vmatprep.subr.mxu0 0.0
        %3375 = vmatpush2.msra.mxu0 %v2816
        %3376 = vmatprep.subr.mxu0 0.0
        %3377 = vmatpush2.msra.mxu0 %v2815
        %3378 = vmatprep.subr.mxu0 0.0
        %3379 = vmatpush2.msra.mxu0 %v2814
        %3380 = vmatprep.subr.mxu0 0.0
        %3381 = vmatpush2.msra.mxu0 %v2813
        %3382 = vmatprep.subr.mxu0 0.0
        %3383 = vmatpush2.msra.mxu0 %v2812
        %3384 = vmatprep.subr.mxu0 0.0
        %3385 = vmatpush2.msra.mxu0 %v2811
        %3386 = vmatprep.subr.mxu0 0.0
        %3387 = vmatpush2.msra.mxu0 %v2810
        %3388 = vmatprep.mubr.f32.mxu0 %v2590
        %3389 = vmatmul.mubr.f32.gmra.mxu0 %v2478
        %v3390 = vpop.f32.mrf.mxu0
        %v3391 = vadd.f32 %v3166, %v3390
        %v3392 = vpop.f32.mrf.mxu0
        %3393 = vmatprep.mubr.f32.mxu0 %v2592
        %3394 = vmatmul.mubr.f32.gmra.mxu0 %v2480
        %v3395 = vpop.f32.mrf.mxu0
        %v3396 = vadd.f32 %v3171, %v3395
        %v3397 = vpop.f32.mrf.mxu0
        %3398 = vmatprep.mubr.f32.mxu0 %v2595
        %3399 = vmatmul.mubr.f32.gmra.mxu0 %v2483
        %v3400 = vpop.f32.mrf.mxu0
        %v3401 = vadd.f32 %v3176, %v3400
        %v3402 = vpop.f32.mrf.mxu0
        %3403 = vmatprep.mubr.f32.mxu0 %v2597
        %3404 = vmatmul.mubr.f32.gmra.mxu0 %v2485
        %v3405 = vpop.f32.mrf.mxu0
        %v3406 = vadd.f32 %v3181, %v3405
        %v3407 = vpop.f32.mrf.mxu0
        %3408 = vmatprep.mubr.f32.mxu0 %v2600
        %3409 = vmatmul.mubr.f32.gmra.mxu0 %v2488
        %v3410 = vpop.f32.mrf.mxu0
        %v3411 = vadd.f32 %v3186, %v3410
        %v3412 = vpop.f32.mrf.mxu0
        %3413 = vmatprep.mubr.f32.mxu0 %v2602
        %3414 = vmatmul.mubr.f32.gmra.mxu0 %v2490
        %v3415 = vpop.f32.mrf.mxu0
        %v3416 = vadd.f32 %v3191, %v3415
        %v3417 = vpop.f32.mrf.mxu0
        %3418 = vmatprep.mubr.f32.mxu0 %v2605
        %3419 = vmatmul.mubr.f32.gmra.mxu0 %v2493
        %v3420 = vpop.f32.mrf.mxu0
        %v3421 = vadd.f32 %v3196, %v3420
        %v3422 = vpop.f32.mrf.mxu0
        %3423 = vmatprep.mubr.f32.mxu0 %v2607
        %3424 = vmatmul.mubr.f32.gmra.mxu0 %v2495
        %v3425 = vpop.f32.mrf.mxu0
        %v3426 = vadd.f32 %v3201, %v3425
        %v3427 = vpop.f32.mrf.mxu0
        %3428 = vmatprep.mubr.f32.mxu0 %v2610
        %3429 = vmatmul.mubr.f32.gmra.mxu0 %v2498
        %v3430 = vpop.f32.mrf.mxu0
        %v3431 = vadd.f32 %v3206, %v3430
        %v3432 = vpop.f32.mrf.mxu0
        %3433 = vmatprep.mubr.f32.mxu0 %v2612
        %3434 = vmatmul.mubr.f32.gmra.mxu0 %v2500
        %v3435 = vpop.f32.mrf.mxu0
        %v3436 = vadd.f32 %v3211, %v3435
        %v3437 = vpop.f32.mrf.mxu0
        %3438 = vmatprep.mubr.f32.mxu0 %v2615
        %3439 = vmatmul.mubr.f32.gmra.mxu0 %v2503
        %v3440 = vpop.f32.mrf.mxu0
        %v3441 = vadd.f32 %v3216, %v3440
        %v3442 = vpop.f32.mrf.mxu0
        %3443 = vmatprep.mubr.f32.mxu0 %v2617
        %3444 = vmatmul.mubr.f32.gmra.mxu0 %v2505
        %v3445 = vpop.f32.mrf.mxu0
        %v3446 = vadd.f32 %v3221, %v3445
        %v3447 = vpop.f32.mrf.mxu0
        %3448 = vmatprep.mubr.f32.mxu0 %v2620
        %3449 = vmatmul.mubr.f32.gmra.mxu0 %v2508
        %v3450 = vpop.f32.mrf.mxu0
        %v3451 = vadd.f32 %v3226, %v3450
        %v3452 = vpop.f32.mrf.mxu0
        %3453 = vmatprep.mubr.f32.mxu0 %v2622
        %3454 = vmatmul.mubr.f32.gmra.mxu0 %v2510
        %v3455 = vpop.f32.mrf.mxu0
        %v3456 = vadd.f32 %v3231, %v3455
        %v3457 = vpop.f32.mrf.mxu0
        %3458 = vmatprep.mubr.f32.mxu0 %v2625
        %3459 = vmatmul.mubr.f32.gmra.mxu0 %v2513
        %v3460 = vpop.f32.mrf.mxu0
        %v3461 = vadd.f32 %v3236, %v3460
        %v3462 = vpop.f32.mrf.mxu0
        %3463 = vmatprep.mubr.f32.mxu0 %v2627
        %3464 = vmatmul.mubr.f32.gmra.mxu0 %v2515
        %v3465 = vpop.f32.mrf.mxu0
        %v3466 = vadd.f32 %v3241, %v3465
        %v3467 = vpop.f32.mrf.mxu0
        %3468 = vmatprep.mubr.f32.mxu0 %v2630
        %3469 = vmatmul.mubr.f32.gmra.mxu0 %v2518
        %v3470 = vpop.f32.mrf.mxu0
        %v3471 = vadd.f32 %v3246, %v3470
        %v3472 = vpop.f32.mrf.mxu0
        %3473 = vmatprep.mubr.f32.mxu0 %v2632
        %3474 = vmatmul.mubr.f32.gmra.mxu0 %v2520
        %v3475 = vpop.f32.mrf.mxu0
        %v3476 = vadd.f32 %v3251, %v3475
        %v3477 = vpop.f32.mrf.mxu0
        %3478 = vmatprep.mubr.f32.mxu0 %v2635
        %3479 = vmatmul.mubr.f32.gmra.mxu0 %v2523
        %v3480 = vpop.f32.mrf.mxu0
        %v3481 = vadd.f32 %v3256, %v3480
        %v3482 = vpop.f32.mrf.mxu0
        %3483 = vmatprep.mubr.f32.mxu0 %v2637
        %3484 = vmatmul.mubr.f32.gmra.mxu0 %v2525
        %v3485 = vpop.f32.mrf.mxu0
        %v3486 = vadd.f32 %v3261, %v3485
        %v3487 = vpop.f32.mrf.mxu0
        %3488 = vmatprep.mubr.f32.mxu0 %v2640
        %3489 = vmatmul.mubr.f32.gmra.mxu0 %v2528
        %v3490 = vpop.f32.mrf.mxu0
        %v3491 = vadd.f32 %v3266, %v3490
        %v3492 = vpop.f32.mrf.mxu0
        %3493 = vmatprep.mubr.f32.mxu0 %v2642
        %3494 = vmatmul.mubr.f32.gmra.mxu0 %v2530
        %v3495 = vpop.f32.mrf.mxu0
        %v3496 = vadd.f32 %v3271, %v3495
        %v3497 = vpop.f32.mrf.mxu0
        %3498 = vmatprep.mubr.f32.mxu0 %v2645
        %3499 = vmatmul.mubr.f32.gmra.mxu0 %v2533
        %v3500 = vpop.f32.mrf.mxu0
        %v3501 = vadd.f32 %v3276, %v3500
        %v3502 = vpop.f32.mrf.mxu0
        %3503 = vmatprep.mubr.f32.mxu0 %v2647
        %3504 = vmatmul.mubr.f32.gmra.mxu0 %v2535
        %v3505 = vpop.f32.mrf.mxu0
        %v3506 = vadd.f32 %v3281, %v3505
        %v3507 = vpop.f32.mrf.mxu0
        %3508 = vmatprep.mubr.f32.mxu0 %v2650
        %3509 = vmatmul.mubr.f32.gmra.mxu0 %v2538
        %v3510 = vpop.f32.mrf.mxu0
        %v3511 = vadd.f32 %v3286, %v3510
        %v3512 = vpop.f32.mrf.mxu0
        %3513 = vmatprep.mubr.f32.mxu0 %v2652
        %3514 = vmatmul.mubr.f32.gmra.mxu0 %v2540
        %v3515 = vpop.f32.mrf.mxu0
        %v3516 = vadd.f32 %v3291, %v3515
        %v3517 = vpop.f32.mrf.mxu0
        %3518 = vmatprep.mubr.f32.mxu0 %v2655
        %3519 = vmatmul.mubr.f32.gmra.mxu0 %v2543
        %v3520 = vpop.f32.mrf.mxu0
        %v3521 = vadd.f32 %v3296, %v3520
        %v3522 = vpop.f32.mrf.mxu0
        %3523 = vmatprep.mubr.f32.mxu0 %v2657
        %3524 = vmatmul.mubr.f32.gmra.mxu0 %v2545
        %v3525 = vpop.f32.mrf.mxu0
        %v3526 = vadd.f32 %v3301, %v3525
        %v3527 = vpop.f32.mrf.mxu0
        %3528 = vmatprep.mubr.f32.mxu0 %v2660
        %3529 = vmatmul.mubr.f32.gmra.mxu0 %v2548
        %v3530 = vpop.f32.mrf.mxu0
        %v3531 = vadd.f32 %v3306, %v3530
        %v3532 = vpop.f32.mrf.mxu0
        %3533 = vmatprep.mubr.f32.mxu0 %v2662
        %3534 = vmatmul.mubr.f32.gmra.mxu0 %v2550
        %v3535 = vpop.f32.mrf.mxu0
        %v3536 = vadd.f32 %v3311, %v3535
        %v3537 = vpop.f32.mrf.mxu0
        %3538 = vmatprep.mubr.f32.mxu0 %v2707
        %3539 = vmatmul.mubr.f32.gmra.mxu0 %v2700
        %v3540 = vpop.f32.mrf.mxu0
        %v3541 = vadd.f32 %v3316, %v3540
        %v3542 = vpop.f32.mrf.mxu0
        %3543 = vmatprep.mubr.f32.mxu0 %v2709
        %3544 = vmatmul.mubr.f32.gmra.mxu0 %v2702
        %v3545 = vpop.f32.mrf.mxu0
        %v3546 = vadd.f32 %v3321, %v3545
        %v3547 = vpop.f32.mrf.mxu0
        %3548 = vdwg.mxu0
        %3549 = vmatprep.subr.mxu0 0.0
        %3550 = vmatpush1.msra.mxu0 %v2841
        %3551 = vmatprep.subr.mxu0 0.0
        %3552 = vmatpush1.msra.mxu0 %v2840
        %3553 = vmatprep.subr.mxu0 0.0
        %3554 = vmatpush1.msra.mxu0 %v2839
        %3555 = vmatprep.subr.mxu0 0.0
        %3556 = vmatpush1.msra.mxu0 %v2838
        %3557 = vmatprep.subr.mxu0 0.0
        %3558 = vmatpush1.msra.mxu0 %v2837
        %3559 = vmatprep.subr.mxu0 0.0
        %3560 = vmatpush1.msra.mxu0 %v2836
        %3561 = vmatprep.subr.mxu0 0.0
        %3562 = vmatpush1.msra.mxu0 %v2835
        %3563 = vmatprep.subr.mxu0 0.0
        %3564 = vmatpush1.msra.mxu0 %v2834
        %3565 = vmatprep.subr.mxu0 0.0
        %3566 = vmatpush1.msra.mxu0 %v2833
        %3567 = vmatprep.subr.mxu0 0.0
        %3568 = vmatpush1.msra.mxu0 %v2832
        %3569 = vmatprep.subr.mxu0 0.0
        %3570 = vmatpush1.msra.mxu0 %v2831
        %3571 = vmatprep.subr.mxu0 0.0
        %3572 = vmatpush1.msra.mxu0 %v2830
        %3573 = vmatprep.subr.mxu0 0.0
        %3574 = vmatpush1.msra.mxu0 %v2829
        %3575 = vmatprep.subr.mxu0 0.0
        %3576 = vmatpush1.msra.mxu0 %v2828
        %3577 = vmatprep.subr.mxu0 0.0
        %3578 = vmatpush1.msra.mxu0 %v2827
        %3579 = vmatprep.subr.mxu0 0.0
        %3580 = vmatpush1.msra.mxu0 %v2826
        %3581 = vmatprep.subr.mxu0 0.0
        %3582 = vmatpush2.msra.mxu0 %v2857
        %3583 = vmatprep.subr.mxu0 0.0
        %3584 = vmatpush2.msra.mxu0 %v2856
        %3585 = vmatprep.subr.mxu0 0.0
        %3586 = vmatpush2.msra.mxu0 %v2855
        %3587 = vmatprep.subr.mxu0 0.0
        %3588 = vmatpush2.msra.mxu0 %v2854
        %3589 = vmatprep.subr.mxu0 0.0
        %3590 = vmatpush2.msra.mxu0 %v2853
        %3591 = vmatprep.subr.mxu0 0.0
        %3592 = vmatpush2.msra.mxu0 %v2852
        %3593 = vmatprep.subr.mxu0 0.0
        %3594 = vmatpush2.msra.mxu0 %v2851
        %3595 = vmatprep.subr.mxu0 0.0
        %3596 = vmatpush2.msra.mxu0 %v2850
        %3597 = vmatprep.subr.mxu0 0.0
        %3598 = vmatpush2.msra.mxu0 %v2849
        %3599 = vmatprep.subr.mxu0 0.0
        %3600 = vmatpush2.msra.mxu0 %v2848
        %3601 = vmatprep.subr.mxu0 0.0
        %3602 = vmatpush2.msra.mxu0 %v2847
        %3603 = vmatprep.subr.mxu0 0.0
        %3604 = vmatpush2.msra.mxu0 %v2846
        %3605 = vmatprep.subr.mxu0 0.0
        %3606 = vmatpush2.msra.mxu0 %v2845
        %3607 = vmatprep.subr.mxu0 0.0
        %3608 = vmatpush2.msra.mxu0 %v2844
        %3609 = vmatprep.subr.mxu0 0.0
        %3610 = vmatpush2.msra.mxu0 %v2843
        %3611 = vmatprep.subr.mxu0 0.0
        %3612 = vmatpush2.msra.mxu0 %v2842
        %3613 = vmatprep.mubr.f32.mxu0 %v2483
        %3614 = vmatmul.mubr.f32.gmra.mxu0 %v2375
        %v3615 = vpop.f32.mrf.mxu0
        %v3616 = vadd.f32 %v3391, %v3615
        %v3617 = vpop.f32.mrf.mxu0
        %3618 = vmatprep.mubr.f32.mxu0 %v2485
        %3619 = vmatmul.mubr.f32.gmra.mxu0 %v2376
        %v3620 = vpop.f32.mrf.mxu0
        %v3621 = vadd.f32 %v3396, %v3620
        %v3622 = vpop.f32.mrf.mxu0
        %3623 = vmatprep.mubr.f32.mxu0 %v2488
        %3624 = vmatmul.mubr.f32.gmra.mxu0 %v2378
        %v3625 = vpop.f32.mrf.mxu0
        %v3626 = vadd.f32 %v3401, %v3625
        %v3627 = vpop.f32.mrf.mxu0
        %3628 = vmatprep.mubr.f32.mxu0 %v2490
        %3629 = vmatmul.mubr.f32.gmra.mxu0 %v2379
        %v3630 = vpop.f32.mrf.mxu0
        %v3631 = vadd.f32 %v3406, %v3630
        %v3632 = vpop.f32.mrf.mxu0
        %3633 = vmatprep.mubr.f32.mxu0 %v2493
        %3634 = vmatmul.mubr.f32.gmra.mxu0 %v2381
        %v3635 = vpop.f32.mrf.mxu0
        %v3636 = vadd.f32 %v3411, %v3635
        %v3637 = vpop.f32.mrf.mxu0
        %3638 = vmatprep.mubr.f32.mxu0 %v2495
        %3639 = vmatmul.mubr.f32.gmra.mxu0 %v2382
        %v3640 = vpop.f32.mrf.mxu0
        %v3641 = vadd.f32 %v3416, %v3640
        %v3642 = vpop.f32.mrf.mxu0
        %3643 = vmatprep.mubr.f32.mxu0 %v2498
        %3644 = vmatmul.mubr.f32.gmra.mxu0 %v2384
        %v3645 = vpop.f32.mrf.mxu0
        %v3646 = vadd.f32 %v3421, %v3645
        %v3647 = vpop.f32.mrf.mxu0
        %3648 = vmatprep.mubr.f32.mxu0 %v2500
        %3649 = vmatmul.mubr.f32.gmra.mxu0 %v2385
        %v3650 = vpop.f32.mrf.mxu0
        %v3651 = vadd.f32 %v3426, %v3650
        %v3652 = vpop.f32.mrf.mxu0
        %3653 = vmatprep.mubr.f32.mxu0 %v2503
        %3654 = vmatmul.mubr.f32.gmra.mxu0 %v2387
        %v3655 = vpop.f32.mrf.mxu0
        %v3656 = vadd.f32 %v3431, %v3655
        %v3657 = vpop.f32.mrf.mxu0
        %3658 = vmatprep.mubr.f32.mxu0 %v2505
        %3659 = vmatmul.mubr.f32.gmra.mxu0 %v2388
        %v3660 = vpop.f32.mrf.mxu0
        %v3661 = vadd.f32 %v3436, %v3660
        %v3662 = vpop.f32.mrf.mxu0
        %3663 = vmatprep.mubr.f32.mxu0 %v2508
        %3664 = vmatmul.mubr.f32.gmra.mxu0 %v2390
        %v3665 = vpop.f32.mrf.mxu0
        %v3666 = vadd.f32 %v3441, %v3665
        %v3667 = vpop.f32.mrf.mxu0
        %3668 = vmatprep.mubr.f32.mxu0 %v2510
        %3669 = vmatmul.mubr.f32.gmra.mxu0 %v2391
        %v3670 = vpop.f32.mrf.mxu0
        %v3671 = vadd.f32 %v3446, %v3670
        %v3672 = vpop.f32.mrf.mxu0
        %3673 = vmatprep.mubr.f32.mxu0 %v2513
        %3674 = vmatmul.mubr.f32.gmra.mxu0 %v2393
        %v3675 = vpop.f32.mrf.mxu0
        %v3676 = vadd.f32 %v3451, %v3675
        %v3677 = vpop.f32.mrf.mxu0
        %3678 = vmatprep.mubr.f32.mxu0 %v2515
        %3679 = vmatmul.mubr.f32.gmra.mxu0 %v2394
        %v3680 = vpop.f32.mrf.mxu0
        %v3681 = vadd.f32 %v3456, %v3680
        %v3682 = vpop.f32.mrf.mxu0
        %3683 = vmatprep.mubr.f32.mxu0 %v2518
        %3684 = vmatmul.mubr.f32.gmra.mxu0 %v2396
        %v3685 = vpop.f32.mrf.mxu0
        %v3686 = vadd.f32 %v3461, %v3685
        %v3687 = vpop.f32.mrf.mxu0
        %3688 = vmatprep.mubr.f32.mxu0 %v2520
        %3689 = vmatmul.mubr.f32.gmra.mxu0 %v2397
        %v3690 = vpop.f32.mrf.mxu0
        %v3691 = vadd.f32 %v3466, %v3690
        %v3692 = vpop.f32.mrf.mxu0
        %3693 = vmatprep.mubr.f32.mxu0 %v2523
        %3694 = vmatmul.mubr.f32.gmra.mxu0 %v2399
        %v3695 = vpop.f32.mrf.mxu0
        %v3696 = vadd.f32 %v3471, %v3695
        %v3697 = vpop.f32.mrf.mxu0
        %3698 = vmatprep.mubr.f32.mxu0 %v2525
        %3699 = vmatmul.mubr.f32.gmra.mxu0 %v2400
        %v3700 = vpop.f32.mrf.mxu0
        %v3701 = vadd.f32 %v3476, %v3700
        %v3702 = vpop.f32.mrf.mxu0
        %3703 = vmatprep.mubr.f32.mxu0 %v2528
        %3704 = vmatmul.mubr.f32.gmra.mxu0 %v2402
        %v3705 = vpop.f32.mrf.mxu0
        %v3706 = vadd.f32 %v3481, %v3705
        %v3707 = vpop.f32.mrf.mxu0
        %3708 = vmatprep.mubr.f32.mxu0 %v2530
        %3709 = vmatmul.mubr.f32.gmra.mxu0 %v2403
        %v3710 = vpop.f32.mrf.mxu0
        %v3711 = vadd.f32 %v3486, %v3710
        %v3712 = vpop.f32.mrf.mxu0
        %3713 = vmatprep.mubr.f32.mxu0 %v2533
        %3714 = vmatmul.mubr.f32.gmra.mxu0 %v2405
        %v3715 = vpop.f32.mrf.mxu0
        %v3716 = vadd.f32 %v3491, %v3715
        %v3717 = vpop.f32.mrf.mxu0
        %3718 = vmatprep.mubr.f32.mxu0 %v2535
        %3719 = vmatmul.mubr.f32.gmra.mxu0 %v2406
        %v3720 = vpop.f32.mrf.mxu0
        %v3721 = vadd.f32 %v3496, %v3720
        %v3722 = vpop.f32.mrf.mxu0
        %3723 = vmatprep.mubr.f32.mxu0 %v2538
        %3724 = vmatmul.mubr.f32.gmra.mxu0 %v2408
        %v3725 = vpop.f32.mrf.mxu0
        %v3726 = vadd.f32 %v3501, %v3725
        %v3727 = vpop.f32.mrf.mxu0
        %3728 = vmatprep.mubr.f32.mxu0 %v2540
        %3729 = vmatmul.mubr.f32.gmra.mxu0 %v2409
        %v3730 = vpop.f32.mrf.mxu0
        %v3731 = vadd.f32 %v3506, %v3730
        %v3732 = vpop.f32.mrf.mxu0
        %3733 = vmatprep.mubr.f32.mxu0 %v2543
        %3734 = vmatmul.mubr.f32.gmra.mxu0 %v2411
        %v3735 = vpop.f32.mrf.mxu0
        %v3736 = vadd.f32 %v3511, %v3735
        %v3737 = vpop.f32.mrf.mxu0
        %3738 = vmatprep.mubr.f32.mxu0 %v2545
        %3739 = vmatmul.mubr.f32.gmra.mxu0 %v2412
        %v3740 = vpop.f32.mrf.mxu0
        %v3741 = vadd.f32 %v3516, %v3740
        %v3742 = vpop.f32.mrf.mxu0
        %3743 = vmatprep.mubr.f32.mxu0 %v2548
        %3744 = vmatmul.mubr.f32.gmra.mxu0 %v2414
        %v3745 = vpop.f32.mrf.mxu0
        %v3746 = vadd.f32 %v3521, %v3745
        %v3747 = vpop.f32.mrf.mxu0
        %3748 = vmatprep.mubr.f32.mxu0 %v2550
        %3749 = vmatmul.mubr.f32.gmra.mxu0 %v2415
        %v3750 = vpop.f32.mrf.mxu0
        %v3751 = vadd.f32 %v3526, %v3750
        %v3752 = vpop.f32.mrf.mxu0
        %3753 = vmatprep.mubr.f32.mxu0 %v2700
        %3754 = vmatmul.mubr.f32.gmra.mxu0 %v2417
        %v3755 = vpop.f32.mrf.mxu0
        %v3756 = vadd.f32 %v3531, %v3755
        %v3757 = vpop.f32.mrf.mxu0
        %3758 = vmatprep.mubr.f32.mxu0 %v2702
        %3759 = vmatmul.mubr.f32.gmra.mxu0 %v2418
        %v3760 = vpop.f32.mrf.mxu0
        %v3761 = vadd.f32 %v3536, %v3760
        %v3762 = vpop.f32.mrf.mxu0
        %3763 = vmatprep.mubr.f32.mxu0 %v2717
        %3764 = vmatmul.mubr.f32.gmra.mxu0 %v2420
        %v3765 = vpop.f32.mrf.mxu0
        %v3766 = vadd.f32 %v3541, %v3765
        %v3767 = vpop.f32.mrf.mxu0
        %3768 = vmatprep.mubr.f32.mxu0 %v2719
        %3769 = vmatmul.mubr.f32.gmra.mxu0 %v2421
        %v3770 = vpop.f32.mrf.mxu0
        %v3771 = vadd.f32 %v3546, %v3770
        %v3772 = vpop.f32.mrf.mxu0
        %3773 = vdwg.mxu0
        %3774 = vmatprep.subr.mxu0 0.0
        %3775 = vmatpush1.msra.mxu0 %v2873
        %3776 = vmatprep.subr.mxu0 0.0
        %3777 = vmatpush1.msra.mxu0 %v2872
        %3778 = vmatprep.subr.mxu0 0.0
        %3779 = vmatpush1.msra.mxu0 %v2871
        %3780 = vmatprep.subr.mxu0 0.0
        %3781 = vmatpush1.msra.mxu0 %v2870
        %3782 = vmatprep.subr.mxu0 0.0
        %3783 = vmatpush1.msra.mxu0 %v2869
        %3784 = vmatprep.subr.mxu0 0.0
        %3785 = vmatpush1.msra.mxu0 %v2868
        %3786 = vmatprep.subr.mxu0 0.0
        %3787 = vmatpush1.msra.mxu0 %v2867
        %3788 = vmatprep.subr.mxu0 0.0
        %3789 = vmatpush1.msra.mxu0 %v2866
        %3790 = vmatprep.subr.mxu0 0.0
        %3791 = vmatpush1.msra.mxu0 %v2865
        %3792 = vmatprep.subr.mxu0 0.0
        %3793 = vmatpush1.msra.mxu0 %v2864
        %3794 = vmatprep.subr.mxu0 0.0
        %3795 = vmatpush1.msra.mxu0 %v2863
        %3796 = vmatprep.subr.mxu0 0.0
        %3797 = vmatpush1.msra.mxu0 %v2862
        %3798 = vmatprep.subr.mxu0 0.0
        %3799 = vmatpush1.msra.mxu0 %v2861
        %3800 = vmatprep.subr.mxu0 0.0
        %3801 = vmatpush1.msra.mxu0 %v2860
        %3802 = vmatprep.subr.mxu0 0.0
        %3803 = vmatpush1.msra.mxu0 %v2859
        %3804 = vmatprep.subr.mxu0 0.0
        %3805 = vmatpush1.msra.mxu0 %v2858
        %3806 = vmatprep.subr.mxu0 0.0
        %3807 = vmatpush2.msra.mxu0 0.0
        %3808 = vmatprep.subr.mxu0 0.0
        %3809 = vmatpush2.msra.mxu0 0.0
        %3810 = vmatprep.subr.mxu0 0.0
        %3811 = vmatpush2.msra.mxu0 0.0
        %3812 = vmatprep.subr.mxu0 0.0
        %3813 = vmatpush2.msra.mxu0 0.0
        %3814 = vmatprep.subr.mxu0 0.0
        %3815 = vmatpush2.msra.mxu0 0.0
        %3816 = vmatprep.subr.mxu0 0.0
        %3817 = vmatpush2.msra.mxu0 0.0
        %3818 = vmatprep.subr.mxu0 0.0
        %3819 = vmatpush2.msra.mxu0 0.0
        %3820 = vmatprep.subr.mxu0 0.0
        %3821 = vmatpush2.msra.mxu0 0.0
        %3822 = vmatprep.subr.mxu0 0.0
        %3823 = vmatpush2.msra.mxu0 0.0
        %3824 = vmatprep.subr.mxu0 0.0
        %3825 = vmatpush2.msra.mxu0 0.0
        %3826 = vmatprep.subr.mxu0 0.0
        %3827 = vmatpush2.msra.mxu0 0.0
        %3828 = vmatprep.subr.mxu0 0.0
        %3829 = vmatpush2.msra.mxu0 0.0
        %3830 = vmatprep.subr.mxu0 0.0
        %3831 = vmatpush2.msra.mxu0 0.0
        %3832 = vmatprep.subr.mxu0 0.0
        %3833 = vmatpush2.msra.mxu0 0.0
        %3834 = vmatprep.subr.mxu0 0.0
        %3835 = vmatpush2.msra.mxu0 0.0
        %3836 = vmatprep.subr.mxu0 0.0
        %3837 = vmatpush2.msra.mxu0 0.0
        %3838 = vmatprep.mubr.f32.mxu0 0.0
        %3839 = vmatmul.mubr.f32.gmra.mxu0 %v2595
        %v3840 = vpop.f32.mrf.mxu0
        %v3841 = vadd.f32 %v3616, %v3840
        %v3842 = vpop.f32.mrf.mxu0
        %3843 = vmatprep.mubr.f32.mxu0 0.0
        %3844 = vmatmul.mubr.f32.gmra.mxu0 %v2597
        %v3845 = vpop.f32.mrf.mxu0
        %v3846 = vadd.f32 %v3621, %v3845
        %v3847 = vpop.f32.mrf.mxu0
        %3848 = vmatprep.mubr.f32.mxu0 0.0
        %3849 = vmatmul.mubr.f32.gmra.mxu0 %v2600
        %v3850 = vpop.f32.mrf.mxu0
        %v3851 = vadd.f32 %v3626, %v3850
        %v3852 = vpop.f32.mrf.mxu0
        %3853 = vmatprep.mubr.f32.mxu0 0.0
        %3854 = vmatmul.mubr.f32.gmra.mxu0 %v2602
        %v3855 = vpop.f32.mrf.mxu0
        %v3856 = vadd.f32 %v3631, %v3855
        %v3857 = vpop.f32.mrf.mxu0
        %3858 = vmatprep.mubr.f32.mxu0 0.0
        %3859 = vmatmul.mubr.f32.gmra.mxu0 %v2605
        %v3860 = vpop.f32.mrf.mxu0
        %v3861 = vadd.f32 %v3636, %v3860
        %v3862 = vpop.f32.mrf.mxu0
        %3863 = vmatprep.mubr.f32.mxu0 0.0
        %3864 = vmatmul.mubr.f32.gmra.mxu0 %v2607
        %v3865 = vpop.f32.mrf.mxu0
        %v3866 = vadd.f32 %v3641, %v3865
        %v3867 = vpop.f32.mrf.mxu0
        %3868 = vmatprep.mubr.f32.mxu0 0.0
        %3869 = vmatmul.mubr.f32.gmra.mxu0 %v2610
        %v3870 = vpop.f32.mrf.mxu0
        %v3871 = vadd.f32 %v3646, %v3870
        %v3872 = vpop.f32.mrf.mxu0
        %3873 = vmatprep.mubr.f32.mxu0 0.0
        %3874 = vmatmul.mubr.f32.gmra.mxu0 %v2612
        %v3875 = vpop.f32.mrf.mxu0
        %v3876 = vadd.f32 %v3651, %v3875
        %v3877 = vpop.f32.mrf.mxu0
        %3878 = vmatprep.mubr.f32.mxu0 0.0
        %3879 = vmatmul.mubr.f32.gmra.mxu0 %v2615
        %v3880 = vpop.f32.mrf.mxu0
        %v3881 = vadd.f32 %v3656, %v3880
        %v3882 = vpop.f32.mrf.mxu0
        %3883 = vmatprep.mubr.f32.mxu0 0.0
        %3884 = vmatmul.mubr.f32.gmra.mxu0 %v2617
        %v3885 = vpop.f32.mrf.mxu0
        %v3886 = vadd.f32 %v3661, %v3885
        %v3887 = vpop.f32.mrf.mxu0
        %3888 = vmatprep.mubr.f32.mxu0 0.0
        %3889 = vmatmul.mubr.f32.gmra.mxu0 %v2620
        %v3890 = vpop.f32.mrf.mxu0
        %v3891 = vadd.f32 %v3666, %v3890
        %v3892 = vpop.f32.mrf.mxu0
        %3893 = vmatprep.mubr.f32.mxu0 0.0
        %3894 = vmatmul.mubr.f32.gmra.mxu0 %v2622
        %v3895 = vpop.f32.mrf.mxu0
        %v3896 = vadd.f32 %v3671, %v3895
        %v3897 = vpop.f32.mrf.mxu0
        %3898 = vmatprep.mubr.f32.mxu0 0.0
        %3899 = vmatmul.mubr.f32.gmra.mxu0 %v2625
        %v3900 = vpop.f32.mrf.mxu0
        %v3901 = vadd.f32 %v3676, %v3900
        %v3902 = vpop.f32.mrf.mxu0
        %3903 = vmatprep.mubr.f32.mxu0 0.0
        %3904 = vmatmul.mubr.f32.gmra.mxu0 %v2627
        %v3905 = vpop.f32.mrf.mxu0
        %v3906 = vadd.f32 %v3681, %v3905
        %v3907 = vpop.f32.mrf.mxu0
        %3908 = vmatprep.mubr.f32.mxu0 0.0
        %3909 = vmatmul.mubr.f32.gmra.mxu0 %v2630
        %v3910 = vpop.f32.mrf.mxu0
        %v3911 = vadd.f32 %v3686, %v3910
        %v3912 = vpop.f32.mrf.mxu0
        %3913 = vmatprep.mubr.f32.mxu0 0.0
        %3914 = vmatmul.mubr.f32.gmra.mxu0 %v2632
        %v3915 = vpop.f32.mrf.mxu0
        %v3916 = vadd.f32 %v3691, %v3915
        %v3917 = vpop.f32.mrf.mxu0
        %3918 = vmatprep.mubr.f32.mxu0 0.0
        %3919 = vmatmul.mubr.f32.gmra.mxu0 %v2635
        %v3920 = vpop.f32.mrf.mxu0
        %v3921 = vadd.f32 %v3696, %v3920
        %v3922 = vpop.f32.mrf.mxu0
        %3923 = vmatprep.mubr.f32.mxu0 0.0
        %3924 = vmatmul.mubr.f32.gmra.mxu0 %v2637
        %v3925 = vpop.f32.mrf.mxu0
        %v3926 = vadd.f32 %v3701, %v3925
        %v3927 = vpop.f32.mrf.mxu0
        %3928 = vmatprep.mubr.f32.mxu0 0.0
        %3929 = vmatmul.mubr.f32.gmra.mxu0 %v2640
        %v3930 = vpop.f32.mrf.mxu0
        %v3931 = vadd.f32 %v3706, %v3930
        %v3932 = vpop.f32.mrf.mxu0
        %3933 = vmatprep.mubr.f32.mxu0 0.0
        %3934 = vmatmul.mubr.f32.gmra.mxu0 %v2642
        %v3935 = vpop.f32.mrf.mxu0
        %v3936 = vadd.f32 %v3711, %v3935
        %v3937 = vpop.f32.mrf.mxu0
        %3938 = vmatprep.mubr.f32.mxu0 0.0
        %3939 = vmatmul.mubr.f32.gmra.mxu0 %v2645
        %v3940 = vpop.f32.mrf.mxu0
        %v3941 = vadd.f32 %v3716, %v3940
        %v3942 = vpop.f32.mrf.mxu0
        %3943 = vmatprep.mubr.f32.mxu0 0.0
        %3944 = vmatmul.mubr.f32.gmra.mxu0 %v2647
        %v3945 = vpop.f32.mrf.mxu0
        %v3946 = vadd.f32 %v3721, %v3945
        %v3947 = vpop.f32.mrf.mxu0
        %3948 = vmatprep.mubr.f32.mxu0 0.0
        %3949 = vmatmul.mubr.f32.gmra.mxu0 %v2650
        %v3950 = vpop.f32.mrf.mxu0
        %v3951 = vadd.f32 %v3726, %v3950
        %v3952 = vpop.f32.mrf.mxu0
        %3953 = vmatprep.mubr.f32.mxu0 0.0
        %3954 = vmatmul.mubr.f32.gmra.mxu0 %v2652
        %v3955 = vpop.f32.mrf.mxu0
        %v3956 = vadd.f32 %v3731, %v3955
        %v3957 = vpop.f32.mrf.mxu0
        %3958 = vmatprep.mubr.f32.mxu0 0.0
        %3959 = vmatmul.mubr.f32.gmra.mxu0 %v2655
        %v3960 = vpop.f32.mrf.mxu0
        %v3961 = vadd.f32 %v3736, %v3960
        %v3962 = vpop.f32.mrf.mxu0
        %3963 = vmatprep.mubr.f32.mxu0 0.0
        %3964 = vmatmul.mubr.f32.gmra.mxu0 %v2657
        %v3965 = vpop.f32.mrf.mxu0
        %v3966 = vadd.f32 %v3741, %v3965
        %v3967 = vpop.f32.mrf.mxu0
        %3968 = vmatprep.mubr.f32.mxu0 0.0
        %3969 = vmatmul.mubr.f32.gmra.mxu0 %v2660
        %v3970 = vpop.f32.mrf.mxu0
        %v3971 = vadd.f32 %v3746, %v3970
        %v3972 = vpop.f32.mrf.mxu0
        %3973 = vmatprep.mubr.f32.mxu0 0.0
        %3974 = vmatmul.mubr.f32.gmra.mxu0 %v2662
        %v3975 = vpop.f32.mrf.mxu0
        %v3976 = vadd.f32 %v3751, %v3975
        %v3977 = vpop.f32.mrf.mxu0
        %3978 = vmatprep.mubr.f32.mxu0 0.0
        %3979 = vmatmul.mubr.f32.gmra.mxu0 %v2707
        %v3980 = vpop.f32.mrf.mxu0
        %v3981 = vadd.f32 %v3756, %v3980
        %v3982 = vpop.f32.mrf.mxu0
        %3983 = vmatprep.mubr.f32.mxu0 0.0
        %3984 = vmatmul.mubr.f32.gmra.mxu0 %v2709
        %v3985 = vpop.f32.mrf.mxu0
        %v3986 = vadd.f32 %v3761, %v3985
        %v3987 = vpop.f32.mrf.mxu0
        %3988 = vmatprep.mubr.f32.mxu0 0.0
        %3989 = vmatmul.mubr.f32.gmra.mxu0 %v2724
        %v3990 = vpop.f32.mrf.mxu0
        %v3991 = vadd.f32 %v3766, %v3990
        %v3992 = vpop.f32.mrf.mxu0
        %3993 = vmatprep.mubr.f32.mxu0 0.0
        %3994 = vmatmul.mubr.f32.gmra.mxu0 %v2726
        %v3995 = vpop.f32.mrf.mxu0
        %v3996 = vadd.f32 %v3771, %v3995
        %v3997 = vpop.f32.mrf.mxu0
        %3998 = vdwg.mxu0
        %v3999 = vmax.f32 %v3841, 0.0
        %v4000 = vmax.f32 %v3846, 0.0
        %v4001 = vmax.f32 %v3851, 0.0
        %v4002 = vmax.f32 %v3856, 0.0
        %v4003 = vmax.f32 %v3861, 0.0
        %v4004 = vmax.f32 %v3866, 0.0
        %v4005 = vmax.f32 %v3871, 0.0
        %v4006 = vmax.f32 %v3876, 0.0
        %v4007 = vmax.f32 %v3881, 0.0
        %v4008 = vmax.f32 %v3886, 0.0
        %v4009 = vmax.f32 %v3891, 0.0
        %v4010 = vmax.f32 %v3896, 0.0
        %v4011 = vmax.f32 %v3901, 0.0
        %v4012 = vmax.f32 %v3906, 0.0
        %v4013 = vmax.f32 %v3911, 0.0
        %v4014 = vmax.f32 %v3916, 0.0
        %v4015 = vmax.f32 %v3921, 0.0
        %v4016 = vmax.f32 %v3926, 0.0
        %v4017 = vmax.f32 %v3931, 0.0
        %v4018 = vmax.f32 %v3936, 0.0
        %v4019 = vmax.f32 %v3941, 0.0
        %v4020 = vmax.f32 %v3946, 0.0
        %v4021 = vmax.f32 %v3951, 0.0
        %v4022 = vmax.f32 %v3956, 0.0
        %v4023 = vmax.f32 %v3961, 0.0
        %v4024 = vmax.f32 %v3966, 0.0
        %v4025 = vmax.f32 %v3971, 0.0
        %v4026 = vmax.f32 %v3976, 0.0
        %v4027 = vmax.f32 %v3981, 0.0
        %v4028 = vmax.f32 %v3986, 0.0
        %v4029 = vmax.f32 %v3991, 0.0
        %v4030 = vmax.f32 %v3996, 0.0
        %s4031 = scalar_lea.vmem [#allocation8], 128
        %v4032 = vld [vmem:[%s4031] sm:$0xff]
        %v4033 = vld [vmem:[%s4031 + $0x8] sm:$0xff]
        %v4034 = vld [vmem:[%s4031 + $0x10] sm:$0xff]
        %v4035 = vld [vmem:[%s4031 + $0x18] sm:$0xff]
        %v4036 = vld [vmem:[%s4031 + $0x20] sm:$0xff]
        %v4037 = vld [vmem:[%s4031 + $0x28] sm:$0xff]
        %v4038 = vld [vmem:[%s4031 + $0x30] sm:$0xff]
        %v4039 = vld [vmem:[%s4031 + $0x38] sm:$0xff]
        %v4040 = vld [vmem:[%s4031 + $0x40] sm:$0xff]
        %v4041 = vld [vmem:[%s4031 + $0x48] sm:$0xff]
        %v4042 = vld [vmem:[%s4031 + $0x50] sm:$0xff]
        %v4043 = vld [vmem:[%s4031 + $0x58] sm:$0xff]
        %v4044 = vld [vmem:[%s4031 + $0x60] sm:$0xff]
        %v4045 = vld [vmem:[%s4031 + $0x68] sm:$0xff]
        %v4046 = vld [vmem:[%s4031 + $0x70] sm:$0xff]
        %v4047 = vld [vmem:[%s4031 + $0x78] sm:$0xff]
        %4048 = vmatprep.subr.mxu0 0.0
        %4049 = vmatpush1.msra.mxu0 %v4047
        %4050 = vmatprep.subr.mxu0 0.0
        %4051 = vmatpush1.msra.mxu0 %v4046
        %4052 = vmatprep.subr.mxu0 0.0
        %4053 = vmatpush1.msra.mxu0 %v4045
        %4054 = vmatprep.subr.mxu0 0.0
        %4055 = vmatpush1.msra.mxu0 %v4044
        %4056 = vmatprep.subr.mxu0 0.0
        %4057 = vmatpush1.msra.mxu0 %v4043
        %4058 = vmatprep.subr.mxu0 0.0
        %4059 = vmatpush1.msra.mxu0 %v4042
        %4060 = vmatprep.subr.mxu0 0.0
        %4061 = vmatpush1.msra.mxu0 %v4041
        %4062 = vmatprep.subr.mxu0 0.0
        %4063 = vmatpush1.msra.mxu0 %v4040
        %4064 = vmatprep.subr.mxu0 0.0
        %4065 = vmatpush1.msra.mxu0 %v4039
        %4066 = vmatprep.subr.mxu0 0.0
        %4067 = vmatpush1.msra.mxu0 %v4038
        %4068 = vmatprep.subr.mxu0 0.0
        %4069 = vmatpush1.msra.mxu0 %v4037
        %4070 = vmatprep.subr.mxu0 0.0
        %4071 = vmatpush1.msra.mxu0 %v4036
        %4072 = vmatprep.subr.mxu0 0.0
        %4073 = vmatpush1.msra.mxu0 %v4035
        %4074 = vmatprep.subr.mxu0 0.0
        %4075 = vmatpush1.msra.mxu0 %v4034
        %4076 = vmatprep.subr.mxu0 0.0
        %4077 = vmatpush1.msra.mxu0 %v4033
        %4078 = vmatprep.subr.mxu0 0.0
        %4079 = vmatpush1.msra.mxu0 %v4032
        %4080 = vmatprep.subr.mxu0 0.0
        %4081 = vmatpush2.msra.mxu0 0.0
        %4082 = vmatprep.subr.mxu0 0.0
        %4083 = vmatpush2.msra.mxu0 0.0
        %4084 = vmatprep.subr.mxu0 0.0
        %4085 = vmatpush2.msra.mxu0 0.0
        %4086 = vmatprep.subr.mxu0 0.0
        %4087 = vmatpush2.msra.mxu0 0.0
        %4088 = vmatprep.subr.mxu0 0.0
        %4089 = vmatpush2.msra.mxu0 0.0
        %4090 = vmatprep.subr.mxu0 0.0
        %4091 = vmatpush2.msra.mxu0 0.0
        %4092 = vmatprep.subr.mxu0 0.0
        %4093 = vmatpush2.msra.mxu0 0.0
        %4094 = vmatprep.subr.mxu0 0.0
        %4095 = vmatpush2.msra.mxu0 0.0
        %4096 = vmatprep.subr.mxu0 0.0
        %4097 = vmatpush2.msra.mxu0 0.0
        %4098 = vmatprep.subr.mxu0 0.0
        %4099 = vmatpush2.msra.mxu0 0.0
        %4100 = vmatprep.subr.mxu0 0.0
        %4101 = vmatpush2.msra.mxu0 0.0
        %4102 = vmatprep.subr.mxu0 0.0
        %4103 = vmatpush2.msra.mxu0 0.0
        %4104 = vmatprep.subr.mxu0 0.0
        %4105 = vmatpush2.msra.mxu0 0.0
        %4106 = vmatprep.subr.mxu0 0.0
        %4107 = vmatpush2.msra.mxu0 0.0
        %4108 = vmatprep.subr.mxu0 0.0
        %4109 = vmatpush2.msra.mxu0 0.0
        %4110 = vmatprep.subr.mxu0 0.0
        %4111 = vmatpush2.msra.mxu0 0.0
        %4112 = vmatprep.mubr.f32.mxu0 0.0
        %4113 = vmatmul.mubr.f32.gmra.mxu0 %v3999
        %v4114 = vpop.f32.mrf.mxu0
        %v4115 = vadd.f32 0.0, %v4114
        %v4116 = vpop.f32.mrf.mxu0
        %4117 = vmatprep.mubr.f32.mxu0 0.0
        %4118 = vmatmul.mubr.f32.gmra.mxu0 %v4000
        %v4119 = vpop.f32.mrf.mxu0
        %v4120 = vadd.f32 0.0, %v4119
        %v4121 = vpop.f32.mrf.mxu0
        %4122 = vmatprep.mubr.f32.mxu0 0.0
        %4123 = vmatmul.mubr.f32.gmra.mxu0 %v4001
        %v4124 = vpop.f32.mrf.mxu0
        %v4125 = vadd.f32 0.0, %v4124
        %v4126 = vpop.f32.mrf.mxu0
        %4127 = vmatprep.mubr.f32.mxu0 0.0
        %4128 = vmatmul.mubr.f32.gmra.mxu0 %v4002
        %v4129 = vpop.f32.mrf.mxu0
        %v4130 = vadd.f32 0.0, %v4129
        %v4131 = vpop.f32.mrf.mxu0
        %4132 = vmatprep.mubr.f32.mxu0 0.0
        %4133 = vmatmul.mubr.f32.gmra.mxu0 %v4003
        %v4134 = vpop.f32.mrf.mxu0
        %v4135 = vadd.f32 0.0, %v4134
        %v4136 = vpop.f32.mrf.mxu0
        %4137 = vmatprep.mubr.f32.mxu0 0.0
        %4138 = vmatmul.mubr.f32.gmra.mxu0 %v4004
        %v4139 = vpop.f32.mrf.mxu0
        %v4140 = vadd.f32 0.0, %v4139
        %v4141 = vpop.f32.mrf.mxu0
        %4142 = vmatprep.mubr.f32.mxu0 0.0
        %4143 = vmatmul.mubr.f32.gmra.mxu0 %v4005
        %v4144 = vpop.f32.mrf.mxu0
        %v4145 = vadd.f32 0.0, %v4144
        %v4146 = vpop.f32.mrf.mxu0
        %4147 = vmatprep.mubr.f32.mxu0 0.0
        %4148 = vmatmul.mubr.f32.gmra.mxu0 %v4006
        %v4149 = vpop.f32.mrf.mxu0
        %v4150 = vadd.f32 0.0, %v4149
        %v4151 = vpop.f32.mrf.mxu0
        %4152 = vmatprep.mubr.f32.mxu0 0.0
        %4153 = vmatmul.mubr.f32.gmra.mxu0 %v4007
        %v4154 = vpop.f32.mrf.mxu0
        %v4155 = vadd.f32 0.0, %v4154
        %v4156 = vpop.f32.mrf.mxu0
        %4157 = vmatprep.mubr.f32.mxu0 0.0
        %4158 = vmatmul.mubr.f32.gmra.mxu0 %v4008
        %v4159 = vpop.f32.mrf.mxu0
        %v4160 = vadd.f32 0.0, %v4159
        %v4161 = vpop.f32.mrf.mxu0
        %4162 = vmatprep.mubr.f32.mxu0 0.0
        %4163 = vmatmul.mubr.f32.gmra.mxu0 %v4009
        %v4164 = vpop.f32.mrf.mxu0
        %v4165 = vadd.f32 0.0, %v4164
        %v4166 = vpop.f32.mrf.mxu0
        %4167 = vmatprep.mubr.f32.mxu0 0.0
        %4168 = vmatmul.mubr.f32.gmra.mxu0 %v4010
        %v4169 = vpop.f32.mrf.mxu0
        %v4170 = vadd.f32 0.0, %v4169
        %v4171 = vpop.f32.mrf.mxu0
        %4172 = vmatprep.mubr.f32.mxu0 0.0
        %4173 = vmatmul.mubr.f32.gmra.mxu0 %v4011
        %v4174 = vpop.f32.mrf.mxu0
        %v4175 = vadd.f32 0.0, %v4174
        %v4176 = vpop.f32.mrf.mxu0
        %4177 = vmatprep.mubr.f32.mxu0 0.0
        %4178 = vmatmul.mubr.f32.gmra.mxu0 %v4012
        %v4179 = vpop.f32.mrf.mxu0
        %v4180 = vadd.f32 0.0, %v4179
        %v4181 = vpop.f32.mrf.mxu0
        %4182 = vmatprep.mubr.f32.mxu0 0.0
        %4183 = vmatmul.mubr.f32.gmra.mxu0 %v4013
        %v4184 = vpop.f32.mrf.mxu0
        %v4185 = vadd.f32 0.0, %v4184
        %v4186 = vpop.f32.mrf.mxu0
        %4187 = vmatprep.mubr.f32.mxu0 0.0
        %4188 = vmatmul.mubr.f32.gmra.mxu0 %v4014
        %v4189 = vpop.f32.mrf.mxu0
        %v4190 = vadd.f32 0.0, %v4189
        %v4191 = vpop.f32.mrf.mxu0
        %4192 = vmatprep.mubr.f32.mxu0 0.0
        %4193 = vmatmul.mubr.f32.gmra.mxu0 %v4015
        %v4194 = vpop.f32.mrf.mxu0
        %v4195 = vadd.f32 0.0, %v4194
        %v4196 = vpop.f32.mrf.mxu0
        %4197 = vmatprep.mubr.f32.mxu0 0.0
        %4198 = vmatmul.mubr.f32.gmra.mxu0 %v4016
        %v4199 = vpop.f32.mrf.mxu0
        %v4200 = vadd.f32 0.0, %v4199
        %v4201 = vpop.f32.mrf.mxu0
        %4202 = vmatprep.mubr.f32.mxu0 0.0
        %4203 = vmatmul.mubr.f32.gmra.mxu0 %v4017
        %v4204 = vpop.f32.mrf.mxu0
        %v4205 = vadd.f32 0.0, %v4204
        %v4206 = vpop.f32.mrf.mxu0
        %4207 = vmatprep.mubr.f32.mxu0 0.0
        %4208 = vmatmul.mubr.f32.gmra.mxu0 %v4018
        %v4209 = vpop.f32.mrf.mxu0
        %v4210 = vadd.f32 0.0, %v4209
        %v4211 = vpop.f32.mrf.mxu0
        %4212 = vmatprep.mubr.f32.mxu0 0.0
        %4213 = vmatmul.mubr.f32.gmra.mxu0 %v4019
        %v4214 = vpop.f32.mrf.mxu0
        %v4215 = vadd.f32 0.0, %v4214
        %v4216 = vpop.f32.mrf.mxu0
        %4217 = vmatprep.mubr.f32.mxu0 0.0
        %4218 = vmatmul.mubr.f32.gmra.mxu0 %v4020
        %v4219 = vpop.f32.mrf.mxu0
        %v4220 = vadd.f32 0.0, %v4219
        %v4221 = vpop.f32.mrf.mxu0
        %4222 = vmatprep.mubr.f32.mxu0 0.0
        %4223 = vmatmul.mubr.f32.gmra.mxu0 %v4021
        %v4224 = vpop.f32.mrf.mxu0
        %v4225 = vadd.f32 0.0, %v4224
        %v4226 = vpop.f32.mrf.mxu0
        %4227 = vmatprep.mubr.f32.mxu0 0.0
        %4228 = vmatmul.mubr.f32.gmra.mxu0 %v4022
        %v4229 = vpop.f32.mrf.mxu0
        %v4230 = vadd.f32 0.0, %v4229
        %v4231 = vpop.f32.mrf.mxu0
        %4232 = vmatprep.mubr.f32.mxu0 0.0
        %4233 = vmatmul.mubr.f32.gmra.mxu0 %v4023
        %v4234 = vpop.f32.mrf.mxu0
        %v4235 = vadd.f32 0.0, %v4234
        %v4236 = vpop.f32.mrf.mxu0
        %4237 = vmatprep.mubr.f32.mxu0 0.0
        %4238 = vmatmul.mubr.f32.gmra.mxu0 %v4024
        %v4239 = vpop.f32.mrf.mxu0
        %v4240 = vadd.f32 0.0, %v4239
        %v4241 = vpop.f32.mrf.mxu0
        %4242 = vmatprep.mubr.f32.mxu0 0.0
        %4243 = vmatmul.mubr.f32.gmra.mxu0 %v4025
        %v4244 = vpop.f32.mrf.mxu0
        %v4245 = vadd.f32 0.0, %v4244
        %v4246 = vpop.f32.mrf.mxu0
        %4247 = vmatprep.mubr.f32.mxu0 0.0
        %4248 = vmatmul.mubr.f32.gmra.mxu0 %v4026
        %v4249 = vpop.f32.mrf.mxu0
        %v4250 = vadd.f32 0.0, %v4249
        %v4251 = vpop.f32.mrf.mxu0
        %4252 = vmatprep.mubr.f32.mxu0 0.0
        %4253 = vmatmul.mubr.f32.gmra.mxu0 %v4027
        %v4254 = vpop.f32.mrf.mxu0
        %v4255 = vadd.f32 0.0, %v4254
        %v4256 = vpop.f32.mrf.mxu0
        %4257 = vmatprep.mubr.f32.mxu0 0.0
        %4258 = vmatmul.mubr.f32.gmra.mxu0 %v4028
        %v4259 = vpop.f32.mrf.mxu0
        %v4260 = vadd.f32 0.0, %v4259
        %v4261 = vpop.f32.mrf.mxu0
        %4262 = vmatprep.mubr.f32.mxu0 0.0
        %4263 = vmatmul.mubr.f32.gmra.mxu0 %v4029
        %v4264 = vpop.f32.mrf.mxu0
        %v4265 = vadd.f32 0.0, %v4264
        %v4266 = vpop.f32.mrf.mxu0
        %4267 = vmatprep.mubr.f32.mxu0 0.0
        %4268 = vmatmul.mubr.f32.gmra.mxu0 %v4030
        %v4269 = vpop.f32.mrf.mxu0
        %v4270 = vadd.f32 0.0, %v4269
        %v4271 = vpop.f32.mrf.mxu0
        %4272 = vdwg.mxu0
        %v4273 = vadd.f32 %v2273, %v4115
        %v4274 = vadd.f32 %v2274, %v4120
        %v4275 = vadd.f32 %v2275, %v4125
        %v4276 = vadd.f32 %v2276, %v4130
        %v4277 = vadd.f32 %v2277, %v4135
        %v4278 = vadd.f32 %v2278, %v4140
        %v4279 = vadd.f32 %v2279, %v4145
        %v4280 = vadd.f32 %v2280, %v4150
        %v4281 = vadd.f32 %v2281, %v4155
        %v4282 = vadd.f32 %v2282, %v4160
        %v4283 = vadd.f32 %v2283, %v4165
        %v4284 = vadd.f32 %v2284, %v4170
        %v4285 = vadd.f32 %v2285, %v4175
        %v4286 = vadd.f32 %v2286, %v4180
        %v4287 = vadd.f32 %v2287, %v4185
        %v4288 = vadd.f32 %v2288, %v4190
        %v4289 = vadd.f32 %v2289, %v4195
        %v4290 = vadd.f32 %v2290, %v4200
        %v4291 = vadd.f32 %v2291, %v4205
        %v4292 = vadd.f32 %v2292, %v4210
        %v4293 = vadd.f32 %v2293, %v4215
        %v4294 = vadd.f32 %v2294, %v4220
        %v4295 = vadd.f32 %v2295, %v4225
        %v4296 = vadd.f32 %v2296, %v4230
        %v4297 = vadd.f32 %v2297, %v4235
        %v4298 = vadd.f32 %v2298, %v4240
        %v4299 = vadd.f32 %v2299, %v4245
        %v4300 = vadd.f32 %v2300, %v4250
        %v4301 = vadd.f32 %v2301, %v4255
        %v4302 = vadd.f32 %v2302, %v4260
        %v4303 = vadd.f32 %v2303, %v4265
        %v4304 = vadd.f32 %v2304, %v4270
        %v4305 = vmax.f32 %v4273, 0.0
        %v4306 = vmax.f32 %v4274, 0.0
        %v4307 = vmax.f32 %v4275, 0.0
        %v4308 = vmax.f32 %v4276, 0.0
        %v4309 = vmax.f32 %v4277, 0.0
        %v4310 = vmax.f32 %v4278, 0.0
        %v4311 = vmax.f32 %v4279, 0.0
        %v4312 = vmax.f32 %v4280, 0.0
        %v4313 = vmax.f32 %v4281, 0.0
        %v4314 = vmax.f32 %v4282, 0.0
        %v4315 = vmax.f32 %v4283, 0.0
        %v4316 = vmax.f32 %v4284, 0.0
        %v4317 = vmax.f32 %v4285, 0.0
        %v4318 = vmax.f32 %v4286, 0.0
        %v4319 = vmax.f32 %v4287, 0.0
        %v4320 = vmax.f32 %v4288, 0.0
        %v4321 = vmax.f32 %v4289, 0.0
        %v4322 = vmax.f32 %v4290, 0.0
        %v4323 = vmax.f32 %v4291, 0.0
        %v4324 = vmax.f32 %v4292, 0.0
        %v4325 = vmax.f32 %v4293, 0.0
        %v4326 = vmax.f32 %v4294, 0.0
        %v4327 = vmax.f32 %v4295, 0.0
        %v4328 = vmax.f32 %v4296, 0.0
        %v4329 = vmax.f32 %v4297, 0.0
        %v4330 = vmax.f32 %v4298, 0.0
        %v4331 = vmax.f32 %v4299, 0.0
        %v4332 = vmax.f32 %v4300, 0.0
        %v4333 = vmax.f32 %v4301, 0.0
        %v4334 = vmax.f32 %v4302, 0.0
        %v4335 = vmax.f32 %v4303, 0.0
        %v4336 = vmax.f32 %v4304, 0.0
        %4337 = vst [vmem:[%s217] sm:$0xff] %v4305
        %4338 = vst [vmem:[%s217 + $0x8] sm:$0xff] %v4306
        %4339 = vst [vmem:[%s217 + $0x10] sm:$0xff] %v4307
        %4340 = vst [vmem:[%s217 + $0x18] sm:$0xff] %v4308
        %4341 = vst [vmem:[%s217 + $0x20] sm:$0xff] %v4309
        %4342 = vst [vmem:[%s217 + $0x28] sm:$0xff] %v4310
        %4343 = vst [vmem:[%s217 + $0x30] sm:$0xff] %v4311
        %4344 = vst [vmem:[%s217 + $0x38] sm:$0xff] %v4312
        %4345 = vst [vmem:[%s217 + $0x40] sm:$0xff] %v4313
        %4346 = vst [vmem:[%s217 + $0x48] sm:$0xff] %v4314
        %4347 = vst [vmem:[%s217 + $0x50] sm:$0xff] %v4315
        %4348 = vst [vmem:[%s217 + $0x58] sm:$0xff] %v4316
        %4349 = vst [vmem:[%s217 + $0x60] sm:$0xff] %v4317
        %4350 = vst [vmem:[%s217 + $0x68] sm:$0xff] %v4318
        %4351 = vst [vmem:[%s217 + $0x70] sm:$0xff] %v4319
        %4352 = vst [vmem:[%s217 + $0x78] sm:$0xff] %v4320
        %4353 = vst [vmem:[%s217 + $0x80] sm:$0xff] %v4321
        %4354 = vst [vmem:[%s217 + $0x88] sm:$0xff] %v4322
        %4355 = vst [vmem:[%s217 + $0x90] sm:$0xff] %v4323
        %4356 = vst [vmem:[%s217 + $0x98] sm:$0xff] %v4324
        %4357 = vst [vmem:[%s217 + $0xa0] sm:$0xff] %v4325
        %4358 = vst [vmem:[%s217 + $0xa8] sm:$0xff] %v4326
        %4359 = vst [vmem:[%s217 + $0xb0] sm:$0xff] %v4327
        %4360 = vst [vmem:[%s217 + $0xb8] sm:$0xff] %v4328
        %4361 = vst [vmem:[%s217 + $0xc0] sm:$0xff] %v4329
        %4362 = vst [vmem:[%s217 + $0xc8] sm:$0xff] %v4330
        %4363 = vst [vmem:[%s217 + $0xd0] sm:$0xff] %v4331
        %4364 = vst [vmem:[%s217 + $0xd8] sm:$0xff] %v4332
        %4365 = vst [vmem:[%s217 + $0xe0] sm:$0xff] %v4333
        %4366 = vst [vmem:[%s217 + $0xe8] sm:$0xff] %v4334
        %4367 = vst [vmem:[%s217 + $0xf0] sm:$0xff] %v4335
        %4368 = vst [vmem:[%s217 + $0xf8] sm:$0xff] %v4336
        %s4369 = sand.u32 %s97, 1
        %s4370 = scalar_lea.sflag [#allocation5], %s4369
        %s4371 = sand.u32 %s97, 1
        %s4372 = smul.addr %s4371, 256
        %s4373 = scalar_lea.vmem [#allocation9], %s4372
        // Predicated region
        $region45: #{tpu_custom_call.1} parent=31 // pred_check
          %p4374 = pneg %p107
        $region46: #{tpu_custom_call.1} parent=31 // pred_check_branch
          %4376 = sbr.rel (%p4374) target = $region48
        $region47: #{tpu_custom_call.1} parent=31 // pred_region
          %s4378 = ssub.s32 4096, 4096
          %4379 = vsyncadd %s4370, %s4378
          %s4380 = smul.addr %s21, 32
          %s4381 = smul.addr %s4380, 128
          %s4382 = scalar_lea.hbm %s3, %s4381
          %s4383 = sshll.u32 %s4373, 4
          %s4384 = int_to_ptr.vmem [resolvable:$true] %s4383
          %4389 = dma.vmem_to_hbm [thread:$0]  %s4384, 4096, %s4382, %s4370, 128, 128, 8
        $region48: #{tpu_custom_call.1} parent=31 // pred_fallthru
          _
      $region32: #{tpu_custom_call.1} parent=5 // pred_fallthru
        _
      %p4390 = scmp.le.s32.totalorder 2, %s16
      // Predicated region
      $region49: #{tpu_custom_call.1} parent=5 // pred_check
        %p4391 = pneg %p4390
      $region50: #{tpu_custom_call.1} parent=5 // pred_check_branch
        %4393 = sbr.rel (%p4391) target = $region52
      $region51: #{tpu_custom_call.1} parent=5 // pred_region
        %s4394 = ssub.s32 %s16, 2
        // Predicated region
        $region53: #{tpu_custom_call.1} parent=51 // pred_check
          %p4395 = pneg %p113
        $region54: #{tpu_custom_call.1} parent=51 // pred_check_branch
          %4397 = sbr.rel (%p4395) target = $region56
        $region55: #{tpu_custom_call.1} parent=51 // pred_region
          %s4398 = sand.u32 %s98, 1
          %s4399 = scalar_lea.sflag [#allocation5], %s4398
          %s4400 = sand.u32 %s98, 1
          %s4401 = smul.addr %s4400, 256
          %s4402 = scalar_lea.vmem [#allocation9], %s4401
          %4403 = dma.done %s4399, 4096
        $region56: #{tpu_custom_call.1} parent=51 // pred_fallthru
          _
      $region52: #{tpu_custom_call.1} parent=5 // pred_fallthru
        _
    $region6: #{tpu_custom_call.1} parent=1 // loop_footer
      %s20 = sadd.s32 1, %s16
    $region7: #{tpu_custom_call.1} parent=1 // loop_footer_branch
      %15 = sbr.rel target = $region3
    $region8: #{tpu_custom_call.1} parent=1 // loop_exit
      _
    %4404 = vsyncpa [#allocation4], 1
    %s4405 = scalar_lea.sflag [#allocation4], 1
    %4406 = vsyncpa %s4405, 1
    %4407 = vsyncpa [#allocation7], 1
    %4408 = vsyncpa [#allocation5], 1
    %s4409 = scalar_lea.sflag [#allocation5], 1
    %4410 = vsyncpa %s4409, 1

</llo_original>
